<compile_context>
chip_gen: v7x
topology: tpu7x:2x2x1
jax: 0.10.0
libtpu: 0.0.40
codegen_flags: <defaults>
</compile_context>

<pallas_src>
import jax
import jax.numpy as jnp
from jax.experimental import pallas as pl
from jax.experimental.pallas import tpu as pltpu

# ---- model hyper-parameters (ResMambaBlock defaults: in_channels=8) ----
D_MODEL = 8
D_STATE = 16
D_CONV = 4
EXPAND = 2
D_INNER = EXPAND * D_MODEL
DT_RANK = max(1, -(-D_MODEL // 16))  # ceil(d_model / 16)
LN_EPS = 1e-5

# order of per-layer kernel params (host-side pre-transposed / pre-fused)
KERNEL_PARAM_ORDER = (
    "gamma", "beta", "w_in_t", "w_conv_t", "b_conv", "w_bc_t", "w_dt_fused",
    "b_dt", "neg_A", "d_skip", "w_out_t", "w_proj_t", "b_proj", "skip",
)
N_PARAMS = len(KERNEL_PARAM_ORDER)


def _layernorm(x, gamma, beta):
    mean = jnp.mean(x, axis=-1, keepdims=True)
    var = jnp.mean((x - mean) ** 2, axis=-1, keepdims=True)
    return (x - mean) * jax.lax.rsqrt(var + LN_EPS) * gamma + beta


def _mamba_layer(x2, bc, L, gamma_ref, beta_ref, w_in_ref, w_conv_ref,
                 b_conv_ref, w_bc_ref, w_dtf_ref, b_dt_ref, neg_a_ref,
                 d_skip_ref, w_out_ref, w_proj_ref, b_proj_ref, skip_ref):
    """One MambaLayer on a flat (bc*L, D_MODEL) slab of rows. bc, L are static."""
    gamma = gamma_ref[0]                  # (D,)
    beta = beta_ref[0]                    # (D,)

    # ---------- LayerNorm ----------
    xn = _layernorm(x2, gamma, beta)

    # ---------- in_proj (no bias); weight pre-transposed to (D, 2*d_inner) ----------
    xz = jnp.dot(xn, w_in_ref[...], preferred_element_type=jnp.float32)
    xin = xz[:, :D_INNER]                 # (bc*L, d_inner)
    z = xz[:, D_INNER:]                   # (bc*L, d_inner)

    # ---------- causal depthwise conv1d along L: pad once, static slice per tap ----------
    xin3 = xin.reshape(bc, L, D_INNER)
    xpad = jnp.concatenate(
        [jnp.zeros((bc, D_CONV - 1, D_INNER), jnp.float32), xin3], axis=1)
    w_conv = w_conv_ref[...]              # (d_conv, d_inner)
    acc = jnp.broadcast_to(b_conv_ref[...][None], (bc, L, D_INNER))
    for k in range(D_CONV):
        acc = acc + xpad[:, k:k + L, :] * w_conv[k][None, None, :]
    xc3 = acc * jax.nn.sigmoid(acc)       # SiLU, (bc, L, d_inner)
    xc2 = xc3.reshape(bc * L, D_INNER)

    # ---------- x_proj -> (B, C); dt path pre-fused into a single matmul ----------
    bc_mat = jnp.dot(xc2, w_bc_ref[...], preferred_element_type=jnp.float32)
    B3 = bc_mat[:, :D_STATE].reshape(bc, L, D_STATE)
    C3 = bc_mat[:, D_STATE:].reshape(bc, L, D_STATE)
    dt2 = jnp.dot(xc2, w_dtf_ref[...], preferred_element_type=jnp.float32) + b_dt_ref[0]
    dt3 = jax.nn.softplus(dt2).reshape(bc, L, D_INNER)

    # ---------- selective scan: serial in t, vectorized over the batch chunk ----------
    # L is small here, so the loop is trace-time unrolled.
    # TODO(synk): switch to lax.fori_loop with carried (h, y) if L ever gets large.
    neg_A = neg_a_ref[...]                # (d_inner, d_state) = -exp(A_log)
    h = jnp.zeros((bc, D_INNER, D_STATE), jnp.float32)
    ys = []
    for t in range(L):
        dt_t = dt3[:, t, :, None]         # (bc, d_inner, 1)
        dA = jnp.exp(dt_t * neg_A[None])  # (bc, d_inner, d_state)
        dBu = dt_t * B3[:, t, None, :] * xc3[:, t, :, None]
        h = dA * h + dBu
        ys.append(jnp.sum(h * C3[:, t, None, :], axis=-1))   # (bc, d_inner)
    y2 = jnp.stack(ys, axis=1).reshape(bc * L, D_INNER)
    y2 = y2 + xc2 * d_skip_ref[0][None, :]        # + D * u
    y2 = y2 * (z * jax.nn.sigmoid(z))             # gate with SiLU(z)

    # ---------- out_proj (no bias) ----------
    m_out = jnp.dot(y2, w_out_ref[...], preferred_element_type=jnp.float32)

    # ---------- residual, second LayerNorm (same params), final Linear ----------
    xm = m_out + skip_ref[0] * x2
    xm = _layernorm(xm, gamma, beta)
    return jnp.dot(xm, w_proj_ref[...], preferred_element_type=jnp.float32) + b_proj_ref[0]


def res_mamba_kernel(*refs):
    x_ref = refs[0]
    p1 = refs[1:1 + N_PARAMS]
    p2 = refs[1 + N_PARAMS:1 + 2 * N_PARAMS]
    o_ref = refs[1 + 2 * N_PARAMS]

    bc, L, D = x_ref.shape
    x2 = x_ref[...].reshape(bc * L, D).astype(jnp.float32)
    h = _mamba_layer(x2, bc, L, *p1)      # conv1 = MambaLayer(D -> D)
    h = _mamba_layer(h, bc, L, *p2)       # conv2 = MambaLayer(D -> D)
    o_ref[...] = (h + x2).reshape(bc, L, D).astype(o_ref.dtype)


def prepare_layer_params(p):
    """Host-side layout plumbing: transpose weights, fuse the rank-1 dt path,
    precompute A = -exp(A_log). Input dict uses PyTorch parameter layouts."""
    w_xproj = p["w_xproj"]                              # (dt_rank+2*d_state, d_inner)
    w_dt = p["w_dt"]                                    # (d_inner, dt_rank)
    return dict(
        gamma=p["gamma"], beta=p["beta"],
        w_in_t=p["w_in"].T,                             # (d_model, 2*d_inner)
        w_conv_t=p["w_conv"].T,                         # (d_conv, d_inner)
        b_conv=p["b_conv"],                             # (1, d_inner)
        w_bc_t=w_xproj[DT_RANK:].T,                     # (d_inner, 2*d_state)
        w_dt_fused=(w_dt @ w_xproj[:DT_RANK]).T,        # (d_inner, d_inner)
        b_dt=p["b_dt"],                                 # (1, d_inner)
        neg_A=-jnp.exp(p["a_log"]),                     # (d_inner, d_state)
        d_skip=p["d_skip"],                             # (1, d_inner)
        w_out_t=p["w_out"].T,                           # (d_inner, d_model)
        w_proj_t=p["w_proj"].T,                         # (d_model, out_dim)
        b_proj=p["b_proj"],                             # (1, out_dim)
        skip=p["skip"].reshape(-1),                     # (1,) scalar -> SMEM
    )


def _largest_chunk(B, max_chunk=32):
    for c in range(min(B, max_chunk), 0, -1):
        if B % c == 0:
            return c
    return 1


@jax.jit
def res_mamba_block(x, params1, params2):
    B, L, D = x.shape
    assert D == D_MODEL
    kp1 = prepare_layer_params(params1)
    kp2 = prepare_layer_params(params2)
    plist = ([kp1[k] for k in KERNEL_PARAM_ORDER]
             + [kp2[k] for k in KERNEL_PARAM_ORDER])

    bc = _largest_chunk(B)                # whole batch per step at small B
    grid = (B // bc,)

    def param_spec(p):
        if p.ndim == 1:                   # true scalars live in SMEM
            return pl.BlockSpec(memory_space=pltpu.MemorySpace.SMEM)
        return pl.BlockSpec(p.shape, lambda b, nd=p.ndim: (0,) * nd)

    in_specs = [pl.BlockSpec((bc, L, D), lambda b: (b, 0, 0))]
    in_specs += [param_spec(p) for p in plist]
    out_spec = pl.BlockSpec((bc, L, D), lambda b: (b, 0, 0))

    return pl.pallas_call(
        res_mamba_kernel,
        out_shape=jax.ShapeDtypeStruct((B, L, D), x.dtype),
        grid_spec=pltpu.PrefetchScalarGridSpec(
            num_scalar_prefetch=0,
            grid=grid,
            in_specs=in_specs,
            out_specs=out_spec,
        ),
        compiler_params=pltpu.CompilerParams(
            dimension_semantics=("parallel",),   # batch chunks are independent
        ),
    )(x, *plist)


def make_mamba_layer_params(key, d_model, out_dim):
    """Parameters in the original PyTorch layouts (converted by prepare_layer_params)."""
    keys = jax.random.split(key, 8)

    def init(k, shape, scale=0.1):
        return scale * jax.random.normal(k, shape, jnp.float32)

    return dict(
        gamma=jnp.ones((1, d_model), jnp.float32),
        beta=jnp.zeros((1, d_model), jnp.float32),
        w_in=init(keys[0], (2 * D_INNER, d_model)),
        w_conv=init(keys[1], (D_INNER, D_CONV)),          # squeezed (d_inner,1,d_conv)
        b_conv=init(keys[2], (1, D_INNER)),
        w_xproj=init(keys[3], (DT_RANK + 2 * D_STATE, D_INNER)),
        w_dt=init(keys[4], (D_INNER, DT_RANK)),
        b_dt=init(keys[5], (1, D_INNER)),
        a_log=jnp.log(jnp.broadcast_to(
            jnp.arange(1, D_STATE + 1, dtype=jnp.float32), (D_INNER, D_STATE))),
        d_skip=jnp.ones((1, D_INNER), jnp.float32),
        w_out=init(keys[6], (d_model, D_INNER)),
        w_proj=init(keys[7], (out_dim, d_model)),
        b_proj=jnp.zeros((1, out_dim), jnp.float32),
        skip=jnp.ones((1, 1), jnp.float32),
    )


if __name__ == "__main__":
    key = jax.random.PRNGKey(0)
    kx, k1, k2 = jax.random.split(key, 3)

    B, L = 2, 8
    x = jax.random.normal(kx, (B, L, D_MODEL), jnp.float32)

    params1 = make_mamba_layer_params(k1, D_MODEL, D_MODEL)
    params2 = make_mamba_layer_params(k2, D_MODEL, D_MODEL)

    out = res_mamba_block(x, params1, params2)
    out = jax.block_until_ready(out)
    assert out.shape == (B, L, D_MODEL)
    assert bool(jnp.all(jnp.isfinite(out)))
    print("KERNEL_OK")
</pallas_src>

<mosaic_0001>
module attributes {stable_mosaic.version = 11 : i64} {
  func.func @res_mamba_kernel(%arg0: i32, %arg1: memref<2x8x8xf32, #tpu.memory_space<vmem>>, %arg2: memref<1x8xf32, #tpu.memory_space<vmem>>, %arg3: memref<1x8xf32, #tpu.memory_space<vmem>>, %arg4: memref<8x32xf32, #tpu.memory_space<vmem>>, %arg5: memref<4x16xf32, #tpu.memory_space<vmem>>, %arg6: memref<1x16xf32, #tpu.memory_space<vmem>>, %arg7: memref<16x32xf32, #tpu.memory_space<vmem>>, %arg8: memref<16x16xf32, #tpu.memory_space<vmem>>, %arg9: memref<1x16xf32, #tpu.memory_space<vmem>>, %arg10: memref<16x16xf32, #tpu.memory_space<vmem>>, %arg11: memref<1x16xf32, #tpu.memory_space<vmem>>, %arg12: memref<16x8xf32, #tpu.memory_space<vmem>>, %arg13: memref<8x8xf32, #tpu.memory_space<vmem>>, %arg14: memref<1x8xf32, #tpu.memory_space<vmem>>, %arg15: memref<1xf32, #tpu.memory_space<smem>>, %arg16: memref<1x8xf32, #tpu.memory_space<vmem>>, %arg17: memref<1x8xf32, #tpu.memory_space<vmem>>, %arg18: memref<8x32xf32, #tpu.memory_space<vmem>>, %arg19: memref<4x16xf32, #tpu.memory_space<vmem>>, %arg20: memref<1x16xf32, #tpu.memory_space<vmem>>, %arg21: memref<16x32xf32, #tpu.memory_space<vmem>>, %arg22: memref<16x16xf32, #tpu.memory_space<vmem>>, %arg23: memref<1x16xf32, #tpu.memory_space<vmem>>, %arg24: memref<16x16xf32, #tpu.memory_space<vmem>>, %arg25: memref<1x16xf32, #tpu.memory_space<vmem>>, %arg26: memref<16x8xf32, #tpu.memory_space<vmem>>, %arg27: memref<8x8xf32, #tpu.memory_space<vmem>>, %arg28: memref<1x8xf32, #tpu.memory_space<vmem>>, %arg29: memref<1xf32, #tpu.memory_space<smem>>, %arg30: memref<2x8x8xf32, #tpu.memory_space<vmem>>) attributes {dimension_semantics = [#tpu.dimension_semantics<parallel>], iteration_bounds = array<i64: 1>, scalar_prefetch = 0 : i64, scratch_operands = 0 : i64, tpu.core_type = #tpu.core_type<tc>, window_params = [{transform_indices = @transform_0, window_bounds = array<i64: 2, 8, 8>}, {pipeline_mode = #tpu.pipeline_mode<synchronous>, transform_indices = @transform_1, window_bounds = array<i64: 1, 8>}, {pipeline_mode = #tpu.pipeline_mode<synchronous>, transform_indices = @transform_2, window_bounds = array<i64: 1, 8>}, {pipeline_mode = #tpu.pipeline_mode<synchronous>, transform_indices = @transform_3, window_bounds = array<i64: 8, 32>}, {pipeline_mode = #tpu.pipeline_mode<synchronous>, transform_indices = @transform_4, window_bounds = array<i64: 4, 16>}, {pipeline_mode = #tpu.pipeline_mode<synchronous>, transform_indices = @transform_5, window_bounds = array<i64: 1, 16>}, {pipeline_mode = #tpu.pipeline_mode<synchronous>, transform_indices = @transform_6, window_bounds = array<i64: 16, 32>}, {pipeline_mode = #tpu.pipeline_mode<synchronous>, transform_indices = @transform_7, window_bounds = array<i64: 16, 16>}, {pipeline_mode = #tpu.pipeline_mode<synchronous>, transform_indices = @transform_8, window_bounds = array<i64: 1, 16>}, {pipeline_mode = #tpu.pipeline_mode<synchronous>, transform_indices = @transform_9, window_bounds = array<i64: 16, 16>}, {pipeline_mode = #tpu.pipeline_mode<synchronous>, transform_indices = @transform_10, window_bounds = array<i64: 1, 16>}, {pipeline_mode = #tpu.pipeline_mode<synchronous>, transform_indices = @transform_11, window_bounds = array<i64: 16, 8>}, {pipeline_mode = #tpu.pipeline_mode<synchronous>, transform_indices = @transform_12, window_bounds = array<i64: 8, 8>}, {pipeline_mode = #tpu.pipeline_mode<synchronous>, transform_indices = @transform_13, window_bounds = array<i64: 1, 8>}, {transform_indices = @transform_14, window_bounds = array<i64: 1>}, {pipeline_mode = #tpu.pipeline_mode<synchronous>, transform_indices = @transform_15, window_bounds = array<i64: 1, 8>}, {pipeline_mode = #tpu.pipeline_mode<synchronous>, transform_indices = @transform_16, window_bounds = array<i64: 1, 8>}, {pipeline_mode = #tpu.pipeline_mode<synchronous>, transform_indices = @transform_17, window_bounds = array<i64: 8, 32>}, {pipeline_mode = #tpu.pipeline_mode<synchronous>, transform_indices = @transform_18, window_bounds = array<i64: 4, 16>}, {pipeline_mode = #tpu.pipeline_mode<synchronous>, transform_indices = @transform_19, window_bounds = array<i64: 1, 16>}, {pipeline_mode = #tpu.pipeline_mode<synchronous>, transform_indices = @transform_20, window_bounds = array<i64: 16, 32>}, {pipeline_mode = #tpu.pipeline_mode<synchronous>, transform_indices = @transform_21, window_bounds = array<i64: 16, 16>}, {pipeline_mode = #tpu.pipeline_mode<synchronous>, transform_indices = @transform_22, window_bounds = array<i64: 1, 16>}, {pipeline_mode = #tpu.pipeline_mode<synchronous>, transform_indices = @transform_23, window_bounds = array<i64: 16, 16>}, {pipeline_mode = #tpu.pipeline_mode<synchronous>, transform_indices = @transform_24, window_bounds = array<i64: 1, 16>}, {pipeline_mode = #tpu.pipeline_mode<synchronous>, transform_indices = @transform_25, window_bounds = array<i64: 16, 8>}, {pipeline_mode = #tpu.pipeline_mode<synchronous>, transform_indices = @transform_26, window_bounds = array<i64: 8, 8>}, {pipeline_mode = #tpu.pipeline_mode<synchronous>, transform_indices = @transform_27, window_bounds = array<i64: 1, 8>}, {transform_indices = @transform_28, window_bounds = array<i64: 1>}, {transform_indices = @transform_29, window_bounds = array<i64: 2, 8, 8>}]} {
    %c0 = arith.constant 0 : index
    %c0_0 = arith.constant 0 : index
    %c0_1 = arith.constant 0 : index
    %0 = vector.load %arg1[%c0, %c0_0, %c0_1] : memref<2x8x8xf32, #tpu.memory_space<vmem>>, vector<2x8x8xf32>
    %1 = vector.shape_cast %0 : vector<2x8x8xf32> to vector<16x8xf32>
    %c0_2 = arith.constant 0 : index
    %c0_3 = arith.constant 0 : index
    %2 = vector.load %arg2[%c0_2, %c0_3] : memref<1x8xf32, #tpu.memory_space<vmem>>, vector<1x8xf32>
    %3 = vector.shape_cast %2 : vector<1x8xf32> to vector<8xf32>
    %c0_4 = arith.constant 0 : index
    %c0_5 = arith.constant 0 : index
    %4 = vector.load %arg3[%c0_4, %c0_5] : memref<1x8xf32, #tpu.memory_space<vmem>>, vector<1x8xf32>
    %5 = vector.shape_cast %4 : vector<1x8xf32> to vector<8xf32>
    %cst = arith.constant dense<0.000000e+00> : vector<16xf32>
    %6 = vector.multi_reduction <add>, %1, %cst [1] : vector<16x8xf32> to vector<16xf32>
    %7 = vector.shape_cast %6 : vector<16xf32> to vector<16x1xf32>
    %cst_6 = arith.constant 8.000000e+00 : f32
    %8 = vector.broadcast %cst_6 : f32 to vector<16x1xf32>
    %9 = arith.divf %7, %8 : vector<16x1xf32>
    %10 = vector.broadcast %9 : vector<16x1xf32> to vector<16x8xf32>
    %11 = arith.subf %1, %10 : vector<16x8xf32>
    %12 = arith.mulf %11, %11 : vector<16x8xf32>
    %cst_7 = arith.constant dense<0.000000e+00> : vector<16xf32>
    %13 = vector.multi_reduction <add>, %12, %cst_7 [1] : vector<16x8xf32> to vector<16xf32>
    %14 = vector.shape_cast %13 : vector<16xf32> to vector<16x1xf32>
    %cst_8 = arith.constant 8.000000e+00 : f32
    %15 = vector.broadcast %cst_8 : f32 to vector<16x1xf32>
    %16 = arith.divf %14, %15 : vector<16x1xf32>
    %17 = vector.broadcast %9 : vector<16x1xf32> to vector<16x8xf32>
    %18 = arith.subf %1, %17 : vector<16x8xf32>
    %cst_9 = arith.constant 9.99999974E-6 : f32
    %19 = vector.broadcast %cst_9 : f32 to vector<16x1xf32>
    %20 = arith.addf %16, %19 : vector<16x1xf32>
    %21 = math.rsqrt %20 : vector<16x1xf32>
    %22 = vector.broadcast %21 : vector<16x1xf32> to vector<16x8xf32>
    %23 = arith.mulf %18, %22 : vector<16x8xf32>
    %24 = vector.shape_cast %3 : vector<8xf32> to vector<1x8xf32>
    %25 = vector.broadcast %24 : vector<1x8xf32> to vector<16x8xf32>
    %26 = arith.mulf %23, %25 : vector<16x8xf32>
    %27 = vector.shape_cast %5 : vector<8xf32> to vector<1x8xf32>
    %28 = vector.broadcast %27 : vector<1x8xf32> to vector<16x8xf32>
    %29 = arith.addf %26, %28 : vector<16x8xf32>
    %c0_10 = arith.constant 0 : index
    %c0_11 = arith.constant 0 : index
    %30 = vector.load %arg4[%c0_10, %c0_11] : memref<8x32xf32, #tpu.memory_space<vmem>>, vector<8x32xf32>
    %cst_12 = arith.constant dense<0.000000e+00> : vector<16x32xf32>
    %31 = tpu.matmul %29, %30, %cst_12 {dimension_numbers = #tpu.dot_dimension_numbers<[1], [0], [0], [1], [0, 0, 1, 1], [], []>} : vector<16x8xf32>, vector<8x32xf32>, vector<16x32xf32> -> vector<16x32xf32>
    %32 = vector.extract_strided_slice %31 {offsets = [0, 0], sizes = [16, 16], strides = [1, 1]} : vector<16x32xf32> to vector<16x16xf32>
    %33 = vector.extract_strided_slice %31 {offsets = [0, 16], sizes = [16, 16], strides = [1, 1]} : vector<16x32xf32> to vector<16x16xf32>
    %34 = vector.shape_cast %32 : vector<16x16xf32> to vector<2x8x16xf32>
    %cst_13 = arith.constant 0.000000e+00 : f32
    %35 = vector.broadcast %cst_13 : f32 to vector<2x3x16xf32>
    %36 = tpu.concatenate %35, %34 in 1 : vector<2x3x16xf32>, vector<2x8x16xf32> -> vector<2x11x16xf32>
    %c0_14 = arith.constant 0 : index
    %c0_15 = arith.constant 0 : index
    %37 = vector.load %arg5[%c0_14, %c0_15] : memref<4x16xf32, #tpu.memory_space<vmem>>, vector<4x16xf32>
    %c0_16 = arith.constant 0 : index
    %c0_17 = arith.constant 0 : index
    %38 = vector.load %arg6[%c0_16, %c0_17] : memref<1x16xf32, #tpu.memory_space<vmem>>, vector<1x16xf32>
    %39 = vector.shape_cast %38 : vector<1x16xf32> to vector<1x1x16xf32>
    %40 = vector.shape_cast %39 : vector<1x1x16xf32> to vector<1x1x16xf32>
    %41 = vector.broadcast %40 : vector<1x1x16xf32> to vector<2x8x16xf32>
    %42 = vector.extract_strided_slice %36 {offsets = [0, 0, 0], sizes = [2, 8, 16], strides = [1, 1, 1]} : vector<2x11x16xf32> to vector<2x8x16xf32>
    %43 = vector.extract_strided_slice %37 {offsets = [0, 0], sizes = [1, 16], strides = [1, 1]} : vector<4x16xf32> to vector<1x16xf32>
    %44 = vector.shape_cast %43 : vector<1x16xf32> to vector<16xf32>
    %45 = vector.shape_cast %44 : vector<16xf32> to vector<1x1x16xf32>
    %46 = vector.broadcast %45 : vector<1x1x16xf32> to vector<2x8x16xf32>
    %47 = arith.mulf %42, %46 : vector<2x8x16xf32>
    %48 = arith.addf %41, %47 : vector<2x8x16xf32>
    %49 = vector.extract_strided_slice %36 {offsets = [0, 1, 0], sizes = [2, 8, 16], strides = [1, 1, 1]} : vector<2x11x16xf32> to vector<2x8x16xf32>
    %50 = vector.extract_strided_slice %37 {offsets = [1, 0], sizes = [1, 16], strides = [1, 1]} : vector<4x16xf32> to vector<1x16xf32>
    %51 = vector.shape_cast %50 : vector<1x16xf32> to vector<16xf32>
    %52 = vector.shape_cast %51 : vector<16xf32> to vector<1x1x16xf32>
    %53 = vector.broadcast %52 : vector<1x1x16xf32> to vector<2x8x16xf32>
    %54 = arith.mulf %49, %53 : vector<2x8x16xf32>
    %55 = arith.addf %48, %54 : vector<2x8x16xf32>
    %56 = vector.extract_strided_slice %36 {offsets = [0, 2, 0], sizes = [2, 8, 16], strides = [1, 1, 1]} : vector<2x11x16xf32> to vector<2x8x16xf32>
    %57 = vector.extract_strided_slice %37 {offsets = [2, 0], sizes = [1, 16], strides = [1, 1]} : vector<4x16xf32> to vector<1x16xf32>
    %58 = vector.shape_cast %57 : vector<1x16xf32> to vector<16xf32>
    %59 = vector.shape_cast %58 : vector<16xf32> to vector<1x1x16xf32>
    %60 = vector.broadcast %59 : vector<1x1x16xf32> to vector<2x8x16xf32>
    %61 = arith.mulf %56, %60 : vector<2x8x16xf32>
    %62 = arith.addf %55, %61 : vector<2x8x16xf32>
    %63 = vector.extract_strided_slice %36 {offsets = [0, 3, 0], sizes = [2, 8, 16], strides = [1, 1, 1]} : vector<2x11x16xf32> to vector<2x8x16xf32>
    %64 = vector.extract_strided_slice %37 {offsets = [3, 0], sizes = [1, 16], strides = [1, 1]} : vector<4x16xf32> to vector<1x16xf32>
    %65 = vector.shape_cast %64 : vector<1x16xf32> to vector<16xf32>
    %66 = vector.shape_cast %65 : vector<16xf32> to vector<1x1x16xf32>
    %67 = vector.broadcast %66 : vector<1x1x16xf32> to vector<2x8x16xf32>
    %68 = arith.mulf %63, %67 : vector<2x8x16xf32>
    %69 = arith.addf %62, %68 : vector<2x8x16xf32>
    %70 = arith.negf %69 : vector<2x8x16xf32>
    %71 = math.exp %70 : vector<2x8x16xf32>
    %cst_18 = arith.constant 1.000000e+00 : f32
    %72 = vector.broadcast %cst_18 : f32 to vector<2x8x16xf32>
    %73 = arith.addf %72, %71 : vector<2x8x16xf32>
    %74 = arith.divf %72, %73 : vector<2x8x16xf32>
    %75 = arith.mulf %69, %74 : vector<2x8x16xf32>
    %76 = vector.shape_cast %75 : vector<2x8x16xf32> to vector<16x16xf32>
    %c0_19 = arith.constant 0 : index
    %c0_20 = arith.constant 0 : index
    %77 = vector.load %arg7[%c0_19, %c0_20] : memref<16x32xf32, #tpu.memory_space<vmem>>, vector<16x32xf32>
    %cst_21 = arith.constant dense<0.000000e+00> : vector<16x32xf32>
    %78 = tpu.matmul %76, %77, %cst_21 {dimension_numbers = #tpu.dot_dimension_numbers<[1], [0], [0], [1], [0, 0, 1, 1], [], []>} : vector<16x16xf32>, vector<16x32xf32>, vector<16x32xf32> -> vector<16x32xf32>
    %79 = vector.extract_strided_slice %78 {offsets = [0, 0], sizes = [16, 16], strides = [1, 1]} : vector<16x32xf32> to vector<16x16xf32>
    %80 = vector.shape_cast %79 : vector<16x16xf32> to vector<2x8x16xf32>
    %81 = vector.extract_strided_slice %78 {offsets = [0, 16], sizes = [16, 16], strides = [1, 1]} : vector<16x32xf32> to vector<16x16xf32>
    %82 = vector.shape_cast %81 : vector<16x16xf32> to vector<2x8x16xf32>
    %c0_22 = arith.constant 0 : index
    %c0_23 = arith.constant 0 : index
    %83 = vector.load %arg8[%c0_22, %c0_23] : memref<16x16xf32, #tpu.memory_space<vmem>>, vector<16x16xf32>
    %cst_24 = arith.constant dense<0.000000e+00> : vector<16x16xf32>
    %84 = tpu.matmul %76, %83, %cst_24 {dimension_numbers = #tpu.dot_dimension_numbers<[1], [0], [0], [1], [0, 0, 1, 1], [], []>} : vector<16x16xf32>, vector<16x16xf32>, vector<16x16xf32> -> vector<16x16xf32>
    %c0_25 = arith.constant 0 : index
    %c0_26 = arith.constant 0 : index
    %85 = vector.load %arg9[%c0_25, %c0_26] : memref<1x16xf32, #tpu.memory_space<vmem>>, vector<1x16xf32>
    %86 = vector.shape_cast %85 : vector<1x16xf32> to vector<16xf32>
    %87 = vector.shape_cast %86 : vector<16xf32> to vector<1x16xf32>
    %88 = vector.broadcast %87 : vector<1x16xf32> to vector<16x16xf32>
    %89 = arith.addf %84, %88 : vector<16x16xf32>
    %cst_27 = arith.constant 0.000000e+00 : f32
    %90 = vector.broadcast %cst_27 : f32 to vector<16x16xf32>
    %91 = arith.maximumf %89, %90 : vector<16x16xf32>
    %92 = vector.broadcast %cst_27 : f32 to vector<16x16xf32>
    %93 = arith.subf %89, %92 : vector<16x16xf32>
    %94 = arith.cmpf one, %93, %93 : vector<16x16xf32>
    %95 = vector.broadcast %cst_27 : f32 to vector<16x16xf32>
    %96 = arith.addf %89, %95 : vector<16x16xf32>
    %97 = math.absf %93 : vector<16x16xf32>
    %cst_28 = arith.constant 0.000000e+00 : f32
    %98 = vector.broadcast %cst_28 : f32 to vector<16x16xf32>
    %99 = arith.subf %98, %97 : vector<16x16xf32>
    %100 = math.exp %99 : vector<16x16xf32>
    %101 = math.log1p %100 : vector<16x16xf32>
    %102 = arith.addf %91, %101 : vector<16x16xf32>
    %103 = arith.select %94, %96, %102 : vector<16x16xi1>, vector<16x16xf32>
    %104 = vector.shape_cast %103 : vector<16x16xf32> to vector<2x8x16xf32>
    %c0_29 = arith.constant 0 : index
    %c0_30 = arith.constant 0 : index
    %105 = vector.load %arg10[%c0_29, %c0_30] : memref<16x16xf32, #tpu.memory_space<vmem>>, vector<16x16xf32>
    %cst_31 = arith.constant 0.000000e+00 : f32
    %106 = vector.broadcast %cst_31 : f32 to vector<2x16x16xf32>
    %107 = vector.extract_strided_slice %104 {offsets = [0, 0, 0], sizes = [2, 1, 16], strides = [1, 1, 1]} : vector<2x8x16xf32> to vector<2x1x16xf32>
    %108 = vector.shape_cast %107 : vector<2x1x16xf32> to vector<2x16xf32>
    %109 = vector.shape_cast %108 : vector<2x16xf32> to vector<2x16x1xf32>
    %110 = vector.shape_cast %105 : vector<16x16xf32> to vector<1x16x16xf32>
    %111 = vector.broadcast %109 : vector<2x16x1xf32> to vector<2x16x16xf32>
    %112 = vector.broadcast %110 : vector<1x16x16xf32> to vector<2x16x16xf32>
    %113 = arith.mulf %111, %112 : vector<2x16x16xf32>
    %114 = math.exp %113 : vector<2x16x16xf32>
    %115 = vector.extract_strided_slice %80 {offsets = [0, 0, 0], sizes = [2, 1, 16], strides = [1, 1, 1]} : vector<2x8x16xf32> to vector<2x1x16xf32>
    %116 = vector.shape_cast %115 : vector<2x1x16xf32> to vector<2x16xf32>
    %117 = vector.shape_cast %116 : vector<2x16xf32> to vector<2x1x16xf32>
    %118 = vector.broadcast %109 : vector<2x16x1xf32> to vector<2x16x16xf32>
    %119 = vector.broadcast %117 : vector<2x1x16xf32> to vector<2x16x16xf32>
    %120 = arith.mulf %118, %119 : vector<2x16x16xf32>
    %121 = vector.extract_strided_slice %75 {offsets = [0, 0, 0], sizes = [2, 1, 16], strides = [1, 1, 1]} : vector<2x8x16xf32> to vector<2x1x16xf32>
    %122 = vector.shape_cast %121 : vector<2x1x16xf32> to vector<2x16xf32>
    %123 = vector.shape_cast %122 : vector<2x16xf32> to vector<2x16x1xf32>
    %124 = vector.broadcast %123 : vector<2x16x1xf32> to vector<2x16x16xf32>
    %125 = arith.mulf %120, %124 : vector<2x16x16xf32>
    %126 = arith.mulf %114, %106 : vector<2x16x16xf32>
    %127 = arith.addf %126, %125 : vector<2x16x16xf32>
    %128 = vector.extract_strided_slice %82 {offsets = [0, 0, 0], sizes = [2, 1, 16], strides = [1, 1, 1]} : vector<2x8x16xf32> to vector<2x1x16xf32>
    %129 = vector.shape_cast %128 : vector<2x1x16xf32> to vector<2x16xf32>
    %130 = vector.shape_cast %129 : vector<2x16xf32> to vector<2x1x16xf32>
    %131 = vector.broadcast %130 : vector<2x1x16xf32> to vector<2x16x16xf32>
    %132 = arith.mulf %127, %131 : vector<2x16x16xf32>
    %cst_32 = arith.constant dense<0.000000e+00> : vector<2x16xf32>
    %133 = vector.multi_reduction <add>, %132, %cst_32 [2] : vector<2x16x16xf32> to vector<2x16xf32>
    %134 = vector.extract_strided_slice %104 {offsets = [0, 1, 0], sizes = [2, 1, 16], strides = [1, 1, 1]} : vector<2x8x16xf32> to vector<2x1x16xf32>
    %135 = vector.shape_cast %134 : vector<2x1x16xf32> to vector<2x16xf32>
    %136 = vector.shape_cast %135 : vector<2x16xf32> to vector<2x16x1xf32>
    %137 = vector.shape_cast %105 : vector<16x16xf32> to vector<1x16x16xf32>
    %138 = vector.broadcast %136 : vector<2x16x1xf32> to vector<2x16x16xf32>
    %139 = vector.broadcast %137 : vector<1x16x16xf32> to vector<2x16x16xf32>
    %140 = arith.mulf %138, %139 : vector<2x16x16xf32>
    %141 = math.exp %140 : vector<2x16x16xf32>
    %142 = vector.extract_strided_slice %80 {offsets = [0, 1, 0], sizes = [2, 1, 16], strides = [1, 1, 1]} : vector<2x8x16xf32> to vector<2x1x16xf32>
    %143 = vector.shape_cast %142 : vector<2x1x16xf32> to vector<2x16xf32>
    %144 = vector.shape_cast %143 : vector<2x16xf32> to vector<2x1x16xf32>
    %145 = vector.broadcast %136 : vector<2x16x1xf32> to vector<2x16x16xf32>
    %146 = vector.broadcast %144 : vector<2x1x16xf32> to vector<2x16x16xf32>
    %147 = arith.mulf %145, %146 : vector<2x16x16xf32>
    %148 = vector.extract_strided_slice %75 {offsets = [0, 1, 0], sizes = [2, 1, 16], strides = [1, 1, 1]} : vector<2x8x16xf32> to vector<2x1x16xf32>
    %149 = vector.shape_cast %148 : vector<2x1x16xf32> to vector<2x16xf32>
    %150 = vector.shape_cast %149 : vector<2x16xf32> to vector<2x16x1xf32>
    %151 = vector.broadcast %150 : vector<2x16x1xf32> to vector<2x16x16xf32>
    %152 = arith.mulf %147, %151 : vector<2x16x16xf32>
    %153 = arith.mulf %141, %127 : vector<2x16x16xf32>
    %154 = arith.addf %153, %152 : vector<2x16x16xf32>
    %155 = vector.extract_strided_slice %82 {offsets = [0, 1, 0], sizes = [2, 1, 16], strides = [1, 1, 1]} : vector<2x8x16xf32> to vector<2x1x16xf32>
    %156 = vector.shape_cast %155 : vector<2x1x16xf32> to vector<2x16xf32>
    %157 = vector.shape_cast %156 : vector<2x16xf32> to vector<2x1x16xf32>
    %158 = vector.broadcast %157 : vector<2x1x16xf32> to vector<2x16x16xf32>
    %159 = arith.mulf %154, %158 : vector<2x16x16xf32>
    %cst_33 = arith.constant dense<0.000000e+00> : vector<2x16xf32>
    %160 = vector.multi_reduction <add>, %159, %cst_33 [2] : vector<2x16x16xf32> to vector<2x16xf32>
    %161 = vector.extract_strided_slice %104 {offsets = [0, 2, 0], sizes = [2, 1, 16], strides = [1, 1, 1]} : vector<2x8x16xf32> to vector<2x1x16xf32>
    %162 = vector.shape_cast %161 : vector<2x1x16xf32> to vector<2x16xf32>
    %163 = vector.shape_cast %162 : vector<2x16xf32> to vector<2x16x1xf32>
    %164 = vector.shape_cast %105 : vector<16x16xf32> to vector<1x16x16xf32>
    %165 = vector.broadcast %163 : vector<2x16x1xf32> to vector<2x16x16xf32>
    %166 = vector.broadcast %164 : vector<1x16x16xf32> to vector<2x16x16xf32>
    %167 = arith.mulf %165, %166 : vector<2x16x16xf32>
    %168 = math.exp %167 : vector<2x16x16xf32>
    %169 = vector.extract_strided_slice %80 {offsets = [0, 2, 0], sizes = [2, 1, 16], strides = [1, 1, 1]} : vector<2x8x16xf32> to vector<2x1x16xf32>
    %170 = vector.shape_cast %169 : vector<2x1x16xf32> to vector<2x16xf32>
    %171 = vector.shape_cast %170 : vector<2x16xf32> to vector<2x1x16xf32>
    %172 = vector.broadcast %163 : vector<2x16x1xf32> to vector<2x16x16xf32>
    %173 = vector.broadcast %171 : vector<2x1x16xf32> to vector<2x16x16xf32>
    %174 = arith.mulf %172, %173 : vector<2x16x16xf32>
    %175 = vector.extract_strided_slice %75 {offsets = [0, 2, 0], sizes = [2, 1, 16], strides = [1, 1, 1]} : vector<2x8x16xf32> to vector<2x1x16xf32>
    %176 = vector.shape_cast %175 : vector<2x1x16xf32> to vector<2x16xf32>
    %177 = vector.shape_cast %176 : vector<2x16xf32> to vector<2x16x1xf32>
    %178 = vector.broadcast %177 : vector<2x16x1xf32> to vector<2x16x16xf32>
    %179 = arith.mulf %174, %178 : vector<2x16x16xf32>
    %180 = arith.mulf %168, %154 : vector<2x16x16xf32>
    %181 = arith.addf %180, %179 : vector<2x16x16xf32>
    %182 = vector.extract_strided_slice %82 {offsets = [0, 2, 0], sizes = [2, 1, 16], strides = [1, 1, 1]} : vector<2x8x16xf32> to vector<2x1x16xf32>
    %183 = vector.shape_cast %182 : vector<2x1x16xf32> to vector<2x16xf32>
    %184 = vector.shape_cast %183 : vector<2x16xf32> to vector<2x1x16xf32>
    %185 = vector.broadcast %184 : vector<2x1x16xf32> to vector<2x16x16xf32>
    %186 = arith.mulf %181, %185 : vector<2x16x16xf32>
    %cst_34 = arith.constant dense<0.000000e+00> : vector<2x16xf32>
    %187 = vector.multi_reduction <add>, %186, %cst_34 [2] : vector<2x16x16xf32> to vector<2x16xf32>
    %188 = vector.extract_strided_slice %104 {offsets = [0, 3, 0], sizes = [2, 1, 16], strides = [1, 1, 1]} : vector<2x8x16xf32> to vector<2x1x16xf32>
    %189 = vector.shape_cast %188 : vector<2x1x16xf32> to vector<2x16xf32>
    %190 = vector.shape_cast %189 : vector<2x16xf32> to vector<2x16x1xf32>
    %191 = vector.shape_cast %105 : vector<16x16xf32> to vector<1x16x16xf32>
    %192 = vector.broadcast %190 : vector<2x16x1xf32> to vector<2x16x16xf32>
    %193 = vector.broadcast %191 : vector<1x16x16xf32> to vector<2x16x16xf32>
    %194 = arith.mulf %192, %193 : vector<2x16x16xf32>
    %195 = math.exp %194 : vector<2x16x16xf32>
    %196 = vector.extract_strided_slice %80 {offsets = [0, 3, 0], sizes = [2, 1, 16], strides = [1, 1, 1]} : vector<2x8x16xf32> to vector<2x1x16xf32>
    %197 = vector.shape_cast %196 : vector<2x1x16xf32> to vector<2x16xf32>
    %198 = vector.shape_cast %197 : vector<2x16xf32> to vector<2x1x16xf32>
    %199 = vector.broadcast %190 : vector<2x16x1xf32> to vector<2x16x16xf32>
    %200 = vector.broadcast %198 : vector<2x1x16xf32> to vector<2x16x16xf32>
    %201 = arith.mulf %199, %200 : vector<2x16x16xf32>
    %202 = vector.extract_strided_slice %75 {offsets = [0, 3, 0], sizes = [2, 1, 16], strides = [1, 1, 1]} : vector<2x8x16xf32> to vector<2x1x16xf32>
    %203 = vector.shape_cast %202 : vector<2x1x16xf32> to vector<2x16xf32>
    %204 = vector.shape_cast %203 : vector<2x16xf32> to vector<2x16x1xf32>
    %205 = vector.broadcast %204 : vector<2x16x1xf32> to vector<2x16x16xf32>
    %206 = arith.mulf %201, %205 : vector<2x16x16xf32>
    %207 = arith.mulf %195, %181 : vector<2x16x16xf32>
    %208 = arith.addf %207, %206 : vector<2x16x16xf32>
    %209 = vector.extract_strided_slice %82 {offsets = [0, 3, 0], sizes = [2, 1, 16], strides = [1, 1, 1]} : vector<2x8x16xf32> to vector<2x1x16xf32>
    %210 = vector.shape_cast %209 : vector<2x1x16xf32> to vector<2x16xf32>
    %211 = vector.shape_cast %210 : vector<2x16xf32> to vector<2x1x16xf32>
    %212 = vector.broadcast %211 : vector<2x1x16xf32> to vector<2x16x16xf32>
    %213 = arith.mulf %208, %212 : vector<2x16x16xf32>
    %cst_35 = arith.constant dense<0.000000e+00> : vector<2x16xf32>
    %214 = vector.multi_reduction <add>, %213, %cst_35 [2] : vector<2x16x16xf32> to vector<2x16xf32>
    %215 = vector.extract_strided_slice %104 {offsets = [0, 4, 0], sizes = [2, 1, 16], strides = [1, 1, 1]} : vector<2x8x16xf32> to vector<2x1x16xf32>
    %216 = vector.shape_cast %215 : vector<2x1x16xf32> to vector<2x16xf32>
    %217 = vector.shape_cast %216 : vector<2x16xf32> to vector<2x16x1xf32>
    %218 = vector.shape_cast %105 : vector<16x16xf32> to vector<1x16x16xf32>
    %219 = vector.broadcast %217 : vector<2x16x1xf32> to vector<2x16x16xf32>
    %220 = vector.broadcast %218 : vector<1x16x16xf32> to vector<2x16x16xf32>
    %221 = arith.mulf %219, %220 : vector<2x16x16xf32>
    %222 = math.exp %221 : vector<2x16x16xf32>
    %223 = vector.extract_strided_slice %80 {offsets = [0, 4, 0], sizes = [2, 1, 16], strides = [1, 1, 1]} : vector<2x8x16xf32> to vector<2x1x16xf32>
    %224 = vector.shape_cast %223 : vector<2x1x16xf32> to vector<2x16xf32>
    %225 = vector.shape_cast %224 : vector<2x16xf32> to vector<2x1x16xf32>
    %226 = vector.broadcast %217 : vector<2x16x1xf32> to vector<2x16x16xf32>
    %227 = vector.broadcast %225 : vector<2x1x16xf32> to vector<2x16x16xf32>
    %228 = arith.mulf %226, %227 : vector<2x16x16xf32>
    %229 = vector.extract_strided_slice %75 {offsets = [0, 4, 0], sizes = [2, 1, 16], strides = [1, 1, 1]} : vector<2x8x16xf32> to vector<2x1x16xf32>
    %230 = vector.shape_cast %229 : vector<2x1x16xf32> to vector<2x16xf32>
    %231 = vector.shape_cast %230 : vector<2x16xf32> to vector<2x16x1xf32>
    %232 = vector.broadcast %231 : vector<2x16x1xf32> to vector<2x16x16xf32>
    %233 = arith.mulf %228, %232 : vector<2x16x16xf32>
    %234 = arith.mulf %222, %208 : vector<2x16x16xf32>
    %235 = arith.addf %234, %233 : vector<2x16x16xf32>
    %236 = vector.extract_strided_slice %82 {offsets = [0, 4, 0], sizes = [2, 1, 16], strides = [1, 1, 1]} : vector<2x8x16xf32> to vector<2x1x16xf32>
    %237 = vector.shape_cast %236 : vector<2x1x16xf32> to vector<2x16xf32>
    %238 = vector.shape_cast %237 : vector<2x16xf32> to vector<2x1x16xf32>
    %239 = vector.broadcast %238 : vector<2x1x16xf32> to vector<2x16x16xf32>
    %240 = arith.mulf %235, %239 : vector<2x16x16xf32>
    %cst_36 = arith.constant dense<0.000000e+00> : vector<2x16xf32>
    %241 = vector.multi_reduction <add>, %240, %cst_36 [2] : vector<2x16x16xf32> to vector<2x16xf32>
    %242 = vector.extract_strided_slice %104 {offsets = [0, 5, 0], sizes = [2, 1, 16], strides = [1, 1, 1]} : vector<2x8x16xf32> to vector<2x1x16xf32>
    %243 = vector.shape_cast %242 : vector<2x1x16xf32> to vector<2x16xf32>
    %244 = vector.shape_cast %243 : vector<2x16xf32> to vector<2x16x1xf32>
    %245 = vector.shape_cast %105 : vector<16x16xf32> to vector<1x16x16xf32>
    %246 = vector.broadcast %244 : vector<2x16x1xf32> to vector<2x16x16xf32>
    %247 = vector.broadcast %245 : vector<1x16x16xf32> to vector<2x16x16xf32>
    %248 = arith.mulf %246, %247 : vector<2x16x16xf32>
    %249 = math.exp %248 : vector<2x16x16xf32>
    %250 = vector.extract_strided_slice %80 {offsets = [0, 5, 0], sizes = [2, 1, 16], strides = [1, 1, 1]} : vector<2x8x16xf32> to vector<2x1x16xf32>
    %251 = vector.shape_cast %250 : vector<2x1x16xf32> to vector<2x16xf32>
    %252 = vector.shape_cast %251 : vector<2x16xf32> to vector<2x1x16xf32>
    %253 = vector.broadcast %244 : vector<2x16x1xf32> to vector<2x16x16xf32>
    %254 = vector.broadcast %252 : vector<2x1x16xf32> to vector<2x16x16xf32>
    %255 = arith.mulf %253, %254 : vector<2x16x16xf32>
    %256 = vector.extract_strided_slice %75 {offsets = [0, 5, 0], sizes = [2, 1, 16], strides = [1, 1, 1]} : vector<2x8x16xf32> to vector<2x1x16xf32>
    %257 = vector.shape_cast %256 : vector<2x1x16xf32> to vector<2x16xf32>
    %258 = vector.shape_cast %257 : vector<2x16xf32> to vector<2x16x1xf32>
    %259 = vector.broadcast %258 : vector<2x16x1xf32> to vector<2x16x16xf32>
    %260 = arith.mulf %255, %259 : vector<2x16x16xf32>
    %261 = arith.mulf %249, %235 : vector<2x16x16xf32>
    %262 = arith.addf %261, %260 : vector<2x16x16xf32>
    %263 = vector.extract_strided_slice %82 {offsets = [0, 5, 0], sizes = [2, 1, 16], strides = [1, 1, 1]} : vector<2x8x16xf32> to vector<2x1x16xf32>
    %264 = vector.shape_cast %263 : vector<2x1x16xf32> to vector<2x16xf32>
    %265 = vector.shape_cast %264 : vector<2x16xf32> to vector<2x1x16xf32>
    %266 = vector.broadcast %265 : vector<2x1x16xf32> to vector<2x16x16xf32>
    %267 = arith.mulf %262, %266 : vector<2x16x16xf32>
    %cst_37 = arith.constant dense<0.000000e+00> : vector<2x16xf32>
    %268 = vector.multi_reduction <add>, %267, %cst_37 [2] : vector<2x16x16xf32> to vector<2x16xf32>
    %269 = vector.extract_strided_slice %104 {offsets = [0, 6, 0], sizes = [2, 1, 16], strides = [1, 1, 1]} : vector<2x8x16xf32> to vector<2x1x16xf32>
    %270 = vector.shape_cast %269 : vector<2x1x16xf32> to vector<2x16xf32>
    %271 = vector.shape_cast %270 : vector<2x16xf32> to vector<2x16x1xf32>
    %272 = vector.shape_cast %105 : vector<16x16xf32> to vector<1x16x16xf32>
    %273 = vector.broadcast %271 : vector<2x16x1xf32> to vector<2x16x16xf32>
    %274 = vector.broadcast %272 : vector<1x16x16xf32> to vector<2x16x16xf32>
    %275 = arith.mulf %273, %274 : vector<2x16x16xf32>
    %276 = math.exp %275 : vector<2x16x16xf32>
    %277 = vector.extract_strided_slice %80 {offsets = [0, 6, 0], sizes = [2, 1, 16], strides = [1, 1, 1]} : vector<2x8x16xf32> to vector<2x1x16xf32>
    %278 = vector.shape_cast %277 : vector<2x1x16xf32> to vector<2x16xf32>
    %279 = vector.shape_cast %278 : vector<2x16xf32> to vector<2x1x16xf32>
    %280 = vector.broadcast %271 : vector<2x16x1xf32> to vector<2x16x16xf32>
    %281 = vector.broadcast %279 : vector<2x1x16xf32> to vector<2x16x16xf32>
    %282 = arith.mulf %280, %281 : vector<2x16x16xf32>
    %283 = vector.extract_strided_slice %75 {offsets = [0, 6, 0], sizes = [2, 1, 16], strides = [1, 1, 1]} : vector<2x8x16xf32> to vector<2x1x16xf32>
    %284 = vector.shape_cast %283 : vector<2x1x16xf32> to vector<2x16xf32>
    %285 = vector.shape_cast %284 : vector<2x16xf32> to vector<2x16x1xf32>
    %286 = vector.broadcast %285 : vector<2x16x1xf32> to vector<2x16x16xf32>
    %287 = arith.mulf %282, %286 : vector<2x16x16xf32>
    %288 = arith.mulf %276, %262 : vector<2x16x16xf32>
    %289 = arith.addf %288, %287 : vector<2x16x16xf32>
    %290 = vector.extract_strided_slice %82 {offsets = [0, 6, 0], sizes = [2, 1, 16], strides = [1, 1, 1]} : vector<2x8x16xf32> to vector<2x1x16xf32>
    %291 = vector.shape_cast %290 : vector<2x1x16xf32> to vector<2x16xf32>
    %292 = vector.shape_cast %291 : vector<2x16xf32> to vector<2x1x16xf32>
    %293 = vector.broadcast %292 : vector<2x1x16xf32> to vector<2x16x16xf32>
    %294 = arith.mulf %289, %293 : vector<2x16x16xf32>
    %cst_38 = arith.constant dense<0.000000e+00> : vector<2x16xf32>
    %295 = vector.multi_reduction <add>, %294, %cst_38 [2] : vector<2x16x16xf32> to vector<2x16xf32>
    %296 = vector.extract_strided_slice %104 {offsets = [0, 7, 0], sizes = [2, 1, 16], strides = [1, 1, 1]} : vector<2x8x16xf32> to vector<2x1x16xf32>
    %297 = vector.shape_cast %296 : vector<2x1x16xf32> to vector<2x16xf32>
    %298 = vector.shape_cast %297 : vector<2x16xf32> to vector<2x16x1xf32>
    %299 = vector.shape_cast %105 : vector<16x16xf32> to vector<1x16x16xf32>
    %300 = vector.broadcast %298 : vector<2x16x1xf32> to vector<2x16x16xf32>
    %301 = vector.broadcast %299 : vector<1x16x16xf32> to vector<2x16x16xf32>
    %302 = arith.mulf %300, %301 : vector<2x16x16xf32>
    %303 = math.exp %302 : vector<2x16x16xf32>
    %304 = vector.extract_strided_slice %80 {offsets = [0, 7, 0], sizes = [2, 1, 16], strides = [1, 1, 1]} : vector<2x8x16xf32> to vector<2x1x16xf32>
    %305 = vector.shape_cast %304 : vector<2x1x16xf32> to vector<2x16xf32>
    %306 = vector.shape_cast %305 : vector<2x16xf32> to vector<2x1x16xf32>
    %307 = vector.broadcast %298 : vector<2x16x1xf32> to vector<2x16x16xf32>
    %308 = vector.broadcast %306 : vector<2x1x16xf32> to vector<2x16x16xf32>
    %309 = arith.mulf %307, %308 : vector<2x16x16xf32>
    %310 = vector.extract_strided_slice %75 {offsets = [0, 7, 0], sizes = [2, 1, 16], strides = [1, 1, 1]} : vector<2x8x16xf32> to vector<2x1x16xf32>
    %311 = vector.shape_cast %310 : vector<2x1x16xf32> to vector<2x16xf32>
    %312 = vector.shape_cast %311 : vector<2x16xf32> to vector<2x16x1xf32>
    %313 = vector.broadcast %312 : vector<2x16x1xf32> to vector<2x16x16xf32>
    %314 = arith.mulf %309, %313 : vector<2x16x16xf32>
    %315 = arith.mulf %303, %289 : vector<2x16x16xf32>
    %316 = arith.addf %315, %314 : vector<2x16x16xf32>
    %317 = vector.extract_strided_slice %82 {offsets = [0, 7, 0], sizes = [2, 1, 16], strides = [1, 1, 1]} : vector<2x8x16xf32> to vector<2x1x16xf32>
    %318 = vector.shape_cast %317 : vector<2x1x16xf32> to vector<2x16xf32>
    %319 = vector.shape_cast %318 : vector<2x16xf32> to vector<2x1x16xf32>
    %320 = vector.broadcast %319 : vector<2x1x16xf32> to vector<2x16x16xf32>
    %321 = arith.mulf %316, %320 : vector<2x16x16xf32>
    %cst_39 = arith.constant dense<0.000000e+00> : vector<2x16xf32>
    %322 = vector.multi_reduction <add>, %321, %cst_39 [2] : vector<2x16x16xf32> to vector<2x16xf32>
    %323 = vector.shape_cast %133 : vector<2x16xf32> to vector<2x1x16xf32>
    %324 = vector.shape_cast %160 : vector<2x16xf32> to vector<2x1x16xf32>
    %325 = vector.shape_cast %187 : vector<2x16xf32> to vector<2x1x16xf32>
    %326 = vector.shape_cast %214 : vector<2x16xf32> to vector<2x1x16xf32>
    %327 = vector.shape_cast %241 : vector<2x16xf32> to vector<2x1x16xf32>
    %328 = vector.shape_cast %268 : vector<2x16xf32> to vector<2x1x16xf32>
    %329 = vector.shape_cast %295 : vector<2x16xf32> to vector<2x1x16xf32>
    %330 = vector.shape_cast %322 : vector<2x16xf32> to vector<2x1x16xf32>
    %331 = tpu.concatenate %323, %324, %325, %326, %327, %328, %329, %330 in 1 : vector<2x1x16xf32>, vector<2x1x16xf32>, vector<2x1x16xf32>, vector<2x1x16xf32>, vector<2x1x16xf32>, vector<2x1x16xf32>, vector<2x1x16xf32>, vector<2x1x16xf32> -> vector<2x8x16xf32>
    %332 = vector.shape_cast %331 : vector<2x8x16xf32> to vector<16x16xf32>
    %c0_40 = arith.constant 0 : index
    %c0_41 = arith.constant 0 : index
    %333 = vector.load %arg11[%c0_40, %c0_41] : memref<1x16xf32, #tpu.memory_space<vmem>>, vector<1x16xf32>
    %334 = vector.shape_cast %333 : vector<1x16xf32> to vector<16xf32>
    %335 = vector.shape_cast %334 : vector<16xf32> to vector<1x16xf32>
    %336 = vector.broadcast %335 : vector<1x16xf32> to vector<16x16xf32>
    %337 = arith.mulf %76, %336 : vector<16x16xf32>
    %338 = arith.addf %332, %337 : vector<16x16xf32>
    %339 = arith.negf %33 : vector<16x16xf32>
    %340 = math.exp %339 : vector<16x16xf32>
    %cst_42 = arith.constant 1.000000e+00 : f32
    %341 = vector.broadcast %cst_42 : f32 to vector<16x16xf32>
    %342 = arith.addf %341, %340 : vector<16x16xf32>
    %343 = arith.divf %341, %342 : vector<16x16xf32>
    %344 = arith.mulf %33, %343 : vector<16x16xf32>
    %345 = arith.mulf %338, %344 : vector<16x16xf32>
    %c0_43 = arith.constant 0 : index
    %c0_44 = arith.constant 0 : index
    %346 = vector.load %arg12[%c0_43, %c0_44] : memref<16x8xf32, #tpu.memory_space<vmem>>, vector<16x8xf32>
    %cst_45 = arith.constant dense<0.000000e+00> : vector<16x8xf32>
    %347 = tpu.matmul %345, %346, %cst_45 {dimension_numbers = #tpu.dot_dimension_numbers<[1], [0], [0], [1], [0, 0, 1, 1], [], []>} : vector<16x16xf32>, vector<16x8xf32>, vector<16x8xf32> -> vector<16x8xf32>
    %c0_46 = arith.constant 0 : index
    %348 = memref.load %arg15[%c0_46] : memref<1xf32, #tpu.memory_space<smem>>
    %349 = vector.broadcast %348 : f32 to vector<16x8xf32>
    %350 = arith.mulf %349, %1 : vector<16x8xf32>
    %351 = arith.addf %347, %350 : vector<16x8xf32>
    %cst_47 = arith.constant dense<0.000000e+00> : vector<16xf32>
    %352 = vector.multi_reduction <add>, %351, %cst_47 [1] : vector<16x8xf32> to vector<16xf32>
    %353 = vector.shape_cast %352 : vector<16xf32> to vector<16x1xf32>
    %cst_48 = arith.constant 8.000000e+00 : f32
    %354 = vector.broadcast %cst_48 : f32 to vector<16x1xf32>
    %355 = arith.divf %353, %354 : vector<16x1xf32>
    %356 = vector.broadcast %355 : vector<16x1xf32> to vector<16x8xf32>
    %357 = arith.subf %351, %356 : vector<16x8xf32>
    %358 = arith.mulf %357, %357 : vector<16x8xf32>
    %cst_49 = arith.constant dense<0.000000e+00> : vector<16xf32>
    %359 = vector.multi_reduction <add>, %358, %cst_49 [1] : vector<16x8xf32> to vector<16xf32>
    %360 = vector.shape_cast %359 : vector<16xf32> to vector<16x1xf32>
    %cst_50 = arith.constant 8.000000e+00 : f32
    %361 = vector.broadcast %cst_50 : f32 to vector<16x1xf32>
    %362 = arith.divf %360, %361 : vector<16x1xf32>
    %363 = vector.broadcast %355 : vector<16x1xf32> to vector<16x8xf32>
    %364 = arith.subf %351, %363 : vector<16x8xf32>
    %cst_51 = arith.constant 9.99999974E-6 : f32
    %365 = vector.broadcast %cst_51 : f32 to vector<16x1xf32>
    %366 = arith.addf %362, %365 : vector<16x1xf32>
    %367 = math.rsqrt %366 : vector<16x1xf32>
    %368 = vector.broadcast %367 : vector<16x1xf32> to vector<16x8xf32>
    %369 = arith.mulf %364, %368 : vector<16x8xf32>
    %370 = vector.shape_cast %3 : vector<8xf32> to vector<1x8xf32>
    %371 = vector.broadcast %370 : vector<1x8xf32> to vector<16x8xf32>
    %372 = arith.mulf %369, %371 : vector<16x8xf32>
    %373 = vector.shape_cast %5 : vector<8xf32> to vector<1x8xf32>
    %374 = vector.broadcast %373 : vector<1x8xf32> to vector<16x8xf32>
    %375 = arith.addf %372, %374 : vector<16x8xf32>
    %c0_52 = arith.constant 0 : index
    %c0_53 = arith.constant 0 : index
    %376 = vector.load %arg13[%c0_52, %c0_53] : memref<8x8xf32, #tpu.memory_space<vmem>>, vector<8x8xf32>
    %cst_54 = arith.constant dense<0.000000e+00> : vector<16x8xf32>
    %377 = tpu.matmul %375, %376, %cst_54 {dimension_numbers = #tpu.dot_dimension_numbers<[1], [0], [0], [1], [0, 0, 1, 1], [], []>} : vector<16x8xf32>, vector<8x8xf32>, vector<16x8xf32> -> vector<16x8xf32>
    %c0_55 = arith.constant 0 : index
    %c0_56 = arith.constant 0 : index
    %378 = vector.load %arg14[%c0_55, %c0_56] : memref<1x8xf32, #tpu.memory_space<vmem>>, vector<1x8xf32>
    %379 = vector.shape_cast %378 : vector<1x8xf32> to vector<8xf32>
    %380 = vector.shape_cast %379 : vector<8xf32> to vector<1x8xf32>
    %381 = vector.broadcast %380 : vector<1x8xf32> to vector<16x8xf32>
    %382 = arith.addf %377, %381 : vector<16x8xf32>
    %c0_57 = arith.constant 0 : index
    %c0_58 = arith.constant 0 : index
    %383 = vector.load %arg16[%c0_57, %c0_58] : memref<1x8xf32, #tpu.memory_space<vmem>>, vector<1x8xf32>
    %384 = vector.shape_cast %383 : vector<1x8xf32> to vector<8xf32>
    %c0_59 = arith.constant 0 : index
    %c0_60 = arith.constant 0 : index
    %385 = vector.load %arg17[%c0_59, %c0_60] : memref<1x8xf32, #tpu.memory_space<vmem>>, vector<1x8xf32>
    %386 = vector.shape_cast %385 : vector<1x8xf32> to vector<8xf32>
    %cst_61 = arith.constant dense<0.000000e+00> : vector<16xf32>
    %387 = vector.multi_reduction <add>, %382, %cst_61 [1] : vector<16x8xf32> to vector<16xf32>
    %388 = vector.shape_cast %387 : vector<16xf32> to vector<16x1xf32>
    %cst_62 = arith.constant 8.000000e+00 : f32
    %389 = vector.broadcast %cst_62 : f32 to vector<16x1xf32>
    %390 = arith.divf %388, %389 : vector<16x1xf32>
    %391 = vector.broadcast %390 : vector<16x1xf32> to vector<16x8xf32>
    %392 = arith.subf %382, %391 : vector<16x8xf32>
    %393 = arith.mulf %392, %392 : vector<16x8xf32>
    %cst_63 = arith.constant dense<0.000000e+00> : vector<16xf32>
    %394 = vector.multi_reduction <add>, %393, %cst_63 [1] : vector<16x8xf32> to vector<16xf32>
    %395 = vector.shape_cast %394 : vector<16xf32> to vector<16x1xf32>
    %cst_64 = arith.constant 8.000000e+00 : f32
    %396 = vector.broadcast %cst_64 : f32 to vector<16x1xf32>
    %397 = arith.divf %395, %396 : vector<16x1xf32>
    %398 = vector.broadcast %390 : vector<16x1xf32> to vector<16x8xf32>
    %399 = arith.subf %382, %398 : vector<16x8xf32>
    %cst_65 = arith.constant 9.99999974E-6 : f32
    %400 = vector.broadcast %cst_65 : f32 to vector<16x1xf32>
    %401 = arith.addf %397, %400 : vector<16x1xf32>
    %402 = math.rsqrt %401 : vector<16x1xf32>
    %403 = vector.broadcast %402 : vector<16x1xf32> to vector<16x8xf32>
    %404 = arith.mulf %399, %403 : vector<16x8xf32>
    %405 = vector.shape_cast %384 : vector<8xf32> to vector<1x8xf32>
    %406 = vector.broadcast %405 : vector<1x8xf32> to vector<16x8xf32>
    %407 = arith.mulf %404, %406 : vector<16x8xf32>
    %408 = vector.shape_cast %386 : vector<8xf32> to vector<1x8xf32>
    %409 = vector.broadcast %408 : vector<1x8xf32> to vector<16x8xf32>
    %410 = arith.addf %407, %409 : vector<16x8xf32>
    %c0_66 = arith.constant 0 : index
    %c0_67 = arith.constant 0 : index
    %411 = vector.load %arg18[%c0_66, %c0_67] : memref<8x32xf32, #tpu.memory_space<vmem>>, vector<8x32xf32>
    %cst_68 = arith.constant dense<0.000000e+00> : vector<16x32xf32>
    %412 = tpu.matmul %410, %411, %cst_68 {dimension_numbers = #tpu.dot_dimension_numbers<[1], [0], [0], [1], [0, 0, 1, 1], [], []>} : vector<16x8xf32>, vector<8x32xf32>, vector<16x32xf32> -> vector<16x32xf32>
    %413 = vector.extract_strided_slice %412 {offsets = [0, 0], sizes = [16, 16], strides = [1, 1]} : vector<16x32xf32> to vector<16x16xf32>
    %414 = vector.extract_strided_slice %412 {offsets = [0, 16], sizes = [16, 16], strides = [1, 1]} : vector<16x32xf32> to vector<16x16xf32>
    %415 = vector.shape_cast %413 : vector<16x16xf32> to vector<2x8x16xf32>
    %cst_69 = arith.constant 0.000000e+00 : f32
    %416 = vector.broadcast %cst_69 : f32 to vector<2x3x16xf32>
    %417 = tpu.concatenate %416, %415 in 1 : vector<2x3x16xf32>, vector<2x8x16xf32> -> vector<2x11x16xf32>
    %c0_70 = arith.constant 0 : index
    %c0_71 = arith.constant 0 : index
    %418 = vector.load %arg19[%c0_70, %c0_71] : memref<4x16xf32, #tpu.memory_space<vmem>>, vector<4x16xf32>
    %c0_72 = arith.constant 0 : index
    %c0_73 = arith.constant 0 : index
    %419 = vector.load %arg20[%c0_72, %c0_73] : memref<1x16xf32, #tpu.memory_space<vmem>>, vector<1x16xf32>
    %420 = vector.shape_cast %419 : vector<1x16xf32> to vector<1x1x16xf32>
    %421 = vector.shape_cast %420 : vector<1x1x16xf32> to vector<1x1x16xf32>
    %422 = vector.broadcast %421 : vector<1x1x16xf32> to vector<2x8x16xf32>
    %423 = vector.extract_strided_slice %417 {offsets = [0, 0, 0], sizes = [2, 8, 16], strides = [1, 1, 1]} : vector<2x11x16xf32> to vector<2x8x16xf32>
    %424 = vector.extract_strided_slice %418 {offsets = [0, 0], sizes = [1, 16], strides = [1, 1]} : vector<4x16xf32> to vector<1x16xf32>
    %425 = vector.shape_cast %424 : vector<1x16xf32> to vector<16xf32>
    %426 = vector.shape_cast %425 : vector<16xf32> to vector<1x1x16xf32>
    %427 = vector.broadcast %426 : vector<1x1x16xf32> to vector<2x8x16xf32>
    %428 = arith.mulf %423, %427 : vector<2x8x16xf32>
    %429 = arith.addf %422, %428 : vector<2x8x16xf32>
    %430 = vector.extract_strided_slice %417 {offsets = [0, 1, 0], sizes = [2, 8, 16], strides = [1, 1, 1]} : vector<2x11x16xf32> to vector<2x8x16xf32>
    %431 = vector.extract_strided_slice %418 {offsets = [1, 0], sizes = [1, 16], strides = [1, 1]} : vector<4x16xf32> to vector<1x16xf32>
    %432 = vector.shape_cast %431 : vector<1x16xf32> to vector<16xf32>
    %433 = vector.shape_cast %432 : vector<16xf32> to vector<1x1x16xf32>
    %434 = vector.broadcast %433 : vector<1x1x16xf32> to vector<2x8x16xf32>
    %435 = arith.mulf %430, %434 : vector<2x8x16xf32>
    %436 = arith.addf %429, %435 : vector<2x8x16xf32>
    %437 = vector.extract_strided_slice %417 {offsets = [0, 2, 0], sizes = [2, 8, 16], strides = [1, 1, 1]} : vector<2x11x16xf32> to vector<2x8x16xf32>
    %438 = vector.extract_strided_slice %418 {offsets = [2, 0], sizes = [1, 16], strides = [1, 1]} : vector<4x16xf32> to vector<1x16xf32>
    %439 = vector.shape_cast %438 : vector<1x16xf32> to vector<16xf32>
    %440 = vector.shape_cast %439 : vector<16xf32> to vector<1x1x16xf32>
    %441 = vector.broadcast %440 : vector<1x1x16xf32> to vector<2x8x16xf32>
    %442 = arith.mulf %437, %441 : vector<2x8x16xf32>
    %443 = arith.addf %436, %442 : vector<2x8x16xf32>
    %444 = vector.extract_strided_slice %417 {offsets = [0, 3, 0], sizes = [2, 8, 16], strides = [1, 1, 1]} : vector<2x11x16xf32> to vector<2x8x16xf32>
    %445 = vector.extract_strided_slice %418 {offsets = [3, 0], sizes = [1, 16], strides = [1, 1]} : vector<4x16xf32> to vector<1x16xf32>
    %446 = vector.shape_cast %445 : vector<1x16xf32> to vector<16xf32>
    %447 = vector.shape_cast %446 : vector<16xf32> to vector<1x1x16xf32>
    %448 = vector.broadcast %447 : vector<1x1x16xf32> to vector<2x8x16xf32>
    %449 = arith.mulf %444, %448 : vector<2x8x16xf32>
    %450 = arith.addf %443, %449 : vector<2x8x16xf32>
    %451 = arith.negf %450 : vector<2x8x16xf32>
    %452 = math.exp %451 : vector<2x8x16xf32>
    %cst_74 = arith.constant 1.000000e+00 : f32
    %453 = vector.broadcast %cst_74 : f32 to vector<2x8x16xf32>
    %454 = arith.addf %453, %452 : vector<2x8x16xf32>
    %455 = arith.divf %453, %454 : vector<2x8x16xf32>
    %456 = arith.mulf %450, %455 : vector<2x8x16xf32>
    %457 = vector.shape_cast %456 : vector<2x8x16xf32> to vector<16x16xf32>
    %c0_75 = arith.constant 0 : index
    %c0_76 = arith.constant 0 : index
    %458 = vector.load %arg21[%c0_75, %c0_76] : memref<16x32xf32, #tpu.memory_space<vmem>>, vector<16x32xf32>
    %cst_77 = arith.constant dense<0.000000e+00> : vector<16x32xf32>
    %459 = tpu.matmul %457, %458, %cst_77 {dimension_numbers = #tpu.dot_dimension_numbers<[1], [0], [0], [1], [0, 0, 1, 1], [], []>} : vector<16x16xf32>, vector<16x32xf32>, vector<16x32xf32> -> vector<16x32xf32>
    %460 = vector.extract_strided_slice %459 {offsets = [0, 0], sizes = [16, 16], strides = [1, 1]} : vector<16x32xf32> to vector<16x16xf32>
    %461 = vector.shape_cast %460 : vector<16x16xf32> to vector<2x8x16xf32>
    %462 = vector.extract_strided_slice %459 {offsets = [0, 16], sizes = [16, 16], strides = [1, 1]} : vector<16x32xf32> to vector<16x16xf32>
    %463 = vector.shape_cast %462 : vector<16x16xf32> to vector<2x8x16xf32>
    %c0_78 = arith.constant 0 : index
    %c0_79 = arith.constant 0 : index
    %464 = vector.load %arg22[%c0_78, %c0_79] : memref<16x16xf32, #tpu.memory_space<vmem>>, vector<16x16xf32>
    %cst_80 = arith.constant dense<0.000000e+00> : vector<16x16xf32>
    %465 = tpu.matmul %457, %464, %cst_80 {dimension_numbers = #tpu.dot_dimension_numbers<[1], [0], [0], [1], [0, 0, 1, 1], [], []>} : vector<16x16xf32>, vector<16x16xf32>, vector<16x16xf32> -> vector<16x16xf32>
    %c0_81 = arith.constant 0 : index
    %c0_82 = arith.constant 0 : index
    %466 = vector.load %arg23[%c0_81, %c0_82] : memref<1x16xf32, #tpu.memory_space<vmem>>, vector<1x16xf32>
    %467 = vector.shape_cast %466 : vector<1x16xf32> to vector<16xf32>
    %468 = vector.shape_cast %467 : vector<16xf32> to vector<1x16xf32>
    %469 = vector.broadcast %468 : vector<1x16xf32> to vector<16x16xf32>
    %470 = arith.addf %465, %469 : vector<16x16xf32>
    %cst_83 = arith.constant 0.000000e+00 : f32
    %471 = vector.broadcast %cst_83 : f32 to vector<16x16xf32>
    %472 = arith.maximumf %470, %471 : vector<16x16xf32>
    %473 = vector.broadcast %cst_83 : f32 to vector<16x16xf32>
    %474 = arith.subf %470, %473 : vector<16x16xf32>
    %475 = arith.cmpf one, %474, %474 : vector<16x16xf32>
    %476 = vector.broadcast %cst_83 : f32 to vector<16x16xf32>
    %477 = arith.addf %470, %476 : vector<16x16xf32>
    %478 = math.absf %474 : vector<16x16xf32>
    %cst_84 = arith.constant 0.000000e+00 : f32
    %479 = vector.broadcast %cst_84 : f32 to vector<16x16xf32>
    %480 = arith.subf %479, %478 : vector<16x16xf32>
    %481 = math.exp %480 : vector<16x16xf32>
    %482 = math.log1p %481 : vector<16x16xf32>
    %483 = arith.addf %472, %482 : vector<16x16xf32>
    %484 = arith.select %475, %477, %483 : vector<16x16xi1>, vector<16x16xf32>
    %485 = vector.shape_cast %484 : vector<16x16xf32> to vector<2x8x16xf32>
    %c0_85 = arith.constant 0 : index
    %c0_86 = arith.constant 0 : index
    %486 = vector.load %arg24[%c0_85, %c0_86] : memref<16x16xf32, #tpu.memory_space<vmem>>, vector<16x16xf32>
    %cst_87 = arith.constant 0.000000e+00 : f32
    %487 = vector.broadcast %cst_87 : f32 to vector<2x16x16xf32>
    %488 = vector.extract_strided_slice %485 {offsets = [0, 0, 0], sizes = [2, 1, 16], strides = [1, 1, 1]} : vector<2x8x16xf32> to vector<2x1x16xf32>
    %489 = vector.shape_cast %488 : vector<2x1x16xf32> to vector<2x16xf32>
    %490 = vector.shape_cast %489 : vector<2x16xf32> to vector<2x16x1xf32>
    %491 = vector.shape_cast %486 : vector<16x16xf32> to vector<1x16x16xf32>
    %492 = vector.broadcast %490 : vector<2x16x1xf32> to vector<2x16x16xf32>
    %493 = vector.broadcast %491 : vector<1x16x16xf32> to vector<2x16x16xf32>
    %494 = arith.mulf %492, %493 : vector<2x16x16xf32>
    %495 = math.exp %494 : vector<2x16x16xf32>
    %496 = vector.extract_strided_slice %461 {offsets = [0, 0, 0], sizes = [2, 1, 16], strides = [1, 1, 1]} : vector<2x8x16xf32> to vector<2x1x16xf32>
    %497 = vector.shape_cast %496 : vector<2x1x16xf32> to vector<2x16xf32>
    %498 = vector.shape_cast %497 : vector<2x16xf32> to vector<2x1x16xf32>
    %499 = vector.broadcast %490 : vector<2x16x1xf32> to vector<2x16x16xf32>
    %500 = vector.broadcast %498 : vector<2x1x16xf32> to vector<2x16x16xf32>
    %501 = arith.mulf %499, %500 : vector<2x16x16xf32>
    %502 = vector.extract_strided_slice %456 {offsets = [0, 0, 0], sizes = [2, 1, 16], strides = [1, 1, 1]} : vector<2x8x16xf32> to vector<2x1x16xf32>
    %503 = vector.shape_cast %502 : vector<2x1x16xf32> to vector<2x16xf32>
    %504 = vector.shape_cast %503 : vector<2x16xf32> to vector<2x16x1xf32>
    %505 = vector.broadcast %504 : vector<2x16x1xf32> to vector<2x16x16xf32>
    %506 = arith.mulf %501, %505 : vector<2x16x16xf32>
    %507 = arith.mulf %495, %487 : vector<2x16x16xf32>
    %508 = arith.addf %507, %506 : vector<2x16x16xf32>
    %509 = vector.extract_strided_slice %463 {offsets = [0, 0, 0], sizes = [2, 1, 16], strides = [1, 1, 1]} : vector<2x8x16xf32> to vector<2x1x16xf32>
    %510 = vector.shape_cast %509 : vector<2x1x16xf32> to vector<2x16xf32>
    %511 = vector.shape_cast %510 : vector<2x16xf32> to vector<2x1x16xf32>
    %512 = vector.broadcast %511 : vector<2x1x16xf32> to vector<2x16x16xf32>
    %513 = arith.mulf %508, %512 : vector<2x16x16xf32>
    %cst_88 = arith.constant dense<0.000000e+00> : vector<2x16xf32>
    %514 = vector.multi_reduction <add>, %513, %cst_88 [2] : vector<2x16x16xf32> to vector<2x16xf32>
    %515 = vector.extract_strided_slice %485 {offsets = [0, 1, 0], sizes = [2, 1, 16], strides = [1, 1, 1]} : vector<2x8x16xf32> to vector<2x1x16xf32>
    %516 = vector.shape_cast %515 : vector<2x1x16xf32> to vector<2x16xf32>
    %517 = vector.shape_cast %516 : vector<2x16xf32> to vector<2x16x1xf32>
    %518 = vector.shape_cast %486 : vector<16x16xf32> to vector<1x16x16xf32>
    %519 = vector.broadcast %517 : vector<2x16x1xf32> to vector<2x16x16xf32>
    %520 = vector.broadcast %518 : vector<1x16x16xf32> to vector<2x16x16xf32>
    %521 = arith.mulf %519, %520 : vector<2x16x16xf32>
    %522 = math.exp %521 : vector<2x16x16xf32>
    %523 = vector.extract_strided_slice %461 {offsets = [0, 1, 0], sizes = [2, 1, 16], strides = [1, 1, 1]} : vector<2x8x16xf32> to vector<2x1x16xf32>
    %524 = vector.shape_cast %523 : vector<2x1x16xf32> to vector<2x16xf32>
    %525 = vector.shape_cast %524 : vector<2x16xf32> to vector<2x1x16xf32>
    %526 = vector.broadcast %517 : vector<2x16x1xf32> to vector<2x16x16xf32>
    %527 = vector.broadcast %525 : vector<2x1x16xf32> to vector<2x16x16xf32>
    %528 = arith.mulf %526, %527 : vector<2x16x16xf32>
    %529 = vector.extract_strided_slice %456 {offsets = [0, 1, 0], sizes = [2, 1, 16], strides = [1, 1, 1]} : vector<2x8x16xf32> to vector<2x1x16xf32>
    %530 = vector.shape_cast %529 : vector<2x1x16xf32> to vector<2x16xf32>
    %531 = vector.shape_cast %530 : vector<2x16xf32> to vector<2x16x1xf32>
    %532 = vector.broadcast %531 : vector<2x16x1xf32> to vector<2x16x16xf32>
    %533 = arith.mulf %528, %532 : vector<2x16x16xf32>
    %534 = arith.mulf %522, %508 : vector<2x16x16xf32>
    %535 = arith.addf %534, %533 : vector<2x16x16xf32>
    %536 = vector.extract_strided_slice %463 {offsets = [0, 1, 0], sizes = [2, 1, 16], strides = [1, 1, 1]} : vector<2x8x16xf32> to vector<2x1x16xf32>
    %537 = vector.shape_cast %536 : vector<2x1x16xf32> to vector<2x16xf32>
    %538 = vector.shape_cast %537 : vector<2x16xf32> to vector<2x1x16xf32>
    %539 = vector.broadcast %538 : vector<2x1x16xf32> to vector<2x16x16xf32>
    %540 = arith.mulf %535, %539 : vector<2x16x16xf32>
    %cst_89 = arith.constant dense<0.000000e+00> : vector<2x16xf32>
    %541 = vector.multi_reduction <add>, %540, %cst_89 [2] : vector<2x16x16xf32> to vector<2x16xf32>
    %542 = vector.extract_strided_slice %485 {offsets = [0, 2, 0], sizes = [2, 1, 16], strides = [1, 1, 1]} : vector<2x8x16xf32> to vector<2x1x16xf32>
    %543 = vector.shape_cast %542 : vector<2x1x16xf32> to vector<2x16xf32>
    %544 = vector.shape_cast %543 : vector<2x16xf32> to vector<2x16x1xf32>
    %545 = vector.shape_cast %486 : vector<16x16xf32> to vector<1x16x16xf32>
    %546 = vector.broadcast %544 : vector<2x16x1xf32> to vector<2x16x16xf32>
    %547 = vector.broadcast %545 : vector<1x16x16xf32> to vector<2x16x16xf32>
    %548 = arith.mulf %546, %547 : vector<2x16x16xf32>
    %549 = math.exp %548 : vector<2x16x16xf32>
    %550 = vector.extract_strided_slice %461 {offsets = [0, 2, 0], sizes = [2, 1, 16], strides = [1, 1, 1]} : vector<2x8x16xf32> to vector<2x1x16xf32>
    %551 = vector.shape_cast %550 : vector<2x1x16xf32> to vector<2x16xf32>
    %552 = vector.shape_cast %551 : vector<2x16xf32> to vector<2x1x16xf32>
    %553 = vector.broadcast %544 : vector<2x16x1xf32> to vector<2x16x16xf32>
    %554 = vector.broadcast %552 : vector<2x1x16xf32> to vector<2x16x16xf32>
    %555 = arith.mulf %553, %554 : vector<2x16x16xf32>
    %556 = vector.extract_strided_slice %456 {offsets = [0, 2, 0], sizes = [2, 1, 16], strides = [1, 1, 1]} : vector<2x8x16xf32> to vector<2x1x16xf32>
    %557 = vector.shape_cast %556 : vector<2x1x16xf32> to vector<2x16xf32>
    %558 = vector.shape_cast %557 : vector<2x16xf32> to vector<2x16x1xf32>
    %559 = vector.broadcast %558 : vector<2x16x1xf32> to vector<2x16x16xf32>
    %560 = arith.mulf %555, %559 : vector<2x16x16xf32>
    %561 = arith.mulf %549, %535 : vector<2x16x16xf32>
    %562 = arith.addf %561, %560 : vector<2x16x16xf32>
    %563 = vector.extract_strided_slice %463 {offsets = [0, 2, 0], sizes = [2, 1, 16], strides = [1, 1, 1]} : vector<2x8x16xf32> to vector<2x1x16xf32>
    %564 = vector.shape_cast %563 : vector<2x1x16xf32> to vector<2x16xf32>
    %565 = vector.shape_cast %564 : vector<2x16xf32> to vector<2x1x16xf32>
    %566 = vector.broadcast %565 : vector<2x1x16xf32> to vector<2x16x16xf32>
    %567 = arith.mulf %562, %566 : vector<2x16x16xf32>
    %cst_90 = arith.constant dense<0.000000e+00> : vector<2x16xf32>
    %568 = vector.multi_reduction <add>, %567, %cst_90 [2] : vector<2x16x16xf32> to vector<2x16xf32>
    %569 = vector.extract_strided_slice %485 {offsets = [0, 3, 0], sizes = [2, 1, 16], strides = [1, 1, 1]} : vector<2x8x16xf32> to vector<2x1x16xf32>
    %570 = vector.shape_cast %569 : vector<2x1x16xf32> to vector<2x16xf32>
    %571 = vector.shape_cast %570 : vector<2x16xf32> to vector<2x16x1xf32>
    %572 = vector.shape_cast %486 : vector<16x16xf32> to vector<1x16x16xf32>
    %573 = vector.broadcast %571 : vector<2x16x1xf32> to vector<2x16x16xf32>
    %574 = vector.broadcast %572 : vector<1x16x16xf32> to vector<2x16x16xf32>
    %575 = arith.mulf %573, %574 : vector<2x16x16xf32>
    %576 = math.exp %575 : vector<2x16x16xf32>
    %577 = vector.extract_strided_slice %461 {offsets = [0, 3, 0], sizes = [2, 1, 16], strides = [1, 1, 1]} : vector<2x8x16xf32> to vector<2x1x16xf32>
    %578 = vector.shape_cast %577 : vector<2x1x16xf32> to vector<2x16xf32>
    %579 = vector.shape_cast %578 : vector<2x16xf32> to vector<2x1x16xf32>
    %580 = vector.broadcast %571 : vector<2x16x1xf32> to vector<2x16x16xf32>
    %581 = vector.broadcast %579 : vector<2x1x16xf32> to vector<2x16x16xf32>
    %582 = arith.mulf %580, %581 : vector<2x16x16xf32>
    %583 = vector.extract_strided_slice %456 {offsets = [0, 3, 0], sizes = [2, 1, 16], strides = [1, 1, 1]} : vector<2x8x16xf32> to vector<2x1x16xf32>
    %584 = vector.shape_cast %583 : vector<2x1x16xf32> to vector<2x16xf32>
    %585 = vector.shape_cast %584 : vector<2x16xf32> to vector<2x16x1xf32>
    %586 = vector.broadcast %585 : vector<2x16x1xf32> to vector<2x16x16xf32>
    %587 = arith.mulf %582, %586 : vector<2x16x16xf32>
    %588 = arith.mulf %576, %562 : vector<2x16x16xf32>
    %589 = arith.addf %588, %587 : vector<2x16x16xf32>
    %590 = vector.extract_strided_slice %463 {offsets = [0, 3, 0], sizes = [2, 1, 16], strides = [1, 1, 1]} : vector<2x8x16xf32> to vector<2x1x16xf32>
    %591 = vector.shape_cast %590 : vector<2x1x16xf32> to vector<2x16xf32>
    %592 = vector.shape_cast %591 : vector<2x16xf32> to vector<2x1x16xf32>
    %593 = vector.broadcast %592 : vector<2x1x16xf32> to vector<2x16x16xf32>
    %594 = arith.mulf %589, %593 : vector<2x16x16xf32>
    %cst_91 = arith.constant dense<0.000000e+00> : vector<2x16xf32>
    %595 = vector.multi_reduction <add>, %594, %cst_91 [2] : vector<2x16x16xf32> to vector<2x16xf32>
    %596 = vector.extract_strided_slice %485 {offsets = [0, 4, 0], sizes = [2, 1, 16], strides = [1, 1, 1]} : vector<2x8x16xf32> to vector<2x1x16xf32>
    %597 = vector.shape_cast %596 : vector<2x1x16xf32> to vector<2x16xf32>
    %598 = vector.shape_cast %597 : vector<2x16xf32> to vector<2x16x1xf32>
    %599 = vector.shape_cast %486 : vector<16x16xf32> to vector<1x16x16xf32>
    %600 = vector.broadcast %598 : vector<2x16x1xf32> to vector<2x16x16xf32>
    %601 = vector.broadcast %599 : vector<1x16x16xf32> to vector<2x16x16xf32>
    %602 = arith.mulf %600, %601 : vector<2x16x16xf32>
    %603 = math.exp %602 : vector<2x16x16xf32>
    %604 = vector.extract_strided_slice %461 {offsets = [0, 4, 0], sizes = [2, 1, 16], strides = [1, 1, 1]} : vector<2x8x16xf32> to vector<2x1x16xf32>
    %605 = vector.shape_cast %604 : vector<2x1x16xf32> to vector<2x16xf32>
    %606 = vector.shape_cast %605 : vector<2x16xf32> to vector<2x1x16xf32>
    %607 = vector.broadcast %598 : vector<2x16x1xf32> to vector<2x16x16xf32>
    %608 = vector.broadcast %606 : vector<2x1x16xf32> to vector<2x16x16xf32>
    %609 = arith.mulf %607, %608 : vector<2x16x16xf32>
    %610 = vector.extract_strided_slice %456 {offsets = [0, 4, 0], sizes = [2, 1, 16], strides = [1, 1, 1]} : vector<2x8x16xf32> to vector<2x1x16xf32>
    %611 = vector.shape_cast %610 : vector<2x1x16xf32> to vector<2x16xf32>
    %612 = vector.shape_cast %611 : vector<2x16xf32> to vector<2x16x1xf32>
    %613 = vector.broadcast %612 : vector<2x16x1xf32> to vector<2x16x16xf32>
    %614 = arith.mulf %609, %613 : vector<2x16x16xf32>
    %615 = arith.mulf %603, %589 : vector<2x16x16xf32>
    %616 = arith.addf %615, %614 : vector<2x16x16xf32>
    %617 = vector.extract_strided_slice %463 {offsets = [0, 4, 0], sizes = [2, 1, 16], strides = [1, 1, 1]} : vector<2x8x16xf32> to vector<2x1x16xf32>
    %618 = vector.shape_cast %617 : vector<2x1x16xf32> to vector<2x16xf32>
    %619 = vector.shape_cast %618 : vector<2x16xf32> to vector<2x1x16xf32>
    %620 = vector.broadcast %619 : vector<2x1x16xf32> to vector<2x16x16xf32>
    %621 = arith.mulf %616, %620 : vector<2x16x16xf32>
    %cst_92 = arith.constant dense<0.000000e+00> : vector<2x16xf32>
    %622 = vector.multi_reduction <add>, %621, %cst_92 [2] : vector<2x16x16xf32> to vector<2x16xf32>
    %623 = vector.extract_strided_slice %485 {offsets = [0, 5, 0], sizes = [2, 1, 16], strides = [1, 1, 1]} : vector<2x8x16xf32> to vector<2x1x16xf32>
    %624 = vector.shape_cast %623 : vector<2x1x16xf32> to vector<2x16xf32>
    %625 = vector.shape_cast %624 : vector<2x16xf32> to vector<2x16x1xf32>
    %626 = vector.shape_cast %486 : vector<16x16xf32> to vector<1x16x16xf32>
    %627 = vector.broadcast %625 : vector<2x16x1xf32> to vector<2x16x16xf32>
    %628 = vector.broadcast %626 : vector<1x16x16xf32> to vector<2x16x16xf32>
    %629 = arith.mulf %627, %628 : vector<2x16x16xf32>
    %630 = math.exp %629 : vector<2x16x16xf32>
    %631 = vector.extract_strided_slice %461 {offsets = [0, 5, 0], sizes = [2, 1, 16], strides = [1, 1, 1]} : vector<2x8x16xf32> to vector<2x1x16xf32>
    %632 = vector.shape_cast %631 : vector<2x1x16xf32> to vector<2x16xf32>
    %633 = vector.shape_cast %632 : vector<2x16xf32> to vector<2x1x16xf32>
    %634 = vector.broadcast %625 : vector<2x16x1xf32> to vector<2x16x16xf32>
    %635 = vector.broadcast %633 : vector<2x1x16xf32> to vector<2x16x16xf32>
    %636 = arith.mulf %634, %635 : vector<2x16x16xf32>
    %637 = vector.extract_strided_slice %456 {offsets = [0, 5, 0], sizes = [2, 1, 16], strides = [1, 1, 1]} : vector<2x8x16xf32> to vector<2x1x16xf32>
    %638 = vector.shape_cast %637 : vector<2x1x16xf32> to vector<2x16xf32>
    %639 = vector.shape_cast %638 : vector<2x16xf32> to vector<2x16x1xf32>
    %640 = vector.broadcast %639 : vector<2x16x1xf32> to vector<2x16x16xf32>
    %641 = arith.mulf %636, %640 : vector<2x16x16xf32>
    %642 = arith.mulf %630, %616 : vector<2x16x16xf32>
    %643 = arith.addf %642, %641 : vector<2x16x16xf32>
    %644 = vector.extract_strided_slice %463 {offsets = [0, 5, 0], sizes = [2, 1, 16], strides = [1, 1, 1]} : vector<2x8x16xf32> to vector<2x1x16xf32>
    %645 = vector.shape_cast %644 : vector<2x1x16xf32> to vector<2x16xf32>
    %646 = vector.shape_cast %645 : vector<2x16xf32> to vector<2x1x16xf32>
    %647 = vector.broadcast %646 : vector<2x1x16xf32> to vector<2x16x16xf32>
    %648 = arith.mulf %643, %647 : vector<2x16x16xf32>
    %cst_93 = arith.constant dense<0.000000e+00> : vector<2x16xf32>
    %649 = vector.multi_reduction <add>, %648, %cst_93 [2] : vector<2x16x16xf32> to vector<2x16xf32>
    %650 = vector.extract_strided_slice %485 {offsets = [0, 6, 0], sizes = [2, 1, 16], strides = [1, 1, 1]} : vector<2x8x16xf32> to vector<2x1x16xf32>
    %651 = vector.shape_cast %650 : vector<2x1x16xf32> to vector<2x16xf32>
    %652 = vector.shape_cast %651 : vector<2x16xf32> to vector<2x16x1xf32>
    %653 = vector.shape_cast %486 : vector<16x16xf32> to vector<1x16x16xf32>
    %654 = vector.broadcast %652 : vector<2x16x1xf32> to vector<2x16x16xf32>
    %655 = vector.broadcast %653 : vector<1x16x16xf32> to vector<2x16x16xf32>
    %656 = arith.mulf %654, %655 : vector<2x16x16xf32>
    %657 = math.exp %656 : vector<2x16x16xf32>
    %658 = vector.extract_strided_slice %461 {offsets = [0, 6, 0], sizes = [2, 1, 16], strides = [1, 1, 1]} : vector<2x8x16xf32> to vector<2x1x16xf32>
    %659 = vector.shape_cast %658 : vector<2x1x16xf32> to vector<2x16xf32>
    %660 = vector.shape_cast %659 : vector<2x16xf32> to vector<2x1x16xf32>
    %661 = vector.broadcast %652 : vector<2x16x1xf32> to vector<2x16x16xf32>
    %662 = vector.broadcast %660 : vector<2x1x16xf32> to vector<2x16x16xf32>
    %663 = arith.mulf %661, %662 : vector<2x16x16xf32>
    %664 = vector.extract_strided_slice %456 {offsets = [0, 6, 0], sizes = [2, 1, 16], strides = [1, 1, 1]} : vector<2x8x16xf32> to vector<2x1x16xf32>
    %665 = vector.shape_cast %664 : vector<2x1x16xf32> to vector<2x16xf32>
    %666 = vector.shape_cast %665 : vector<2x16xf32> to vector<2x16x1xf32>
    %667 = vector.broadcast %666 : vector<2x16x1xf32> to vector<2x16x16xf32>
    %668 = arith.mulf %663, %667 : vector<2x16x16xf32>
    %669 = arith.mulf %657, %643 : vector<2x16x16xf32>
    %670 = arith.addf %669, %668 : vector<2x16x16xf32>
    %671 = vector.extract_strided_slice %463 {offsets = [0, 6, 0], sizes = [2, 1, 16], strides = [1, 1, 1]} : vector<2x8x16xf32> to vector<2x1x16xf32>
    %672 = vector.shape_cast %671 : vector<2x1x16xf32> to vector<2x16xf32>
    %673 = vector.shape_cast %672 : vector<2x16xf32> to vector<2x1x16xf32>
    %674 = vector.broadcast %673 : vector<2x1x16xf32> to vector<2x16x16xf32>
    %675 = arith.mulf %670, %674 : vector<2x16x16xf32>
    %cst_94 = arith.constant dense<0.000000e+00> : vector<2x16xf32>
    %676 = vector.multi_reduction <add>, %675, %cst_94 [2] : vector<2x16x16xf32> to vector<2x16xf32>
    %677 = vector.extract_strided_slice %485 {offsets = [0, 7, 0], sizes = [2, 1, 16], strides = [1, 1, 1]} : vector<2x8x16xf32> to vector<2x1x16xf32>
    %678 = vector.shape_cast %677 : vector<2x1x16xf32> to vector<2x16xf32>
    %679 = vector.shape_cast %678 : vector<2x16xf32> to vector<2x16x1xf32>
    %680 = vector.shape_cast %486 : vector<16x16xf32> to vector<1x16x16xf32>
    %681 = vector.broadcast %679 : vector<2x16x1xf32> to vector<2x16x16xf32>
    %682 = vector.broadcast %680 : vector<1x16x16xf32> to vector<2x16x16xf32>
    %683 = arith.mulf %681, %682 : vector<2x16x16xf32>
    %684 = math.exp %683 : vector<2x16x16xf32>
    %685 = vector.extract_strided_slice %461 {offsets = [0, 7, 0], sizes = [2, 1, 16], strides = [1, 1, 1]} : vector<2x8x16xf32> to vector<2x1x16xf32>
    %686 = vector.shape_cast %685 : vector<2x1x16xf32> to vector<2x16xf32>
    %687 = vector.shape_cast %686 : vector<2x16xf32> to vector<2x1x16xf32>
    %688 = vector.broadcast %679 : vector<2x16x1xf32> to vector<2x16x16xf32>
    %689 = vector.broadcast %687 : vector<2x1x16xf32> to vector<2x16x16xf32>
    %690 = arith.mulf %688, %689 : vector<2x16x16xf32>
    %691 = vector.extract_strided_slice %456 {offsets = [0, 7, 0], sizes = [2, 1, 16], strides = [1, 1, 1]} : vector<2x8x16xf32> to vector<2x1x16xf32>
    %692 = vector.shape_cast %691 : vector<2x1x16xf32> to vector<2x16xf32>
    %693 = vector.shape_cast %692 : vector<2x16xf32> to vector<2x16x1xf32>
    %694 = vector.broadcast %693 : vector<2x16x1xf32> to vector<2x16x16xf32>
    %695 = arith.mulf %690, %694 : vector<2x16x16xf32>
    %696 = arith.mulf %684, %670 : vector<2x16x16xf32>
    %697 = arith.addf %696, %695 : vector<2x16x16xf32>
    %698 = vector.extract_strided_slice %463 {offsets = [0, 7, 0], sizes = [2, 1, 16], strides = [1, 1, 1]} : vector<2x8x16xf32> to vector<2x1x16xf32>
    %699 = vector.shape_cast %698 : vector<2x1x16xf32> to vector<2x16xf32>
    %700 = vector.shape_cast %699 : vector<2x16xf32> to vector<2x1x16xf32>
    %701 = vector.broadcast %700 : vector<2x1x16xf32> to vector<2x16x16xf32>
    %702 = arith.mulf %697, %701 : vector<2x16x16xf32>
    %cst_95 = arith.constant dense<0.000000e+00> : vector<2x16xf32>
    %703 = vector.multi_reduction <add>, %702, %cst_95 [2] : vector<2x16x16xf32> to vector<2x16xf32>
    %704 = vector.shape_cast %514 : vector<2x16xf32> to vector<2x1x16xf32>
    %705 = vector.shape_cast %541 : vector<2x16xf32> to vector<2x1x16xf32>
    %706 = vector.shape_cast %568 : vector<2x16xf32> to vector<2x1x16xf32>
    %707 = vector.shape_cast %595 : vector<2x16xf32> to vector<2x1x16xf32>
    %708 = vector.shape_cast %622 : vector<2x16xf32> to vector<2x1x16xf32>
    %709 = vector.shape_cast %649 : vector<2x16xf32> to vector<2x1x16xf32>
    %710 = vector.shape_cast %676 : vector<2x16xf32> to vector<2x1x16xf32>
    %711 = vector.shape_cast %703 : vector<2x16xf32> to vector<2x1x16xf32>
    %712 = tpu.concatenate %704, %705, %706, %707, %708, %709, %710, %711 in 1 : vector<2x1x16xf32>, vector<2x1x16xf32>, vector<2x1x16xf32>, vector<2x1x16xf32>, vector<2x1x16xf32>, vector<2x1x16xf32>, vector<2x1x16xf32>, vector<2x1x16xf32> -> vector<2x8x16xf32>
    %713 = vector.shape_cast %712 : vector<2x8x16xf32> to vector<16x16xf32>
    %c0_96 = arith.constant 0 : index
    %c0_97 = arith.constant 0 : index
    %714 = vector.load %arg25[%c0_96, %c0_97] : memref<1x16xf32, #tpu.memory_space<vmem>>, vector<1x16xf32>
    %715 = vector.shape_cast %714 : vector<1x16xf32> to vector<16xf32>
    %716 = vector.shape_cast %715 : vector<16xf32> to vector<1x16xf32>
    %717 = vector.broadcast %716 : vector<1x16xf32> to vector<16x16xf32>
    %718 = arith.mulf %457, %717 : vector<16x16xf32>
    %719 = arith.addf %713, %718 : vector<16x16xf32>
    %720 = arith.negf %414 : vector<16x16xf32>
    %721 = math.exp %720 : vector<16x16xf32>
    %cst_98 = arith.constant 1.000000e+00 : f32
    %722 = vector.broadcast %cst_98 : f32 to vector<16x16xf32>
    %723 = arith.addf %722, %721 : vector<16x16xf32>
    %724 = arith.divf %722, %723 : vector<16x16xf32>
    %725 = arith.mulf %414, %724 : vector<16x16xf32>
    %726 = arith.mulf %719, %725 : vector<16x16xf32>
    %c0_99 = arith.constant 0 : index
    %c0_100 = arith.constant 0 : index
    %727 = vector.load %arg26[%c0_99, %c0_100] : memref<16x8xf32, #tpu.memory_space<vmem>>, vector<16x8xf32>
    %cst_101 = arith.constant dense<0.000000e+00> : vector<16x8xf32>
    %728 = tpu.matmul %726, %727, %cst_101 {dimension_numbers = #tpu.dot_dimension_numbers<[1], [0], [0], [1], [0, 0, 1, 1], [], []>} : vector<16x16xf32>, vector<16x8xf32>, vector<16x8xf32> -> vector<16x8xf32>
    %c0_102 = arith.constant 0 : index
    %729 = memref.load %arg29[%c0_102] : memref<1xf32, #tpu.memory_space<smem>>
    %730 = vector.broadcast %729 : f32 to vector<16x8xf32>
    %731 = arith.mulf %730, %382 : vector<16x8xf32>
    %732 = arith.addf %728, %731 : vector<16x8xf32>
    %cst_103 = arith.constant dense<0.000000e+00> : vector<16xf32>
    %733 = vector.multi_reduction <add>, %732, %cst_103 [1] : vector<16x8xf32> to vector<16xf32>
    %734 = vector.shape_cast %733 : vector<16xf32> to vector<16x1xf32>
    %cst_104 = arith.constant 8.000000e+00 : f32
    %735 = vector.broadcast %cst_104 : f32 to vector<16x1xf32>
    %736 = arith.divf %734, %735 : vector<16x1xf32>
    %737 = vector.broadcast %736 : vector<16x1xf32> to vector<16x8xf32>
    %738 = arith.subf %732, %737 : vector<16x8xf32>
    %739 = arith.mulf %738, %738 : vector<16x8xf32>
    %cst_105 = arith.constant dense<0.000000e+00> : vector<16xf32>
    %740 = vector.multi_reduction <add>, %739, %cst_105 [1] : vector<16x8xf32> to vector<16xf32>
    %741 = vector.shape_cast %740 : vector<16xf32> to vector<16x1xf32>
    %cst_106 = arith.constant 8.000000e+00 : f32
    %742 = vector.broadcast %cst_106 : f32 to vector<16x1xf32>
    %743 = arith.divf %741, %742 : vector<16x1xf32>
    %744 = vector.broadcast %736 : vector<16x1xf32> to vector<16x8xf32>
    %745 = arith.subf %732, %744 : vector<16x8xf32>
    %cst_107 = arith.constant 9.99999974E-6 : f32
    %746 = vector.broadcast %cst_107 : f32 to vector<16x1xf32>
    %747 = arith.addf %743, %746 : vector<16x1xf32>
    %748 = math.rsqrt %747 : vector<16x1xf32>
    %749 = vector.broadcast %748 : vector<16x1xf32> to vector<16x8xf32>
    %750 = arith.mulf %745, %749 : vector<16x8xf32>
    %751 = vector.shape_cast %384 : vector<8xf32> to vector<1x8xf32>
    %752 = vector.broadcast %751 : vector<1x8xf32> to vector<16x8xf32>
    %753 = arith.mulf %750, %752 : vector<16x8xf32>
    %754 = vector.shape_cast %386 : vector<8xf32> to vector<1x8xf32>
    %755 = vector.broadcast %754 : vector<1x8xf32> to vector<16x8xf32>
    %756 = arith.addf %753, %755 : vector<16x8xf32>
    %c0_108 = arith.constant 0 : index
    %c0_109 = arith.constant 0 : index
    %757 = vector.load %arg27[%c0_108, %c0_109] : memref<8x8xf32, #tpu.memory_space<vmem>>, vector<8x8xf32>
    %cst_110 = arith.constant dense<0.000000e+00> : vector<16x8xf32>
    %758 = tpu.matmul %756, %757, %cst_110 {dimension_numbers = #tpu.dot_dimension_numbers<[1], [0], [0], [1], [0, 0, 1, 1], [], []>} : vector<16x8xf32>, vector<8x8xf32>, vector<16x8xf32> -> vector<16x8xf32>
    %c0_111 = arith.constant 0 : index
    %c0_112 = arith.constant 0 : index
    %759 = vector.load %arg28[%c0_111, %c0_112] : memref<1x8xf32, #tpu.memory_space<vmem>>, vector<1x8xf32>
    %760 = vector.shape_cast %759 : vector<1x8xf32> to vector<8xf32>
    %761 = vector.shape_cast %760 : vector<8xf32> to vector<1x8xf32>
    %762 = vector.broadcast %761 : vector<1x8xf32> to vector<16x8xf32>
    %763 = arith.addf %758, %762 : vector<16x8xf32>
    %764 = arith.addf %763, %1 : vector<16x8xf32>
    %765 = vector.shape_cast %764 : vector<16x8xf32> to vector<2x8x8xf32>
    %c0_113 = arith.constant 0 : index
    %c0_114 = arith.constant 0 : index
    %c0_115 = arith.constant 0 : index
    %766 = vector.load %arg30[%c0_113, %c0_114, %c0_115] : memref<2x8x8xf32, #tpu.memory_space<vmem>>, vector<2x8x8xf32>
    tpu.vector_store %arg30[%c0_113, %c0_114, %c0_115], %765 {strides = array<i32>} : memref<2x8x8xf32, #tpu.memory_space<vmem>>, vector<2x8x8xf32>,
    return
  }
  func.func @transform_0(%arg0: i32) -> (i32, i32, i32) {
    %c0_i32 = arith.constant 0 : i32
    %c0_i32_0 = arith.constant 0 : i32
    %c0_i32_1 = arith.constant 0 : i32
    return %arg0, %c0_i32, %c0_i32_0 : i32, i32, i32
  }
  func.func @transform_1(%arg0: i32) -> (i32, i32) {
    %c0_i32 = arith.constant 0 : i32
    %c0_i32_0 = arith.constant 0 : i32
    %c0_i32_1 = arith.constant 0 : i32
    return %c0_i32, %c0_i32_0 : i32, i32
  }
  func.func @transform_2(%arg0: i32) -> (i32, i32) {
    %c0_i32 = arith.constant 0 : i32
    %c0_i32_0 = arith.constant 0 : i32
    %c0_i32_1 = arith.constant 0 : i32
    return %c0_i32, %c0_i32_0 : i32, i32
  }
  func.func @transform_3(%arg0: i32) -> (i32, i32) {
    %c0_i32 = arith.constant 0 : i32
    %c0_i32_0 = arith.constant 0 : i32
    %c0_i32_1 = arith.constant 0 : i32
    return %c0_i32, %c0_i32_0 : i32, i32
  }
  func.func @transform_4(%arg0: i32) -> (i32, i32) {
    %c0_i32 = arith.constant 0 : i32
    %c0_i32_0 = arith.constant 0 : i32
    %c0_i32_1 = arith.constant 0 : i32
    return %c0_i32, %c0_i32_0 : i32, i32
  }
  func.func @transform_5(%arg0: i32) -> (i32, i32) {
    %c0_i32 = arith.constant 0 : i32
    %c0_i32_0 = arith.constant 0 : i32
    %c0_i32_1 = arith.constant 0 : i32
    return %c0_i32, %c0_i32_0 : i32, i32
  }
  func.func @transform_6(%arg0: i32) -> (i32, i32) {
    %c0_i32 = arith.constant 0 : i32
    %c0_i32_0 = arith.constant 0 : i32
    %c0_i32_1 = arith.constant 0 : i32
    return %c0_i32, %c0_i32_0 : i32, i32
  }
  func.func @transform_7(%arg0: i32) -> (i32, i32) {
    %c0_i32 = arith.constant 0 : i32
    %c0_i32_0 = arith.constant 0 : i32
    %c0_i32_1 = arith.constant 0 : i32
    return %c0_i32, %c0_i32_0 : i32, i32
  }
  func.func @transform_8(%arg0: i32) -> (i32, i32) {
    %c0_i32 = arith.constant 0 : i32
    %c0_i32_0 = arith.constant 0 : i32
    %c0_i32_1 = arith.constant 0 : i32
    return %c0_i32, %c0_i32_0 : i32, i32
  }
  func.func @transform_9(%arg0: i32) -> (i32, i32) {
    %c0_i32 = arith.constant 0 : i32
    %c0_i32_0 = arith.constant 0 : i32
    %c0_i32_1 = arith.constant 0 : i32
    return %c0_i32, %c0_i32_0 : i32, i32
  }
  func.func @transform_10(%arg0: i32) -> (i32, i32) {
    %c0_i32 = arith.constant 0 : i32
    %c0_i32_0 = arith.constant 0 : i32
    %c0_i32_1 = arith.constant 0 : i32
    return %c0_i32, %c0_i32_0 : i32, i32
  }
  func.func @transform_11(%arg0: i32) -> (i32, i32) {
    %c0_i32 = arith.constant 0 : i32
    %c0_i32_0 = arith.constant 0 : i32
    %c0_i32_1 = arith.constant 0 : i32
    return %c0_i32, %c0_i32_0 : i32, i32
  }
  func.func @transform_12(%arg0: i32) -> (i32, i32) {
    %c0_i32 = arith.constant 0 : i32
    %c0_i32_0 = arith.constant 0 : i32
    %c0_i32_1 = arith.constant 0 : i32
    return %c0_i32, %c0_i32_0 : i32, i32
  }
  func.func @transform_13(%arg0: i32) -> (i32, i32) {
    %c0_i32 = arith.constant 0 : i32
    %c0_i32_0 = arith.constant 0 : i32
    %c0_i32_1 = arith.constant 0 : i32
    return %c0_i32, %c0_i32_0 : i32, i32
  }
  func.func @transform_14(%arg0: i32) -> i32 {
    %c0_i32 = arith.constant 0 : i32
    %c0_i32_0 = arith.constant 0 : i32
    return %c0_i32 : i32
  }
  func.func @transform_15(%arg0: i32) -> (i32, i32) {
    %c0_i32 = arith.constant 0 : i32
    %c0_i32_0 = arith.constant 0 : i32
    %c0_i32_1 = arith.constant 0 : i32
    return %c0_i32, %c0_i32_0 : i32, i32
  }
  func.func @transform_16(%arg0: i32) -> (i32, i32) {
    %c0_i32 = arith.constant 0 : i32
    %c0_i32_0 = arith.constant 0 : i32
    %c0_i32_1 = arith.constant 0 : i32
    return %c0_i32, %c0_i32_0 : i32, i32
  }
  func.func @transform_17(%arg0: i32) -> (i32, i32) {
    %c0_i32 = arith.constant 0 : i32
    %c0_i32_0 = arith.constant 0 : i32
    %c0_i32_1 = arith.constant 0 : i32
    return %c0_i32, %c0_i32_0 : i32, i32
  }
  func.func @transform_18(%arg0: i32) -> (i32, i32) {
    %c0_i32 = arith.constant 0 : i32
    %c0_i32_0 = arith.constant 0 : i32
    %c0_i32_1 = arith.constant 0 : i32
    return %c0_i32, %c0_i32_0 : i32, i32
  }
  func.func @transform_19(%arg0: i32) -> (i32, i32) {
    %c0_i32 = arith.constant 0 : i32
    %c0_i32_0 = arith.constant 0 : i32
    %c0_i32_1 = arith.constant 0 : i32
    return %c0_i32, %c0_i32_0 : i32, i32
  }
  func.func @transform_20(%arg0: i32) -> (i32, i32) {
    %c0_i32 = arith.constant 0 : i32
    %c0_i32_0 = arith.constant 0 : i32
    %c0_i32_1 = arith.constant 0 : i32
    return %c0_i32, %c0_i32_0 : i32, i32
  }
  func.func @transform_21(%arg0: i32) -> (i32, i32) {
    %c0_i32 = arith.constant 0 : i32
    %c0_i32_0 = arith.constant 0 : i32
    %c0_i32_1 = arith.constant 0 : i32
    return %c0_i32, %c0_i32_0 : i32, i32
  }
  func.func @transform_22(%arg0: i32) -> (i32, i32) {
    %c0_i32 = arith.constant 0 : i32
    %c0_i32_0 = arith.constant 0 : i32
    %c0_i32_1 = arith.constant 0 : i32
    return %c0_i32, %c0_i32_0 : i32, i32
  }
  func.func @transform_23(%arg0: i32) -> (i32, i32) {
    %c0_i32 = arith.constant 0 : i32
    %c0_i32_0 = arith.constant 0 : i32
    %c0_i32_1 = arith.constant 0 : i32
    return %c0_i32, %c0_i32_0 : i32, i32
  }
  func.func @transform_24(%arg0: i32) -> (i32, i32) {
    %c0_i32 = arith.constant 0 : i32
    %c0_i32_0 = arith.constant 0 : i32
    %c0_i32_1 = arith.constant 0 : i32
    return %c0_i32, %c0_i32_0 : i32, i32
  }
  func.func @transform_25(%arg0: i32) -> (i32, i32) {
    %c0_i32 = arith.constant 0 : i32
    %c0_i32_0 = arith.constant 0 : i32
    %c0_i32_1 = arith.constant 0 : i32
    return %c0_i32, %c0_i32_0 : i32, i32
  }
  func.func @transform_26(%arg0: i32) -> (i32, i32) {
    %c0_i32 = arith.constant 0 : i32
    %c0_i32_0 = arith.constant 0 : i32
    %c0_i32_1 = arith.constant 0 : i32
    return %c0_i32, %c0_i32_0 : i32, i32
  }
  func.func @transform_27(%arg0: i32) -> (i32, i32) {
    %c0_i32 = arith.constant 0 : i32
    %c0_i32_0 = arith.constant 0 : i32
    %c0_i32_1 = arith.constant 0 : i32
    return %c0_i32, %c0_i32_0 : i32, i32
  }
  func.func @transform_28(%arg0: i32) -> i32 {
    %c0_i32 = arith.constant 0 : i32
    %c0_i32_0 = arith.constant 0 : i32
    return %c0_i32 : i32
  }
  func.func @transform_29(%arg0: i32) -> (i32, i32, i32) {
    %c0_i32 = arith.constant 0 : i32
    %c0_i32_0 = arith.constant 0 : i32
    %c0_i32_1 = arith.constant 0 : i32
    return %arg0, %c0_i32, %c0_i32_0 : i32, i32, i32
  }
}

</mosaic_0001>

<llo_original>
// kernel: res_mamba_block.1
$region0: #{res_mamba_block.1}
  #allocation0 [shape = 'u32[]', space=smem, size = 0x4, offset = 0x4, fixed_abs, tag = 'smem constant byte address 0x4 - core index']
  #allocation1 [shape = 'u32[144,128]{1,0:T(1,128)}', space=vmem, size = 0x12000, scoped, tag = 'internal scratch']
  #allocation2 [shape = 'f32[1]{0:T(128)S(6)}', space=smem, size = 0x200, scoped, tag = 'scoped memory for res_mamba_block.1']
  #allocation3 [shape = 'f32[1]{0:T(128)S(6)}', space=smem, size = 0x200, scoped, tag = 'scoped memory for res_mamba_block.1']
  %s0 = inlined_call_operand.smem [shape: u32[30], index: -1, kind: input, shape index: {}]
  %s1 = sld [smem:[%s0]]
  %s2 = scalar_lea.smem %s0, 1
  %s3 = sld [smem:[%s2]]
  %s4 = scalar_lea.smem %s0, 2
  %s5 = sld [smem:[%s4]]
  %s6 = scalar_lea.smem %s0, 3
  %s7 = sld [smem:[%s6]]
  %s8 = scalar_lea.smem %s0, 4
  %s9 = sld [smem:[%s8]]
  %s10 = scalar_lea.smem %s0, 5
  %s11 = sld [smem:[%s10]]
  %s12 = scalar_lea.smem %s0, 6
  %s13 = sld [smem:[%s12]]
  %s14 = scalar_lea.smem %s0, 7
  %s15 = sld [smem:[%s14]]
  %s16 = scalar_lea.smem %s0, 8
  %s17 = sld [smem:[%s16]]
  %s18 = scalar_lea.smem %s0, 9
  %s19 = sld [smem:[%s18]]
  %s20 = scalar_lea.smem %s0, 10
  %s21 = sld [smem:[%s20]]
  %s22 = scalar_lea.smem %s0, 11
  %s23 = sld [smem:[%s22]]
  %s24 = scalar_lea.smem %s0, 12
  %s25 = sld [smem:[%s24]]
  %s26 = scalar_lea.smem %s0, 13
  %s27 = sld [smem:[%s26]]
  %s28 = scalar_lea.smem %s0, 14
  %s29 = sld [smem:[%s28]]
  %s30 = scalar_lea.smem %s0, 15
  %s31 = sld [smem:[%s30]]
  %s32 = scalar_lea.smem %s0, 16
  %s33 = sld [smem:[%s32]]
  %s34 = scalar_lea.smem %s0, 17
  %s35 = sld [smem:[%s34]]
  %s36 = scalar_lea.smem %s0, 18
  %s37 = sld [smem:[%s36]]
  %s38 = scalar_lea.smem %s0, 19
  %s39 = sld [smem:[%s38]]
  %s40 = scalar_lea.smem %s0, 20
  %s41 = sld [smem:[%s40]]
  %s42 = scalar_lea.smem %s0, 21
  %s43 = sld [smem:[%s42]]
  %s44 = scalar_lea.smem %s0, 22
  %s45 = sld [smem:[%s44]]
  %s46 = scalar_lea.smem %s0, 23
  %s47 = sld [smem:[%s46]]
  %s48 = scalar_lea.smem %s0, 24
  %s49 = sld [smem:[%s48]]
  %s50 = scalar_lea.smem %s0, 25
  %s51 = sld [smem:[%s50]]
  %s52 = scalar_lea.smem %s0, 26
  %s53 = sld [smem:[%s52]]
  %s54 = scalar_lea.smem %s0, 27
  %s55 = sld [smem:[%s54]]
  %s56 = scalar_lea.smem %s0, 28
  %s57 = sld [smem:[%s56]]
  %s58 = scalar_lea.smem %s0, 29
  %s59 = sld [smem:[%s58]]
  %s60 = sld [smem:[#allocation0]]
  $region126: #{res_mamba_block.1} parent=0
    _
  %s62 = ssub.s32 1, %s60
  %s63 = scalar_select 0, %s62, %s60
  %64 = sst [smem:[#allocation2]] %s29
  %65 = sst [smem:[#allocation3]] %s57
  $region1: #{res_mamba_block.1} parent=0
    #allocation4 [shape = 'u8[8192]{0}', space=vmem, size = 0x2000, scoped, tag = 'output window, operand 0, single buffered']
    #allocation5 [shape = 's32[1]{0}', space=sflag, size = 0x4, scoped, tag = 'scoped memory for res_mamba_block.1']
    %66 = vsyncpa [#allocation5], 0
    // Predicated region
    $region2: #{res_mamba_block.1} parent=1 // pred_check
      _
    $region3: #{res_mamba_block.1} parent=1 // pred_check_branch
      %68 = sbr.rel (0) target = $region5
    $region4: #{res_mamba_block.1} parent=1 // pred_region
      _
    $region5: #{res_mamba_block.1} parent=1 // pred_fallthru
      _
    // Predicated region
    $region6: #{res_mamba_block.1} parent=1 // pred_check
      _
    $region7: #{res_mamba_block.1} parent=1 // pred_check_branch
      %70 = sbr.rel (0) target = $region9
    $region8: #{res_mamba_block.1} parent=1 // pred_region
      _
    $region9: #{res_mamba_block.1} parent=1 // pred_fallthru
      _
    // Predicated region
    $region10: #{res_mamba_block.1} parent=1 // pred_check
      _
    $region11: #{res_mamba_block.1} parent=1 // pred_check_branch
      %72 = sbr.rel (0) target = $region13
    $region12: #{res_mamba_block.1} parent=1 // pred_region
      _
    $region13: #{res_mamba_block.1} parent=1 // pred_fallthru
      _
    // Predicated region
    $region14: #{res_mamba_block.1} parent=1 // pred_check
      _
    $region15: #{res_mamba_block.1} parent=1 // pred_check_branch
      %74 = sbr.rel (0) target = $region17
    $region16: #{res_mamba_block.1} parent=1 // pred_region
      _
    $region17: #{res_mamba_block.1} parent=1 // pred_fallthru
      _
    // Predicated region
    $region18: #{res_mamba_block.1} parent=1 // pred_check
      _
    $region19: #{res_mamba_block.1} parent=1 // pred_check_branch
      %76 = sbr.rel (0) target = $region21
    $region20: #{res_mamba_block.1} parent=1 // pred_region
      _
    $region21: #{res_mamba_block.1} parent=1 // pred_fallthru
      _
    // Predicated region
    $region22: #{res_mamba_block.1} parent=1 // pred_check
      _
    $region23: #{res_mamba_block.1} parent=1 // pred_check_branch
      %78 = sbr.rel (0) target = $region25
    $region24: #{res_mamba_block.1} parent=1 // pred_region
      _
    $region25: #{res_mamba_block.1} parent=1 // pred_fallthru
      _
    // Predicated region
    $region26: #{res_mamba_block.1} parent=1 // pred_check
      _
    $region27: #{res_mamba_block.1} parent=1 // pred_check_branch
      %80 = sbr.rel (0) target = $region29
    $region28: #{res_mamba_block.1} parent=1 // pred_region
      _
    $region29: #{res_mamba_block.1} parent=1 // pred_fallthru
      _
    // Predicated region
    $region30: #{res_mamba_block.1} parent=1 // pred_check
      _
    $region31: #{res_mamba_block.1} parent=1 // pred_check_branch
      %82 = sbr.rel (0) target = $region33
    $region32: #{res_mamba_block.1} parent=1 // pred_region
      _
    $region33: #{res_mamba_block.1} parent=1 // pred_fallthru
      _
    // Predicated region
    $region34: #{res_mamba_block.1} parent=1 // pred_check
      _
    $region35: #{res_mamba_block.1} parent=1 // pred_check_branch
      %84 = sbr.rel (0) target = $region37
    $region36: #{res_mamba_block.1} parent=1 // pred_region
      _
    $region37: #{res_mamba_block.1} parent=1 // pred_fallthru
      _
    // Predicated region
    $region38: #{res_mamba_block.1} parent=1 // pred_check
      _
    $region39: #{res_mamba_block.1} parent=1 // pred_check_branch
      %86 = sbr.rel (0) target = $region41
    $region40: #{res_mamba_block.1} parent=1 // pred_region
      _
    $region41: #{res_mamba_block.1} parent=1 // pred_fallthru
      _
    // Predicated region
    $region42: #{res_mamba_block.1} parent=1 // pred_check
      _
    $region43: #{res_mamba_block.1} parent=1 // pred_check_branch
      %88 = sbr.rel (0) target = $region45
    $region44: #{res_mamba_block.1} parent=1 // pred_region
      _
    $region45: #{res_mamba_block.1} parent=1 // pred_fallthru
      _
    // Predicated region
    $region46: #{res_mamba_block.1} parent=1 // pred_check
      _
    $region47: #{res_mamba_block.1} parent=1 // pred_check_branch
      %90 = sbr.rel (0) target = $region49
    $region48: #{res_mamba_block.1} parent=1 // pred_region
      _
    $region49: #{res_mamba_block.1} parent=1 // pred_fallthru
      _
    // Predicated region
    $region50: #{res_mamba_block.1} parent=1 // pred_check
      _
    $region51: #{res_mamba_block.1} parent=1 // pred_check_branch
      %92 = sbr.rel (0) target = $region53
    $region52: #{res_mamba_block.1} parent=1 // pred_region
      _
    $region53: #{res_mamba_block.1} parent=1 // pred_fallthru
      _
    // Predicated region
    $region54: #{res_mamba_block.1} parent=1 // pred_check
      _
    $region55: #{res_mamba_block.1} parent=1 // pred_check_branch
      %94 = sbr.rel (0) target = $region57
    $region56: #{res_mamba_block.1} parent=1 // pred_region
      _
    $region57: #{res_mamba_block.1} parent=1 // pred_fallthru
      _
    // Predicated region
    $region58: #{res_mamba_block.1} parent=1 // pred_check
      _
    $region59: #{res_mamba_block.1} parent=1 // pred_check_branch
      %96 = sbr.rel (0) target = $region61
    $region60: #{res_mamba_block.1} parent=1 // pred_region
      _
    $region61: #{res_mamba_block.1} parent=1 // pred_fallthru
      _
    // Predicated region
    $region62: #{res_mamba_block.1} parent=1 // pred_check
      _
    $region63: #{res_mamba_block.1} parent=1 // pred_check_branch
      %98 = sbr.rel (0) target = $region65
    $region64: #{res_mamba_block.1} parent=1 // pred_region
      _
    $region65: #{res_mamba_block.1} parent=1 // pred_fallthru
      _
    // Predicated region
    $region66: #{res_mamba_block.1} parent=1 // pred_check
      _
    $region67: #{res_mamba_block.1} parent=1 // pred_check_branch
      %100 = sbr.rel (0) target = $region69
    $region68: #{res_mamba_block.1} parent=1 // pred_region
      _
    $region69: #{res_mamba_block.1} parent=1 // pred_fallthru
      _
    // Predicated region
    $region70: #{res_mamba_block.1} parent=1 // pred_check
      _
    $region71: #{res_mamba_block.1} parent=1 // pred_check_branch
      %102 = sbr.rel (0) target = $region73
    $region72: #{res_mamba_block.1} parent=1 // pred_region
      _
    $region73: #{res_mamba_block.1} parent=1 // pred_fallthru
      _
    // Predicated region
    $region74: #{res_mamba_block.1} parent=1 // pred_check
      _
    $region75: #{res_mamba_block.1} parent=1 // pred_check_branch
      %104 = sbr.rel (0) target = $region77
    $region76: #{res_mamba_block.1} parent=1 // pred_region
      _
    $region77: #{res_mamba_block.1} parent=1 // pred_fallthru
      _
    // Predicated region
    $region78: #{res_mamba_block.1} parent=1 // pred_check
      _
    $region79: #{res_mamba_block.1} parent=1 // pred_check_branch
      %106 = sbr.rel (0) target = $region81
    $region80: #{res_mamba_block.1} parent=1 // pred_region
      _
    $region81: #{res_mamba_block.1} parent=1 // pred_fallthru
      _
    // Predicated region
    $region82: #{res_mamba_block.1} parent=1 // pred_check
      _
    $region83: #{res_mamba_block.1} parent=1 // pred_check_branch
      %108 = sbr.rel (0) target = $region85
    $region84: #{res_mamba_block.1} parent=1 // pred_region
      _
    $region85: #{res_mamba_block.1} parent=1 // pred_fallthru
      _
    // Predicated region
    $region86: #{res_mamba_block.1} parent=1 // pred_check
      _
    $region87: #{res_mamba_block.1} parent=1 // pred_check_branch
      %110 = sbr.rel (0) target = $region89
    $region88: #{res_mamba_block.1} parent=1 // pred_region
      _
    $region89: #{res_mamba_block.1} parent=1 // pred_fallthru
      _
    // Predicated region
    $region90: #{res_mamba_block.1} parent=1 // pred_check
      _
    $region91: #{res_mamba_block.1} parent=1 // pred_check_branch
      %112 = sbr.rel (0) target = $region93
    $region92: #{res_mamba_block.1} parent=1 // pred_region
      _
    $region93: #{res_mamba_block.1} parent=1 // pred_fallthru
      _
    // Predicated region
    $region94: #{res_mamba_block.1} parent=1 // pred_check
      _
    $region95: #{res_mamba_block.1} parent=1 // pred_check_branch
      %114 = sbr.rel (0) target = $region97
    $region96: #{res_mamba_block.1} parent=1 // pred_region
      _
    $region97: #{res_mamba_block.1} parent=1 // pred_fallthru
      _
    // Predicated region
    $region98: #{res_mamba_block.1} parent=1 // pred_check
      _
    $region99: #{res_mamba_block.1} parent=1 // pred_check_branch
      %116 = sbr.rel (0) target = $region101
    $region100: #{res_mamba_block.1} parent=1 // pred_region
      _
    $region101: #{res_mamba_block.1} parent=1 // pred_fallthru
      _
    // Predicated region
    $region102: #{res_mamba_block.1} parent=1 // pred_check
      _
    $region103: #{res_mamba_block.1} parent=1 // pred_check_branch
      %118 = sbr.rel (0) target = $region105
    $region104: #{res_mamba_block.1} parent=1 // pred_region
      _
    $region105: #{res_mamba_block.1} parent=1 // pred_fallthru
      _
    // Predicated region
    $region106: #{res_mamba_block.1} parent=1 // pred_check
      _
    $region107: #{res_mamba_block.1} parent=1 // pred_check_branch
      %120 = sbr.rel (0) target = $region109
    $region108: #{res_mamba_block.1} parent=1 // pred_region
      _
    $region109: #{res_mamba_block.1} parent=1 // pred_fallthru
      _
    // Predicated region
    $region110: #{res_mamba_block.1} parent=1 // pred_check
      _
    $region111: #{res_mamba_block.1} parent=1 // pred_check_branch
      %122 = sbr.rel (0) target = $region113
    $region112: #{res_mamba_block.1} parent=1 // pred_region
      _
    $region113: #{res_mamba_block.1} parent=1 // pred_fallthru
      _
    // Predicated region
    $region114: #{res_mamba_block.1} parent=1 // pred_check
      _
    $region115: #{res_mamba_block.1} parent=1 // pred_check_branch
      %124 = sbr.rel (0) target = $region117
    $region116: #{res_mamba_block.1} parent=1 // pred_region
      _
    $region117: #{res_mamba_block.1} parent=1 // pred_fallthru
      _
    %v125 = vld [vmem:[%s1] sm:$0xff]
    %v126 = vld [vmem:[%s1 + $0x8] sm:$0xff]
    %v127 = vld [vmem:[%s3] sm:$0x1]
    %v128 = vld [vmem:[%s5] sm:$0x1]
    %vm129 = vcmask 64512
    %v130 = vsel %vm129, %v125, 0.0
    %131 = vadd.xlane.f32.xlu0 %v130
    %v132 = vpop.xlane.xlu0 %131
    %v133 = vsel %vm129, %v126, 0.0
    %134 = vadd.xlane.f32.xlu0 %v133
    %v135 = vpop.xlane.xlu0 %134
    %v136 = vrcp.pop 8.0
    %v137 = vmul.f32 %v132, %v136
    %v138 = vmul.f32 %v135, %v136
    %v139 = vsub.f32 %v125, %v137
    %v140 = vsub.f32 %v126, %v138
    %v141 = vmul.f32 %v139, %v139
    %v142 = vmul.f32 %v140, %v140
    %v143 = vsel %vm129, %v141, 0.0
    %144 = vadd.xlane.f32.xlu0 %v143
    %v145 = vpop.xlane.xlu0 %144
    %v146 = vsel %vm129, %v142, 0.0
    %147 = vadd.xlane.f32.xlu0 %v146
    %v148 = vpop.xlane.xlu0 %147
    %v149 = vmul.f32 %v145, %v136
    %v150 = vmul.f32 %v148, %v136
    %v151 = vadd.f32 %v149, 1e-05
    %v152 = vadd.f32 %v150, 1e-05
    %v153 = vrsqrt.pop %v151
    %v154 = vrsqrt.pop %v152
    %v155 = vmul.f32 %v139, %v153
    %v156 = vmul.f32 %v140, %v154
    %v158 = vlaneseq
    %v159 = vshrl.u32 %v158, 7
    %v160 = vsub.s32 0, %v159
    %v161 = vrot.slane %v127, %v160
    %v163 = vmul.f32 %v155, %v161
    %v164 = vmul.f32 %v156, %v161
    %v166 = vlaneseq
    %v167 = vshrl.u32 %v166, 7
    %v168 = vsub.s32 0, %v167
    %v169 = vrot.slane %v128, %v168
    %v171 = vadd.f32 %v163, %v169
    %v172 = vadd.f32 %v164, %v169
    %v173 = vld [vmem:[%s7] sm:$0xff]
    %v175 = vsel %vm129, %v171, 0
    %v178 = vsel %vm129, %v172, 0
    %180 = vmatprep.subr.mxu0 0.0
    %181 = vmatpush1.msra.mxu0 %v173
    %182 = vmatprep.subr.mxu0 0.0
    %183 = vmatpush1.msra.mxu0 0.0
    %184 = vmatprep.subr.mxu0 0.0
    %185 = vmatpush1.msra.mxu0 0.0
    %186 = vmatprep.subr.mxu0 0.0
    %187 = vmatpush1.msra.mxu0 0.0
    %188 = vmatprep.subr.mxu0 0.0
    %189 = vmatpush1.msra.mxu0 0.0
    %190 = vmatprep.subr.mxu0 0.0
    %191 = vmatpush1.msra.mxu0 0.0
    %192 = vmatprep.subr.mxu0 0.0
    %193 = vmatpush1.msra.mxu0 0.0
    %194 = vmatprep.subr.mxu0 0.0
    %195 = vmatpush1.msra.mxu0 0.0
    %196 = vmatprep.subr.mxu0 0.0
    %197 = vmatpush1.msra.mxu0 0.0
    %198 = vmatprep.subr.mxu0 0.0
    %199 = vmatpush1.msra.mxu0 0.0
    %200 = vmatprep.subr.mxu0 0.0
    %201 = vmatpush1.msra.mxu0 0.0
    %202 = vmatprep.subr.mxu0 0.0
    %203 = vmatpush1.msra.mxu0 0.0
    %204 = vmatprep.subr.mxu0 0.0
    %205 = vmatpush1.msra.mxu0 0.0
    %206 = vmatprep.subr.mxu0 0.0
    %207 = vmatpush1.msra.mxu0 0.0
    %208 = vmatprep.subr.mxu0 0.0
    %209 = vmatpush1.msra.mxu0 0.0
    %210 = vmatprep.subr.mxu0 0.0
    %211 = vmatpush1.msra.mxu0 0.0
    %212 = vmatprep.subr.mxu0 0.0
    %213 = vmatpush1.msra.mxu0 0.0
    %214 = vmatprep.subr.mxu0 0.0
    %215 = vmatpush1.msra.mxu0 0.0
    %216 = vmatprep.subr.mxu0 0.0
    %217 = vmatpush1.msra.mxu0 0.0
    %218 = vmatprep.subr.mxu0 0.0
    %219 = vmatpush1.msra.mxu0 0.0
    %220 = vmatprep.subr.mxu0 0.0
    %221 = vmatpush1.msra.mxu0 0.0
    %222 = vmatprep.subr.mxu0 0.0
    %223 = vmatpush1.msra.mxu0 0.0
    %224 = vmatprep.subr.mxu0 0.0
    %225 = vmatpush1.msra.mxu0 0.0
    %226 = vmatprep.subr.mxu0 0.0
    %227 = vmatpush1.msra.mxu0 0.0
    %228 = vmatprep.subr.mxu0 0.0
    %229 = vmatpush1.msra.mxu0 0.0
    %230 = vmatprep.subr.mxu0 0.0
    %231 = vmatpush1.msra.mxu0 0.0
    %232 = vmatprep.subr.mxu0 0.0
    %233 = vmatpush1.msra.mxu0 0.0
    %234 = vmatprep.subr.mxu0 0.0
    %235 = vmatpush1.msra.mxu0 0.0
    %236 = vmatprep.subr.mxu0 0.0
    %237 = vmatpush1.msra.mxu0 0.0
    %238 = vmatprep.subr.mxu0 0.0
    %239 = vmatpush1.msra.mxu0 0.0
    %240 = vmatprep.subr.mxu0 0.0
    %241 = vmatpush1.msra.mxu0 0.0
    %242 = vmatprep.subr.mxu0 0.0
    %243 = vmatpush1.msra.mxu0 0.0
    %244 = vmatprep.mubr.f32.mxu0 0.0
    %245 = vmatmul.mubr.f32.gmra.mrb[0].mxu0 %v175
    %v246 = vpop.f32.mrb[0].mxu0
    %v247 = vadd.f32 0.0, %v246
    %v248 = vpop.f32.mrb[0].mxu0
    %249 = vmatprep.mubr.f32.mxu0 0.0
    %250 = vmatmul.mubr.f32.gmra.mrb[0].mxu0 %v178
    %v251 = vpop.f32.mrb[0].mxu0
    %v252 = vadd.f32 0.0, %v251
    %v253 = vpop.f32.mrb[0].mxu0
    %254 = vdwg.mxu0
    %v257 = vrot.slane %v247, 5
    %v258 = vrot.slane %v252, 5
    %vm261 = vcmask 1042432
    %v262 = vsel %vm261, 0.0, %v257
    %v263 = vsel %vm261, 0.0, %v258
    %v264 = vld [vmem:[%s9] sm:$0xf]
    %v265 = vld [vmem:[%s11] sm:$0x1]
    %v267 = vlaneseq
    %v268 = vshrl.u32 %v267, 7
    %v269 = vsub.s32 0, %v268
    %v270 = vrot.slane %v265, %v269
    %v272 = vlaneseq
    %v273 = vshrl.u32 %v272, 7
    %v274 = vsub.s32 0, %v273
    %v275 = vrot.slane %v264, %v274
    %v276 = vmul.f32 %v262, %v275
    %v277 = vmul.f32 %v263, %v275
    %v278 = vadd.f32 %v270, %v276
    %v279 = vadd.f32 %v270, %v277
    %v280 = vlaneseq
    %v281 = vshrl.u32 %v280, 7
    %v282 = vsub.s32 1, %v281
    %v283 = vrot.slane %v264, %v282
    %v284 = vmul.f32 %v262, %v283
    %v285 = vmul.f32 %v257, %v283
    %v286 = vmul.f32 %v263, %v283
    %v287 = vmul.f32 %v258, %v283
    %vm292 = vcmask 1046528
    %v293 = vrot.slane %v284, 1
    %v294 = vrot.slane %v285, 1
    %v295 = vsel %vm292, %v293, %v294
    %v296 = vrot.slane %v286, 1
    %v297 = vrot.slane %v287, 1
    %v298 = vsel %vm292, %v296, %v297
    %v301 = vadd.f32 %v278, %v295
    %v302 = vadd.f32 %v279, %v298
    %v303 = vlaneseq
    %v304 = vshrl.u32 %v303, 7
    %v305 = vsub.s32 2, %v304
    %v306 = vrot.slane %v264, %v305
    %v307 = vmul.f32 %v262, %v306
    %v308 = vmul.f32 %v257, %v306
    %v309 = vmul.f32 %v263, %v306
    %v310 = vmul.f32 %v258, %v306
    %vm315 = vcmask 1045504
    %v316 = vrot.slane %v307, 2
    %v317 = vrot.slane %v308, 2
    %v318 = vsel %vm315, %v316, %v317
    %v319 = vrot.slane %v309, 2
    %v320 = vrot.slane %v310, 2
    %v321 = vsel %vm315, %v319, %v320
    %v324 = vadd.f32 %v301, %v318
    %v325 = vadd.f32 %v302, %v321
    %v326 = vlaneseq
    %v327 = vshrl.u32 %v326, 7
    %v328 = vsub.s32 3, %v327
    %v329 = vrot.slane %v264, %v328
    %v330 = vmul.f32 %v262, %v329
    %v331 = vmul.f32 %v257, %v329
    %v332 = vmul.f32 %v263, %v329
    %v333 = vmul.f32 %v258, %v329
    %vm338 = vcmask 1044480
    %v339 = vrot.slane %v330, 3
    %v340 = vrot.slane %v331, 3
    %v341 = vsel %vm338, %v339, %v340
    %v342 = vrot.slane %v332, 3
    %v343 = vrot.slane %v333, 3
    %v344 = vsel %vm338, %v342, %v343
    %v347 = vadd.f32 %v324, %v341
    %v348 = vadd.f32 %v325, %v344
    %v349 = vxor.u32 %v347, 2147483648
    %v350 = vxor.u32 %v348, 2147483648
    %v351 = vmul.f32 %v349, 1.442695
    %v352 = vpow.pop %v351
    %v353 = vmul.f32 %v350, 1.442695
    %v354 = vpow.pop %v353
    %v355 = vadd.f32 %v352, 1.0
    %v356 = vadd.f32 %v354, 1.0
    %v357 = vrcp.pop %v355
    %v358 = vmul.f32 1.0, %v357
    %v359 = vrcp.pop %v356
    %v360 = vmul.f32 1.0, %v359
    %v361 = vmul.f32 %v347, %v358
    %v362 = vmul.f32 %v348, %v360
    %v363 = vld [vmem:[%s13] sm:$0xff]
    %v364 = vld [vmem:[%s13 + $0x8] sm:$0xff]
    %vm365 = vcmask 130048
    %v367 = vsel %vm365, %v361, 0
    %v370 = vsel %vm365, %v362, 0
    %372 = vmatprep.subr.mxu0 0.0
    %373 = vmatpush1.msra.mxu0 %v363
    %374 = vmatprep.subr.mxu0 0.0
    %375 = vmatpush1.msra.mxu0 %v364
    %376 = vmatprep.subr.mxu0 0.0
    %377 = vmatpush1.msra.mxu0 0.0
    %378 = vmatprep.subr.mxu0 0.0
    %379 = vmatpush1.msra.mxu0 0.0
    %380 = vmatprep.subr.mxu0 0.0
    %381 = vmatpush1.msra.mxu0 0.0
    %382 = vmatprep.subr.mxu0 0.0
    %383 = vmatpush1.msra.mxu0 0.0
    %384 = vmatprep.subr.mxu0 0.0
    %385 = vmatpush1.msra.mxu0 0.0
    %386 = vmatprep.subr.mxu0 0.0
    %387 = vmatpush1.msra.mxu0 0.0
    %388 = vmatprep.subr.mxu0 0.0
    %389 = vmatpush1.msra.mxu0 0.0
    %390 = vmatprep.subr.mxu0 0.0
    %391 = vmatpush1.msra.mxu0 0.0
    %392 = vmatprep.subr.mxu0 0.0
    %393 = vmatpush1.msra.mxu0 0.0
    %394 = vmatprep.subr.mxu0 0.0
    %395 = vmatpush1.msra.mxu0 0.0
    %396 = vmatprep.subr.mxu0 0.0
    %397 = vmatpush1.msra.mxu0 0.0
    %398 = vmatprep.subr.mxu0 0.0
    %399 = vmatpush1.msra.mxu0 0.0
    %400 = vmatprep.subr.mxu0 0.0
    %401 = vmatpush1.msra.mxu0 0.0
    %402 = vmatprep.subr.mxu0 0.0
    %403 = vmatpush1.msra.mxu0 0.0
    %404 = vmatprep.subr.mxu0 0.0
    %405 = vmatpush1.msra.mxu0 0.0
    %406 = vmatprep.subr.mxu0 0.0
    %407 = vmatpush1.msra.mxu0 0.0
    %408 = vmatprep.subr.mxu0 0.0
    %409 = vmatpush1.msra.mxu0 0.0
    %410 = vmatprep.subr.mxu0 0.0
    %411 = vmatpush1.msra.mxu0 0.0
    %412 = vmatprep.subr.mxu0 0.0
    %413 = vmatpush1.msra.mxu0 0.0
    %414 = vmatprep.subr.mxu0 0.0
    %415 = vmatpush1.msra.mxu0 0.0
    %416 = vmatprep.subr.mxu0 0.0
    %417 = vmatpush1.msra.mxu0 0.0
    %418 = vmatprep.subr.mxu0 0.0
    %419 = vmatpush1.msra.mxu0 0.0
    %420 = vmatprep.subr.mxu0 0.0
    %421 = vmatpush1.msra.mxu0 0.0
    %422 = vmatprep.subr.mxu0 0.0
    %423 = vmatpush1.msra.mxu0 0.0
    %424 = vmatprep.subr.mxu0 0.0
    %425 = vmatpush1.msra.mxu0 0.0
    %426 = vmatprep.subr.mxu0 0.0
    %427 = vmatpush1.msra.mxu0 0.0
    %428 = vmatprep.subr.mxu0 0.0
    %429 = vmatpush1.msra.mxu0 0.0
    %430 = vmatprep.subr.mxu0 0.0
    %431 = vmatpush1.msra.mxu0 0.0
    %432 = vmatprep.subr.mxu0 0.0
    %433 = vmatpush1.msra.mxu0 0.0
    %434 = vmatprep.subr.mxu0 0.0
    %435 = vmatpush1.msra.mxu0 0.0
    %436 = vmatprep.mubr.f32.mxu0 0.0
    %437 = vmatmul.mubr.f32.gmra.mrb[0].mxu0 %v367
    %v438 = vpop.f32.mrb[0].mxu0
    %v439 = vadd.f32 0.0, %v438
    %v440 = vpop.f32.mrb[0].mxu0
    %441 = vmatprep.mubr.f32.mxu0 0.0
    %442 = vmatmul.mubr.f32.gmra.mrb[0].mxu0 %v370
    %v443 = vpop.f32.mrb[0].mxu0
    %v444 = vadd.f32 0.0, %v443
    %v445 = vpop.f32.mrb[0].mxu0
    %446 = vdwg.mxu0
    %v447 = vld [vmem:[%s15] sm:$0xff]
    %v448 = vld [vmem:[%s15 + $0x8] sm:$0xff]
    %v449 = vld [vmem:[%s17] sm:$0x1]
    %v451 = vlaneseq
    %v452 = vshrl.u32 %v451, 7
    %v453 = vsub.s32 0, %v452
    %v454 = vrot.slane %v449, %v453
    %456 = vmatprep.subr.mxu0 0.0
    %457 = vmatpush1.msra.mxu0 %v447
    %458 = vmatprep.subr.mxu0 0.0
    %459 = vmatpush1.msra.mxu0 %v448
    %460 = vmatprep.subr.mxu0 0.0
    %461 = vmatpush1.msra.mxu0 0.0
    %462 = vmatprep.subr.mxu0 0.0
    %463 = vmatpush1.msra.mxu0 0.0
    %464 = vmatprep.subr.mxu0 0.0
    %465 = vmatpush1.msra.mxu0 0.0
    %466 = vmatprep.subr.mxu0 0.0
    %467 = vmatpush1.msra.mxu0 0.0
    %468 = vmatprep.subr.mxu0 0.0
    %469 = vmatpush1.msra.mxu0 0.0
    %470 = vmatprep.subr.mxu0 0.0
    %471 = vmatpush1.msra.mxu0 0.0
    %472 = vmatprep.subr.mxu0 0.0
    %473 = vmatpush1.msra.mxu0 0.0
    %474 = vmatprep.subr.mxu0 0.0
    %475 = vmatpush1.msra.mxu0 0.0
    %476 = vmatprep.subr.mxu0 0.0
    %477 = vmatpush1.msra.mxu0 0.0
    %478 = vmatprep.subr.mxu0 0.0
    %479 = vmatpush1.msra.mxu0 0.0
    %480 = vmatprep.subr.mxu0 0.0
    %481 = vmatpush1.msra.mxu0 0.0
    %482 = vmatprep.subr.mxu0 0.0
    %483 = vmatpush1.msra.mxu0 0.0
    %484 = vmatprep.subr.mxu0 0.0
    %485 = vmatpush1.msra.mxu0 0.0
    %486 = vmatprep.subr.mxu0 0.0
    %487 = vmatpush1.msra.mxu0 0.0
    %488 = vmatprep.subr.mxu0 0.0
    %489 = vmatpush1.msra.mxu0 0.0
    %490 = vmatprep.subr.mxu0 0.0
    %491 = vmatpush1.msra.mxu0 0.0
    %492 = vmatprep.subr.mxu0 0.0
    %493 = vmatpush1.msra.mxu0 0.0
    %494 = vmatprep.subr.mxu0 0.0
    %495 = vmatpush1.msra.mxu0 0.0
    %496 = vmatprep.subr.mxu0 0.0
    %497 = vmatpush1.msra.mxu0 0.0
    %498 = vmatprep.subr.mxu0 0.0
    %499 = vmatpush1.msra.mxu0 0.0
    %500 = vmatprep.subr.mxu0 0.0
    %501 = vmatpush1.msra.mxu0 0.0
    %502 = vmatprep.subr.mxu0 0.0
    %503 = vmatpush1.msra.mxu0 0.0
    %504 = vmatprep.subr.mxu0 0.0
    %505 = vmatpush1.msra.mxu0 0.0
    %506 = vmatprep.subr.mxu0 0.0
    %507 = vmatpush1.msra.mxu0 0.0
    %508 = vmatprep.subr.mxu0 0.0
    %509 = vmatpush1.msra.mxu0 0.0
    %510 = vmatprep.subr.mxu0 0.0
    %511 = vmatpush1.msra.mxu0 0.0
    %512 = vmatprep.subr.mxu0 0.0
    %513 = vmatpush1.msra.mxu0 0.0
    %514 = vmatprep.subr.mxu0 0.0
    %515 = vmatpush1.msra.mxu0 0.0
    %516 = vmatprep.subr.mxu0 0.0
    %517 = vmatpush1.msra.mxu0 0.0
    %518 = vmatprep.subr.mxu0 0.0
    %519 = vmatpush1.msra.mxu0 0.0
    %520 = vmatprep.mubr.f32.mxu0 0.0
    %521 = vmatmul.mubr.f32.gmra.mrb[0].mxu0 %v367
    %v522 = vpop.f32.mrb[0].mxu0
    %v523 = vadd.f32 %v454, %v522
    %v524 = vpop.f32.mrb[0].mxu0
    %525 = vmatprep.mubr.f32.mxu0 0.0
    %526 = vmatmul.mubr.f32.gmra.mrb[0].mxu0 %v370
    %v527 = vpop.f32.mrb[0].mxu0
    %v528 = vadd.f32 %v454, %v527
    %v529 = vpop.f32.mrb[0].mxu0
    %530 = vdwg.mxu0
    %v531 = vmax.f32 %v523, 0.0
    %v532 = vmax.f32 %v528, 0.0
    %vm533 = vcmp.ne.f32.partialorder %v523, %v523
    %vm534 = vcmp.ne.f32.partialorder %v528, %v528
    %v535 = vadd.f32 %v523, 0.0
    %v536 = vadd.f32 %v528, 0.0
    %v537 = vand.u32 2147483647, %v523
    %v538 = vand.u32 2147483647, %v528
    %v539 = vsub.f32 0.0, %v537
    %v540 = vsub.f32 0.0, %v538
    %v541 = vmul.f32 %v539, 1.442695
    %v542 = vpow.pop %v541
    %v543 = vmul.f32 %v540, 1.442695
    %v544 = vpow.pop %v543
    %v545 = vadd.f32 %v542, 1.0
    %v546 = vlog2.pop %v545
    %v547 = vmul.f32 %v546, 0.6931472
    %v548 = vmul.f32 -0.5, %v542
    %v549 = vadd.f32 %v548, 1.0
    %v550 = vmul.f32 %v549, %v542
    %v551 = vand.u32 2147483647, %v542
    %vm552 = vcmp.lt.f32.partialorder %v551, 0.0004427343
    %v553 = vsel %vm552, %v550, %v547
    %v554 = vadd.f32 %v544, 1.0
    %v555 = vlog2.pop %v554
    %v556 = vmul.f32 %v555, 0.6931472
    %v557 = vmul.f32 -0.5, %v544
    %v558 = vadd.f32 %v557, 1.0
    %v559 = vmul.f32 %v558, %v544
    %v560 = vand.u32 2147483647, %v544
    %vm561 = vcmp.lt.f32.partialorder %v560, 0.0004427343
    %v562 = vsel %vm561, %v559, %v556
    %v563 = vadd.f32 %v531, %v553
    %v564 = vadd.f32 %v532, %v562
    %v565 = vsel %vm533, %v535, %v563
    %v566 = vsel %vm534, %v536, %v564
    %v567 = vld [vmem:[%s19] sm:$0xff]
    %v568 = vld [vmem:[%s19 + $0x8] sm:$0xff]
    %v569 = vlaneseq
    %v570 = vshrl.u32 %v569, 7
    %v571 = vsub.s32 0, %v570
    %v572 = vrot.slane %v565, %v571
    %574 = vbcast.lane.b32.xlu0 %v572, 256
    %v575 = vpop.permute.xlu0 %574
    %s577 = sor.u32 256, 8
    %578 = vbcast.lane.b32.xlu0 %v572, %s577
    %v579 = vpop.permute.xlu0 %578
    %v580 = vlaneseq
    %v581 = vshrl.u32 %v580, 7
    %v582 = vsub.s32 0, %v581
    %v583 = vrot.slane %v566, %v582
    %585 = vbcast.lane.b32.xlu0 %v583, 256
    %v586 = vpop.permute.xlu0 %585
    %s588 = sor.u32 256, 8
    %589 = vbcast.lane.b32.xlu0 %v583, %s588
    %v590 = vpop.permute.xlu0 %589
    %v591 = vmul.f32 %v575, %v567
    %v592 = vmul.f32 %v579, %v568
    %v593 = vmul.f32 %v586, %v567
    %v594 = vmul.f32 %v590, %v568
    %v595 = vmul.f32 %v591, 1.442695
    %v596 = vpow.pop %v595
    %v597 = vmul.f32 %v592, 1.442695
    %v598 = vpow.pop %v597
    %v599 = vmul.f32 %v593, 1.442695
    %v600 = vpow.pop %v599
    %v601 = vmul.f32 %v594, 1.442695
    %v602 = vpow.pop %v601
    %v603 = vlaneseq
    %v604 = vshrl.u32 %v603, 7
    %v605 = vsub.s32 0, %v604
    %v606 = vrot.slane %v439, %v605
    %v607 = vlaneseq
    %v608 = vshrl.u32 %v607, 7
    %v609 = vsub.s32 0, %v608
    %v610 = vrot.slane %v444, %v609
    %v611 = vmul.f32 %v575, %v606
    %v612 = vmul.f32 %v579, %v606
    %v613 = vmul.f32 %v586, %v610
    %v614 = vmul.f32 %v590, %v610
    %v615 = vlaneseq
    %v616 = vshrl.u32 %v615, 7
    %v617 = vsub.s32 0, %v616
    %v618 = vrot.slane %v361, %v617
    %620 = vbcast.lane.b32.xlu0 %v618, 256
    %v621 = vpop.permute.xlu0 %620
    %s623 = sor.u32 256, 8
    %624 = vbcast.lane.b32.xlu0 %v618, %s623
    %v625 = vpop.permute.xlu0 %624
    %v626 = vlaneseq
    %v627 = vshrl.u32 %v626, 7
    %v628 = vsub.s32 0, %v627
    %v629 = vrot.slane %v362, %v628
    %631 = vbcast.lane.b32.xlu0 %v629, 256
    %v632 = vpop.permute.xlu0 %631
    %s634 = sor.u32 256, 8
    %635 = vbcast.lane.b32.xlu0 %v629, %s634
    %v636 = vpop.permute.xlu0 %635
    %v637 = vmul.f32 %v611, %v621
    %v638 = vmul.f32 %v612, %v625
    %v639 = vmul.f32 %v613, %v632
    %v640 = vmul.f32 %v614, %v636
    %v641 = vmul.f32 %v596, 0.0
    %v642 = vmul.f32 %v598, 0.0
    %v643 = vmul.f32 %v600, 0.0
    %v644 = vmul.f32 %v602, 0.0
    %v645 = vadd.f32 %v641, %v637
    %v646 = vadd.f32 %v642, %v638
    %v647 = vadd.f32 %v643, %v639
    %v648 = vadd.f32 %v644, %v640
    %651 = vrot.lane.b32.xlu0 %v606, 112
    %v652 = vpop.permute.xlu0 %651
    %653 = vrot.lane.b32.xlu0 %v610, 112
    %v654 = vpop.permute.xlu0 %653
    %v657 = vmul.f32 %v645, %v652
    %v658 = vmul.f32 %v646, %v652
    %v659 = vmul.f32 %v647, %v654
    %v660 = vmul.f32 %v648, %v654
    %v661 = vsel %vm365, %v657, 0.0
    %662 = vadd.xlane.f32.xlu0 %v661
    %v663 = vpop.xlane.xlu0 %662
    %v664 = vsel %vm365, %v658, 0.0
    %665 = vadd.xlane.f32.xlu0 %v664
    %v666 = vpop.xlane.xlu0 %665
    %v667 = vsel %vm365, %v659, 0.0
    %668 = vadd.xlane.f32.xlu0 %v667
    %v669 = vpop.xlane.xlu0 %668
    %v670 = vsel %vm365, %v660, 0.0
    %671 = vadd.xlane.f32.xlu0 %v670
    %v672 = vpop.xlane.xlu0 %671
    %v673 = vlaneseq
    %v674 = vshrl.u32 %v673, 7
    %v675 = vsub.s32 1, %v674
    %v676 = vrot.slane %v565, %v675
    %678 = vbcast.lane.b32.xlu0 %v676, 256
    %v679 = vpop.permute.xlu0 %678
    %s681 = sor.u32 256, 8
    %682 = vbcast.lane.b32.xlu0 %v676, %s681
    %v683 = vpop.permute.xlu0 %682
    %v684 = vlaneseq
    %v685 = vshrl.u32 %v684, 7
    %v686 = vsub.s32 1, %v685
    %v687 = vrot.slane %v566, %v686
    %689 = vbcast.lane.b32.xlu0 %v687, 256
    %v690 = vpop.permute.xlu0 %689
    %s692 = sor.u32 256, 8
    %693 = vbcast.lane.b32.xlu0 %v687, %s692
    %v694 = vpop.permute.xlu0 %693
    %v695 = vmul.f32 %v679, %v567
    %v696 = vmul.f32 %v683, %v568
    %v697 = vmul.f32 %v690, %v567
    %v698 = vmul.f32 %v694, %v568
    %v699 = vmul.f32 %v695, 1.442695
    %v700 = vpow.pop %v699
    %v701 = vmul.f32 %v696, 1.442695
    %v702 = vpow.pop %v701
    %v703 = vmul.f32 %v697, 1.442695
    %v704 = vpow.pop %v703
    %v705 = vmul.f32 %v698, 1.442695
    %v706 = vpow.pop %v705
    %v707 = vlaneseq
    %v708 = vshrl.u32 %v707, 7
    %v709 = vsub.s32 1, %v708
    %v710 = vrot.slane %v439, %v709
    %v711 = vlaneseq
    %v712 = vshrl.u32 %v711, 7
    %v713 = vsub.s32 1, %v712
    %v714 = vrot.slane %v444, %v713
    %v715 = vmul.f32 %v679, %v710
    %v716 = vmul.f32 %v683, %v710
    %v717 = vmul.f32 %v690, %v714
    %v718 = vmul.f32 %v694, %v714
    %v719 = vlaneseq
    %v720 = vshrl.u32 %v719, 7
    %v721 = vsub.s32 1, %v720
    %v722 = vrot.slane %v361, %v721
    %724 = vbcast.lane.b32.xlu0 %v722, 256
    %v725 = vpop.permute.xlu0 %724
    %s727 = sor.u32 256, 8
    %728 = vbcast.lane.b32.xlu0 %v722, %s727
    %v729 = vpop.permute.xlu0 %728
    %v730 = vlaneseq
    %v731 = vshrl.u32 %v730, 7
    %v732 = vsub.s32 1, %v731
    %v733 = vrot.slane %v362, %v732
    %735 = vbcast.lane.b32.xlu0 %v733, 256
    %v736 = vpop.permute.xlu0 %735
    %s738 = sor.u32 256, 8
    %739 = vbcast.lane.b32.xlu0 %v733, %s738
    %v740 = vpop.permute.xlu0 %739
    %v741 = vmul.f32 %v715, %v725
    %v742 = vmul.f32 %v716, %v729
    %v743 = vmul.f32 %v717, %v736
    %v744 = vmul.f32 %v718, %v740
    %v745 = vmul.f32 %v700, %v645
    %v746 = vmul.f32 %v702, %v646
    %v747 = vmul.f32 %v704, %v647
    %v748 = vmul.f32 %v706, %v648
    %v749 = vadd.f32 %v745, %v741
    %v750 = vadd.f32 %v746, %v742
    %v751 = vadd.f32 %v747, %v743
    %v752 = vadd.f32 %v748, %v744
    %755 = vrot.lane.b32.xlu0 %v710, 112
    %v756 = vpop.permute.xlu0 %755
    %757 = vrot.lane.b32.xlu0 %v714, 112
    %v758 = vpop.permute.xlu0 %757
    %v761 = vmul.f32 %v749, %v756
    %v762 = vmul.f32 %v750, %v756
    %v763 = vmul.f32 %v751, %v758
    %v764 = vmul.f32 %v752, %v758
    %v765 = vsel %vm365, %v761, 0.0
    %766 = vadd.xlane.f32.xlu0 %v765
    %v767 = vpop.xlane.xlu0 %766
    %v768 = vsel %vm365, %v762, 0.0
    %769 = vadd.xlane.f32.xlu0 %v768
    %v770 = vpop.xlane.xlu0 %769
    %v771 = vsel %vm365, %v763, 0.0
    %772 = vadd.xlane.f32.xlu0 %v771
    %v773 = vpop.xlane.xlu0 %772
    %v774 = vsel %vm365, %v764, 0.0
    %775 = vadd.xlane.f32.xlu0 %v774
    %v776 = vpop.xlane.xlu0 %775
    %v777 = vlaneseq
    %v778 = vshrl.u32 %v777, 7
    %v779 = vsub.s32 2, %v778
    %v780 = vrot.slane %v565, %v779
    %782 = vbcast.lane.b32.xlu0 %v780, 256
    %v783 = vpop.permute.xlu0 %782
    %s785 = sor.u32 256, 8
    %786 = vbcast.lane.b32.xlu0 %v780, %s785
    %v787 = vpop.permute.xlu0 %786
    %v788 = vlaneseq
    %v789 = vshrl.u32 %v788, 7
    %v790 = vsub.s32 2, %v789
    %v791 = vrot.slane %v566, %v790
    %793 = vbcast.lane.b32.xlu0 %v791, 256
    %v794 = vpop.permute.xlu0 %793
    %s796 = sor.u32 256, 8
    %797 = vbcast.lane.b32.xlu0 %v791, %s796
    %v798 = vpop.permute.xlu0 %797
    %v799 = vmul.f32 %v783, %v567
    %v800 = vmul.f32 %v787, %v568
    %v801 = vmul.f32 %v794, %v567
    %v802 = vmul.f32 %v798, %v568
    %v803 = vmul.f32 %v799, 1.442695
    %v804 = vpow.pop %v803
    %v805 = vmul.f32 %v800, 1.442695
    %v806 = vpow.pop %v805
    %v807 = vmul.f32 %v801, 1.442695
    %v808 = vpow.pop %v807
    %v809 = vmul.f32 %v802, 1.442695
    %v810 = vpow.pop %v809
    %v811 = vlaneseq
    %v812 = vshrl.u32 %v811, 7
    %v813 = vsub.s32 2, %v812
    %v814 = vrot.slane %v439, %v813
    %v815 = vlaneseq
    %v816 = vshrl.u32 %v815, 7
    %v817 = vsub.s32 2, %v816
    %v818 = vrot.slane %v444, %v817
    %v819 = vmul.f32 %v783, %v814
    %v820 = vmul.f32 %v787, %v814
    %v821 = vmul.f32 %v794, %v818
    %v822 = vmul.f32 %v798, %v818
    %v823 = vlaneseq
    %v824 = vshrl.u32 %v823, 7
    %v825 = vsub.s32 2, %v824
    %v826 = vrot.slane %v361, %v825
    %828 = vbcast.lane.b32.xlu0 %v826, 256
    %v829 = vpop.permute.xlu0 %828
    %s831 = sor.u32 256, 8
    %832 = vbcast.lane.b32.xlu0 %v826, %s831
    %v833 = vpop.permute.xlu0 %832
    %v834 = vlaneseq
    %v835 = vshrl.u32 %v834, 7
    %v836 = vsub.s32 2, %v835
    %v837 = vrot.slane %v362, %v836
    %839 = vbcast.lane.b32.xlu0 %v837, 256
    %v840 = vpop.permute.xlu0 %839
    %s842 = sor.u32 256, 8
    %843 = vbcast.lane.b32.xlu0 %v837, %s842
    %v844 = vpop.permute.xlu0 %843
    %v845 = vmul.f32 %v819, %v829
    %v846 = vmul.f32 %v820, %v833
    %v847 = vmul.f32 %v821, %v840
    %v848 = vmul.f32 %v822, %v844
    %v849 = vmul.f32 %v804, %v749
    %v850 = vmul.f32 %v806, %v750
    %v851 = vmul.f32 %v808, %v751
    %v852 = vmul.f32 %v810, %v752
    %v853 = vadd.f32 %v849, %v845
    %v854 = vadd.f32 %v850, %v846
    %v855 = vadd.f32 %v851, %v847
    %v856 = vadd.f32 %v852, %v848
    %859 = vrot.lane.b32.xlu0 %v814, 112
    %v860 = vpop.permute.xlu0 %859
    %861 = vrot.lane.b32.xlu0 %v818, 112
    %v862 = vpop.permute.xlu0 %861
    %v865 = vmul.f32 %v853, %v860
    %v866 = vmul.f32 %v854, %v860
    %v867 = vmul.f32 %v855, %v862
    %v868 = vmul.f32 %v856, %v862
    %v869 = vsel %vm365, %v865, 0.0
    %870 = vadd.xlane.f32.xlu0 %v869
    %v871 = vpop.xlane.xlu0 %870
    %v872 = vsel %vm365, %v866, 0.0
    %873 = vadd.xlane.f32.xlu0 %v872
    %v874 = vpop.xlane.xlu0 %873
    %v875 = vsel %vm365, %v867, 0.0
    %876 = vadd.xlane.f32.xlu0 %v875
    %v877 = vpop.xlane.xlu0 %876
    %v878 = vsel %vm365, %v868, 0.0
    %879 = vadd.xlane.f32.xlu0 %v878
    %v880 = vpop.xlane.xlu0 %879
    %v881 = vlaneseq
    %v882 = vshrl.u32 %v881, 7
    %v883 = vsub.s32 3, %v882
    %v884 = vrot.slane %v565, %v883
    %886 = vbcast.lane.b32.xlu0 %v884, 256
    %v887 = vpop.permute.xlu0 %886
    %s889 = sor.u32 256, 8
    %890 = vbcast.lane.b32.xlu0 %v884, %s889
    %v891 = vpop.permute.xlu0 %890
    %v892 = vlaneseq
    %v893 = vshrl.u32 %v892, 7
    %v894 = vsub.s32 3, %v893
    %v895 = vrot.slane %v566, %v894
    %897 = vbcast.lane.b32.xlu0 %v895, 256
    %v898 = vpop.permute.xlu0 %897
    %s900 = sor.u32 256, 8
    %901 = vbcast.lane.b32.xlu0 %v895, %s900
    %v902 = vpop.permute.xlu0 %901
    %v903 = vmul.f32 %v887, %v567
    %v904 = vmul.f32 %v891, %v568
    %v905 = vmul.f32 %v898, %v567
    %v906 = vmul.f32 %v902, %v568
    %v907 = vmul.f32 %v903, 1.442695
    %v908 = vpow.pop %v907
    %v909 = vmul.f32 %v904, 1.442695
    %v910 = vpow.pop %v909
    %v911 = vmul.f32 %v905, 1.442695
    %v912 = vpow.pop %v911
    %v913 = vmul.f32 %v906, 1.442695
    %v914 = vpow.pop %v913
    %v915 = vlaneseq
    %v916 = vshrl.u32 %v915, 7
    %v917 = vsub.s32 3, %v916
    %v918 = vrot.slane %v439, %v917
    %v919 = vlaneseq
    %v920 = vshrl.u32 %v919, 7
    %v921 = vsub.s32 3, %v920
    %v922 = vrot.slane %v444, %v921
    %v923 = vmul.f32 %v887, %v918
    %v924 = vmul.f32 %v891, %v918
    %v925 = vmul.f32 %v898, %v922
    %v926 = vmul.f32 %v902, %v922
    %v927 = vlaneseq
    %v928 = vshrl.u32 %v927, 7
    %v929 = vsub.s32 3, %v928
    %v930 = vrot.slane %v361, %v929
    %932 = vbcast.lane.b32.xlu0 %v930, 256
    %v933 = vpop.permute.xlu0 %932
    %s935 = sor.u32 256, 8
    %936 = vbcast.lane.b32.xlu0 %v930, %s935
    %v937 = vpop.permute.xlu0 %936
    %v938 = vlaneseq
    %v939 = vshrl.u32 %v938, 7
    %v940 = vsub.s32 3, %v939
    %v941 = vrot.slane %v362, %v940
    %943 = vbcast.lane.b32.xlu0 %v941, 256
    %v944 = vpop.permute.xlu0 %943
    %s946 = sor.u32 256, 8
    %947 = vbcast.lane.b32.xlu0 %v941, %s946
    %v948 = vpop.permute.xlu0 %947
    %v949 = vmul.f32 %v923, %v933
    %v950 = vmul.f32 %v924, %v937
    %v951 = vmul.f32 %v925, %v944
    %v952 = vmul.f32 %v926, %v948
    %v953 = vmul.f32 %v908, %v853
    %v954 = vmul.f32 %v910, %v854
    %v955 = vmul.f32 %v912, %v855
    %v956 = vmul.f32 %v914, %v856
    %v957 = vadd.f32 %v953, %v949
    %v958 = vadd.f32 %v954, %v950
    %v959 = vadd.f32 %v955, %v951
    %v960 = vadd.f32 %v956, %v952
    %963 = vrot.lane.b32.xlu0 %v918, 112
    %v964 = vpop.permute.xlu0 %963
    %965 = vrot.lane.b32.xlu0 %v922, 112
    %v966 = vpop.permute.xlu0 %965
    %v969 = vmul.f32 %v957, %v964
    %v970 = vmul.f32 %v958, %v964
    %v971 = vmul.f32 %v959, %v966
    %v972 = vmul.f32 %v960, %v966
    %v973 = vsel %vm365, %v969, 0.0
    %974 = vadd.xlane.f32.xlu0 %v973
    %v975 = vpop.xlane.xlu0 %974
    %v976 = vsel %vm365, %v970, 0.0
    %977 = vadd.xlane.f32.xlu0 %v976
    %v978 = vpop.xlane.xlu0 %977
    %v979 = vsel %vm365, %v971, 0.0
    %980 = vadd.xlane.f32.xlu0 %v979
    %v981 = vpop.xlane.xlu0 %980
    %v982 = vsel %vm365, %v972, 0.0
    %983 = vadd.xlane.f32.xlu0 %v982
    %v984 = vpop.xlane.xlu0 %983
    %v985 = vlaneseq
    %v986 = vshrl.u32 %v985, 7
    %v987 = vsub.s32 4, %v986
    %v988 = vrot.slane %v565, %v987
    %990 = vbcast.lane.b32.xlu0 %v988, 256
    %v991 = vpop.permute.xlu0 %990
    %s993 = sor.u32 256, 8
    %994 = vbcast.lane.b32.xlu0 %v988, %s993
    %v995 = vpop.permute.xlu0 %994
    %v996 = vlaneseq
    %v997 = vshrl.u32 %v996, 7
    %v998 = vsub.s32 4, %v997
    %v999 = vrot.slane %v566, %v998
    %1001 = vbcast.lane.b32.xlu0 %v999, 256
    %v1002 = vpop.permute.xlu0 %1001
    %s1004 = sor.u32 256, 8
    %1005 = vbcast.lane.b32.xlu0 %v999, %s1004
    %v1006 = vpop.permute.xlu0 %1005
    %v1007 = vmul.f32 %v991, %v567
    %v1008 = vmul.f32 %v995, %v568
    %v1009 = vmul.f32 %v1002, %v567
    %v1010 = vmul.f32 %v1006, %v568
    %v1011 = vmul.f32 %v1007, 1.442695
    %v1012 = vpow.pop %v1011
    %v1013 = vmul.f32 %v1008, 1.442695
    %v1014 = vpow.pop %v1013
    %v1015 = vmul.f32 %v1009, 1.442695
    %v1016 = vpow.pop %v1015
    %v1017 = vmul.f32 %v1010, 1.442695
    %v1018 = vpow.pop %v1017
    %v1019 = vlaneseq
    %v1020 = vshrl.u32 %v1019, 7
    %v1021 = vsub.s32 4, %v1020
    %v1022 = vrot.slane %v439, %v1021
    %v1023 = vlaneseq
    %v1024 = vshrl.u32 %v1023, 7
    %v1025 = vsub.s32 4, %v1024
    %v1026 = vrot.slane %v444, %v1025
    %v1027 = vmul.f32 %v991, %v1022
    %v1028 = vmul.f32 %v995, %v1022
    %v1029 = vmul.f32 %v1002, %v1026
    %v1030 = vmul.f32 %v1006, %v1026
    %v1031 = vlaneseq
    %v1032 = vshrl.u32 %v1031, 7
    %v1033 = vsub.s32 4, %v1032
    %v1034 = vrot.slane %v361, %v1033
    %1036 = vbcast.lane.b32.xlu0 %v1034, 256
    %v1037 = vpop.permute.xlu0 %1036
    %s1039 = sor.u32 256, 8
    %1040 = vbcast.lane.b32.xlu0 %v1034, %s1039
    %v1041 = vpop.permute.xlu0 %1040
    %v1042 = vlaneseq
    %v1043 = vshrl.u32 %v1042, 7
    %v1044 = vsub.s32 4, %v1043
    %v1045 = vrot.slane %v362, %v1044
    %1047 = vbcast.lane.b32.xlu0 %v1045, 256
    %v1048 = vpop.permute.xlu0 %1047
    %s1050 = sor.u32 256, 8
    %1051 = vbcast.lane.b32.xlu0 %v1045, %s1050
    %v1052 = vpop.permute.xlu0 %1051
    %v1053 = vmul.f32 %v1027, %v1037
    %v1054 = vmul.f32 %v1028, %v1041
    %v1055 = vmul.f32 %v1029, %v1048
    %v1056 = vmul.f32 %v1030, %v1052
    %v1057 = vmul.f32 %v1012, %v957
    %v1058 = vmul.f32 %v1014, %v958
    %v1059 = vmul.f32 %v1016, %v959
    %v1060 = vmul.f32 %v1018, %v960
    %v1061 = vadd.f32 %v1057, %v1053
    %v1062 = vadd.f32 %v1058, %v1054
    %v1063 = vadd.f32 %v1059, %v1055
    %v1064 = vadd.f32 %v1060, %v1056
    %1067 = vrot.lane.b32.xlu0 %v1022, 112
    %v1068 = vpop.permute.xlu0 %1067
    %1069 = vrot.lane.b32.xlu0 %v1026, 112
    %v1070 = vpop.permute.xlu0 %1069
    %v1073 = vmul.f32 %v1061, %v1068
    %v1074 = vmul.f32 %v1062, %v1068
    %v1075 = vmul.f32 %v1063, %v1070
    %v1076 = vmul.f32 %v1064, %v1070
    %v1077 = vsel %vm365, %v1073, 0.0
    %1078 = vadd.xlane.f32.xlu0 %v1077
    %v1079 = vpop.xlane.xlu0 %1078
    %v1080 = vsel %vm365, %v1074, 0.0
    %1081 = vadd.xlane.f32.xlu0 %v1080
    %v1082 = vpop.xlane.xlu0 %1081
    %v1083 = vsel %vm365, %v1075, 0.0
    %1084 = vadd.xlane.f32.xlu0 %v1083
    %v1085 = vpop.xlane.xlu0 %1084
    %v1086 = vsel %vm365, %v1076, 0.0
    %1087 = vadd.xlane.f32.xlu0 %v1086
    %v1088 = vpop.xlane.xlu0 %1087
    %v1089 = vlaneseq
    %v1090 = vshrl.u32 %v1089, 7
    %v1091 = vsub.s32 5, %v1090
    %v1092 = vrot.slane %v565, %v1091
    %1094 = vbcast.lane.b32.xlu0 %v1092, 256
    %v1095 = vpop.permute.xlu0 %1094
    %s1097 = sor.u32 256, 8
    %1098 = vbcast.lane.b32.xlu0 %v1092, %s1097
    %v1099 = vpop.permute.xlu0 %1098
    %v1100 = vlaneseq
    %v1101 = vshrl.u32 %v1100, 7
    %v1102 = vsub.s32 5, %v1101
    %v1103 = vrot.slane %v566, %v1102
    %1105 = vbcast.lane.b32.xlu0 %v1103, 256
    %v1106 = vpop.permute.xlu0 %1105
    %s1108 = sor.u32 256, 8
    %1109 = vbcast.lane.b32.xlu0 %v1103, %s1108
    %v1110 = vpop.permute.xlu0 %1109
    %v1111 = vmul.f32 %v1095, %v567
    %v1112 = vmul.f32 %v1099, %v568
    %v1113 = vmul.f32 %v1106, %v567
    %v1114 = vmul.f32 %v1110, %v568
    %v1115 = vmul.f32 %v1111, 1.442695
    %v1116 = vpow.pop %v1115
    %v1117 = vmul.f32 %v1112, 1.442695
    %v1118 = vpow.pop %v1117
    %v1119 = vmul.f32 %v1113, 1.442695
    %v1120 = vpow.pop %v1119
    %v1121 = vmul.f32 %v1114, 1.442695
    %v1122 = vpow.pop %v1121
    %v1123 = vlaneseq
    %v1124 = vshrl.u32 %v1123, 7
    %v1125 = vsub.s32 5, %v1124
    %v1126 = vrot.slane %v439, %v1125
    %v1127 = vlaneseq
    %v1128 = vshrl.u32 %v1127, 7
    %v1129 = vsub.s32 5, %v1128
    %v1130 = vrot.slane %v444, %v1129
    %v1131 = vmul.f32 %v1095, %v1126
    %v1132 = vmul.f32 %v1099, %v1126
    %v1133 = vmul.f32 %v1106, %v1130
    %v1134 = vmul.f32 %v1110, %v1130
    %v1135 = vlaneseq
    %v1136 = vshrl.u32 %v1135, 7
    %v1137 = vsub.s32 5, %v1136
    %v1138 = vrot.slane %v361, %v1137
    %1140 = vbcast.lane.b32.xlu0 %v1138, 256
    %v1141 = vpop.permute.xlu0 %1140
    %s1143 = sor.u32 256, 8
    %1144 = vbcast.lane.b32.xlu0 %v1138, %s1143
    %v1145 = vpop.permute.xlu0 %1144
    %v1146 = vlaneseq
    %v1147 = vshrl.u32 %v1146, 7
    %v1148 = vsub.s32 5, %v1147
    %v1149 = vrot.slane %v362, %v1148
    %1151 = vbcast.lane.b32.xlu0 %v1149, 256
    %v1152 = vpop.permute.xlu0 %1151
    %s1154 = sor.u32 256, 8
    %1155 = vbcast.lane.b32.xlu0 %v1149, %s1154
    %v1156 = vpop.permute.xlu0 %1155
    %v1157 = vmul.f32 %v1131, %v1141
    %v1158 = vmul.f32 %v1132, %v1145
    %v1159 = vmul.f32 %v1133, %v1152
    %v1160 = vmul.f32 %v1134, %v1156
    %v1161 = vmul.f32 %v1116, %v1061
    %v1162 = vmul.f32 %v1118, %v1062
    %v1163 = vmul.f32 %v1120, %v1063
    %v1164 = vmul.f32 %v1122, %v1064
    %v1165 = vadd.f32 %v1161, %v1157
    %v1166 = vadd.f32 %v1162, %v1158
    %v1167 = vadd.f32 %v1163, %v1159
    %v1168 = vadd.f32 %v1164, %v1160
    %1171 = vrot.lane.b32.xlu0 %v1126, 112
    %v1172 = vpop.permute.xlu0 %1171
    %1173 = vrot.lane.b32.xlu0 %v1130, 112
    %v1174 = vpop.permute.xlu0 %1173
    %v1177 = vmul.f32 %v1165, %v1172
    %v1178 = vmul.f32 %v1166, %v1172
    %v1179 = vmul.f32 %v1167, %v1174
    %v1180 = vmul.f32 %v1168, %v1174
    %v1181 = vsel %vm365, %v1177, 0.0
    %1182 = vadd.xlane.f32.xlu0 %v1181
    %v1183 = vpop.xlane.xlu0 %1182
    %v1184 = vsel %vm365, %v1178, 0.0
    %1185 = vadd.xlane.f32.xlu0 %v1184
    %v1186 = vpop.xlane.xlu0 %1185
    %v1187 = vsel %vm365, %v1179, 0.0
    %1188 = vadd.xlane.f32.xlu0 %v1187
    %v1189 = vpop.xlane.xlu0 %1188
    %v1190 = vsel %vm365, %v1180, 0.0
    %1191 = vadd.xlane.f32.xlu0 %v1190
    %v1192 = vpop.xlane.xlu0 %1191
    %v1193 = vlaneseq
    %v1194 = vshrl.u32 %v1193, 7
    %v1195 = vsub.s32 6, %v1194
    %v1196 = vrot.slane %v565, %v1195
    %1198 = vbcast.lane.b32.xlu0 %v1196, 256
    %v1199 = vpop.permute.xlu0 %1198
    %s1201 = sor.u32 256, 8
    %1202 = vbcast.lane.b32.xlu0 %v1196, %s1201
    %v1203 = vpop.permute.xlu0 %1202
    %v1204 = vlaneseq
    %v1205 = vshrl.u32 %v1204, 7
    %v1206 = vsub.s32 6, %v1205
    %v1207 = vrot.slane %v566, %v1206
    %1209 = vbcast.lane.b32.xlu0 %v1207, 256
    %v1210 = vpop.permute.xlu0 %1209
    %s1212 = sor.u32 256, 8
    %1213 = vbcast.lane.b32.xlu0 %v1207, %s1212
    %v1214 = vpop.permute.xlu0 %1213
    %v1215 = vmul.f32 %v1199, %v567
    %v1216 = vmul.f32 %v1203, %v568
    %v1217 = vmul.f32 %v1210, %v567
    %v1218 = vmul.f32 %v1214, %v568
    %v1219 = vmul.f32 %v1215, 1.442695
    %v1220 = vpow.pop %v1219
    %v1221 = vmul.f32 %v1216, 1.442695
    %v1222 = vpow.pop %v1221
    %v1223 = vmul.f32 %v1217, 1.442695
    %v1224 = vpow.pop %v1223
    %v1225 = vmul.f32 %v1218, 1.442695
    %v1226 = vpow.pop %v1225
    %v1227 = vlaneseq
    %v1228 = vshrl.u32 %v1227, 7
    %v1229 = vsub.s32 6, %v1228
    %v1230 = vrot.slane %v439, %v1229
    %v1231 = vlaneseq
    %v1232 = vshrl.u32 %v1231, 7
    %v1233 = vsub.s32 6, %v1232
    %v1234 = vrot.slane %v444, %v1233
    %v1235 = vmul.f32 %v1199, %v1230
    %v1236 = vmul.f32 %v1203, %v1230
    %v1237 = vmul.f32 %v1210, %v1234
    %v1238 = vmul.f32 %v1214, %v1234
    %v1239 = vlaneseq
    %v1240 = vshrl.u32 %v1239, 7
    %v1241 = vsub.s32 6, %v1240
    %v1242 = vrot.slane %v361, %v1241
    %1244 = vbcast.lane.b32.xlu0 %v1242, 256
    %v1245 = vpop.permute.xlu0 %1244
    %s1247 = sor.u32 256, 8
    %1248 = vbcast.lane.b32.xlu0 %v1242, %s1247
    %v1249 = vpop.permute.xlu0 %1248
    %v1250 = vlaneseq
    %v1251 = vshrl.u32 %v1250, 7
    %v1252 = vsub.s32 6, %v1251
    %v1253 = vrot.slane %v362, %v1252
    %1255 = vbcast.lane.b32.xlu0 %v1253, 256
    %v1256 = vpop.permute.xlu0 %1255
    %s1258 = sor.u32 256, 8
    %1259 = vbcast.lane.b32.xlu0 %v1253, %s1258
    %v1260 = vpop.permute.xlu0 %1259
    %v1261 = vmul.f32 %v1235, %v1245
    %v1262 = vmul.f32 %v1236, %v1249
    %v1263 = vmul.f32 %v1237, %v1256
    %v1264 = vmul.f32 %v1238, %v1260
    %v1265 = vmul.f32 %v1220, %v1165
    %v1266 = vmul.f32 %v1222, %v1166
    %v1267 = vmul.f32 %v1224, %v1167
    %v1268 = vmul.f32 %v1226, %v1168
    %v1269 = vadd.f32 %v1265, %v1261
    %v1270 = vadd.f32 %v1266, %v1262
    %v1271 = vadd.f32 %v1267, %v1263
    %v1272 = vadd.f32 %v1268, %v1264
    %1275 = vrot.lane.b32.xlu0 %v1230, 112
    %v1276 = vpop.permute.xlu0 %1275
    %1277 = vrot.lane.b32.xlu0 %v1234, 112
    %v1278 = vpop.permute.xlu0 %1277
    %v1281 = vmul.f32 %v1269, %v1276
    %v1282 = vmul.f32 %v1270, %v1276
    %v1283 = vmul.f32 %v1271, %v1278
    %v1284 = vmul.f32 %v1272, %v1278
    %v1285 = vsel %vm365, %v1281, 0.0
    %1286 = vadd.xlane.f32.xlu0 %v1285
    %v1287 = vpop.xlane.xlu0 %1286
    %v1288 = vsel %vm365, %v1282, 0.0
    %1289 = vadd.xlane.f32.xlu0 %v1288
    %v1290 = vpop.xlane.xlu0 %1289
    %v1291 = vsel %vm365, %v1283, 0.0
    %1292 = vadd.xlane.f32.xlu0 %v1291
    %v1293 = vpop.xlane.xlu0 %1292
    %v1294 = vsel %vm365, %v1284, 0.0
    %1295 = vadd.xlane.f32.xlu0 %v1294
    %v1296 = vpop.xlane.xlu0 %1295
    %v1297 = vlaneseq
    %v1298 = vshrl.u32 %v1297, 7
    %v1299 = vsub.s32 7, %v1298
    %v1300 = vrot.slane %v565, %v1299
    %1302 = vbcast.lane.b32.xlu0 %v1300, 256
    %v1303 = vpop.permute.xlu0 %1302
    %s1305 = sor.u32 256, 8
    %1306 = vbcast.lane.b32.xlu0 %v1300, %s1305
    %v1307 = vpop.permute.xlu0 %1306
    %v1308 = vlaneseq
    %v1309 = vshrl.u32 %v1308, 7
    %v1310 = vsub.s32 7, %v1309
    %v1311 = vrot.slane %v566, %v1310
    %1313 = vbcast.lane.b32.xlu0 %v1311, 256
    %v1314 = vpop.permute.xlu0 %1313
    %s1316 = sor.u32 256, 8
    %1317 = vbcast.lane.b32.xlu0 %v1311, %s1316
    %v1318 = vpop.permute.xlu0 %1317
    %v1319 = vmul.f32 %v1303, %v567
    %v1320 = vmul.f32 %v1307, %v568
    %v1321 = vmul.f32 %v1314, %v567
    %v1322 = vmul.f32 %v1318, %v568
    %v1323 = vmul.f32 %v1319, 1.442695
    %v1324 = vpow.pop %v1323
    %v1325 = vmul.f32 %v1320, 1.442695
    %v1326 = vpow.pop %v1325
    %v1327 = vmul.f32 %v1321, 1.442695
    %v1328 = vpow.pop %v1327
    %v1329 = vmul.f32 %v1322, 1.442695
    %v1330 = vpow.pop %v1329
    %v1331 = vlaneseq
    %v1332 = vshrl.u32 %v1331, 7
    %v1333 = vsub.s32 7, %v1332
    %v1334 = vrot.slane %v439, %v1333
    %v1335 = vlaneseq
    %v1336 = vshrl.u32 %v1335, 7
    %v1337 = vsub.s32 7, %v1336
    %v1338 = vrot.slane %v444, %v1337
    %v1339 = vmul.f32 %v1303, %v1334
    %v1340 = vmul.f32 %v1307, %v1334
    %v1341 = vmul.f32 %v1314, %v1338
    %v1342 = vmul.f32 %v1318, %v1338
    %v1343 = vlaneseq
    %v1344 = vshrl.u32 %v1343, 7
    %v1345 = vsub.s32 7, %v1344
    %v1346 = vrot.slane %v361, %v1345
    %1348 = vbcast.lane.b32.xlu0 %v1346, 256
    %v1349 = vpop.permute.xlu0 %1348
    %s1351 = sor.u32 256, 8
    %1352 = vbcast.lane.b32.xlu0 %v1346, %s1351
    %v1353 = vpop.permute.xlu0 %1352
    %v1354 = vlaneseq
    %v1355 = vshrl.u32 %v1354, 7
    %v1356 = vsub.s32 7, %v1355
    %v1357 = vrot.slane %v362, %v1356
    %1359 = vbcast.lane.b32.xlu0 %v1357, 256
    %v1360 = vpop.permute.xlu0 %1359
    %s1362 = sor.u32 256, 8
    %1363 = vbcast.lane.b32.xlu0 %v1357, %s1362
    %v1364 = vpop.permute.xlu0 %1363
    %v1365 = vmul.f32 %v1339, %v1349
    %v1366 = vmul.f32 %v1340, %v1353
    %v1367 = vmul.f32 %v1341, %v1360
    %v1368 = vmul.f32 %v1342, %v1364
    %v1369 = vmul.f32 %v1324, %v1269
    %v1370 = vmul.f32 %v1326, %v1270
    %v1371 = vmul.f32 %v1328, %v1271
    %v1372 = vmul.f32 %v1330, %v1272
    %v1373 = vadd.f32 %v1369, %v1365
    %v1374 = vadd.f32 %v1370, %v1366
    %v1375 = vadd.f32 %v1371, %v1367
    %v1376 = vadd.f32 %v1372, %v1368
    %1379 = vrot.lane.b32.xlu0 %v1334, 112
    %v1380 = vpop.permute.xlu0 %1379
    %1381 = vrot.lane.b32.xlu0 %v1338, 112
    %v1382 = vpop.permute.xlu0 %1381
    %v1385 = vmul.f32 %v1373, %v1380
    %v1386 = vmul.f32 %v1374, %v1380
    %v1387 = vmul.f32 %v1375, %v1382
    %v1388 = vmul.f32 %v1376, %v1382
    %v1389 = vsel %vm365, %v1385, 0.0
    %1390 = vadd.xlane.f32.xlu0 %v1389
    %v1391 = vpop.xlane.xlu0 %1390
    %v1392 = vsel %vm365, %v1386, 0.0
    %1393 = vadd.xlane.f32.xlu0 %v1392
    %v1394 = vpop.xlane.xlu0 %1393
    %v1395 = vsel %vm365, %v1387, 0.0
    %1396 = vadd.xlane.f32.xlu0 %v1395
    %v1397 = vpop.xlane.xlu0 %1396
    %v1398 = vsel %vm365, %v1388, 0.0
    %1399 = vadd.xlane.f32.xlu0 %v1398
    %v1400 = vpop.xlane.xlu0 %1399
    %v1405 = vlaneseq
    %v1406 = vand.u32 %v1405, 127
    %v1407 = vlaneseq
    %v1408 = vshrl.u32 %v1407, 7
    %v1409 = vsub.s32 %v1406, %v1408
    %v1410 = vrot.slane %v663, %v1409
    %v1411 = vadd.s32 %v1406, 4294967288
    %v1412 = vlaneseq
    %v1413 = vshrl.u32 %v1412, 7
    %v1414 = vsub.s32 %v1411, %v1413
    %v1415 = vrot.slane %v666, %v1414
    %vm1416 = vcmask 130112
    %v1417 = vsel %vm1416, %v1415, %v1410
    %v1418 = vlaneseq
    %v1419 = vshrl.u32 %v1418, 7
    %v1420 = vsub.s32 %v1406, %v1419
    %v1421 = vrot.slane %v669, %v1420
    %v1422 = vlaneseq
    %v1423 = vshrl.u32 %v1422, 7
    %v1424 = vsub.s32 %v1411, %v1423
    %v1425 = vrot.slane %v672, %v1424
    %v1426 = vsel %vm1416, %v1425, %v1421
    %v1433 = vlaneseq
    %v1434 = vshrl.u32 %v1433, 7
    %v1435 = vsub.s32 %v1406, %v1434
    %v1436 = vrot.slane %v767, %v1435
    %v1437 = vlaneseq
    %v1438 = vshrl.u32 %v1437, 7
    %v1439 = vsub.s32 %v1411, %v1438
    %v1440 = vrot.slane %v770, %v1439
    %v1441 = vsel %vm1416, %v1440, %v1436
    %v1442 = vlaneseq
    %v1443 = vshrl.u32 %v1442, 7
    %v1444 = vsub.s32 %v1406, %v1443
    %v1445 = vrot.slane %v773, %v1444
    %v1446 = vlaneseq
    %v1447 = vshrl.u32 %v1446, 7
    %v1448 = vsub.s32 %v1411, %v1447
    %v1449 = vrot.slane %v776, %v1448
    %v1450 = vsel %vm1416, %v1449, %v1445
    %v1457 = vlaneseq
    %v1458 = vshrl.u32 %v1457, 7
    %v1459 = vsub.s32 %v1406, %v1458
    %v1460 = vrot.slane %v871, %v1459
    %v1461 = vlaneseq
    %v1462 = vshrl.u32 %v1461, 7
    %v1463 = vsub.s32 %v1411, %v1462
    %v1464 = vrot.slane %v874, %v1463
    %v1465 = vsel %vm1416, %v1464, %v1460
    %v1466 = vlaneseq
    %v1467 = vshrl.u32 %v1466, 7
    %v1468 = vsub.s32 %v1406, %v1467
    %v1469 = vrot.slane %v877, %v1468
    %v1470 = vlaneseq
    %v1471 = vshrl.u32 %v1470, 7
    %v1472 = vsub.s32 %v1411, %v1471
    %v1473 = vrot.slane %v880, %v1472
    %v1474 = vsel %vm1416, %v1473, %v1469
    %v1481 = vlaneseq
    %v1482 = vshrl.u32 %v1481, 7
    %v1483 = vsub.s32 %v1406, %v1482
    %v1484 = vrot.slane %v975, %v1483
    %v1485 = vlaneseq
    %v1486 = vshrl.u32 %v1485, 7
    %v1487 = vsub.s32 %v1411, %v1486
    %v1488 = vrot.slane %v978, %v1487
    %v1489 = vsel %vm1416, %v1488, %v1484
    %v1490 = vlaneseq
    %v1491 = vshrl.u32 %v1490, 7
    %v1492 = vsub.s32 %v1406, %v1491
    %v1493 = vrot.slane %v981, %v1492
    %v1494 = vlaneseq
    %v1495 = vshrl.u32 %v1494, 7
    %v1496 = vsub.s32 %v1411, %v1495
    %v1497 = vrot.slane %v984, %v1496
    %v1498 = vsel %vm1416, %v1497, %v1493
    %v1505 = vlaneseq
    %v1506 = vshrl.u32 %v1505, 7
    %v1507 = vsub.s32 %v1406, %v1506
    %v1508 = vrot.slane %v1079, %v1507
    %v1509 = vlaneseq
    %v1510 = vshrl.u32 %v1509, 7
    %v1511 = vsub.s32 %v1411, %v1510
    %v1512 = vrot.slane %v1082, %v1511
    %v1513 = vsel %vm1416, %v1512, %v1508
    %v1514 = vlaneseq
    %v1515 = vshrl.u32 %v1514, 7
    %v1516 = vsub.s32 %v1406, %v1515
    %v1517 = vrot.slane %v1085, %v1516
    %v1518 = vlaneseq
    %v1519 = vshrl.u32 %v1518, 7
    %v1520 = vsub.s32 %v1411, %v1519
    %v1521 = vrot.slane %v1088, %v1520
    %v1522 = vsel %vm1416, %v1521, %v1517
    %v1529 = vlaneseq
    %v1530 = vshrl.u32 %v1529, 7
    %v1531 = vsub.s32 %v1406, %v1530
    %v1532 = vrot.slane %v1183, %v1531
    %v1533 = vlaneseq
    %v1534 = vshrl.u32 %v1533, 7
    %v1535 = vsub.s32 %v1411, %v1534
    %v1536 = vrot.slane %v1186, %v1535
    %v1537 = vsel %vm1416, %v1536, %v1532
    %v1538 = vlaneseq
    %v1539 = vshrl.u32 %v1538, 7
    %v1540 = vsub.s32 %v1406, %v1539
    %v1541 = vrot.slane %v1189, %v1540
    %v1542 = vlaneseq
    %v1543 = vshrl.u32 %v1542, 7
    %v1544 = vsub.s32 %v1411, %v1543
    %v1545 = vrot.slane %v1192, %v1544
    %v1546 = vsel %vm1416, %v1545, %v1541
    %v1553 = vlaneseq
    %v1554 = vshrl.u32 %v1553, 7
    %v1555 = vsub.s32 %v1406, %v1554
    %v1556 = vrot.slane %v1287, %v1555
    %v1557 = vlaneseq
    %v1558 = vshrl.u32 %v1557, 7
    %v1559 = vsub.s32 %v1411, %v1558
    %v1560 = vrot.slane %v1290, %v1559
    %v1561 = vsel %vm1416, %v1560, %v1556
    %v1562 = vlaneseq
    %v1563 = vshrl.u32 %v1562, 7
    %v1564 = vsub.s32 %v1406, %v1563
    %v1565 = vrot.slane %v1293, %v1564
    %v1566 = vlaneseq
    %v1567 = vshrl.u32 %v1566, 7
    %v1568 = vsub.s32 %v1411, %v1567
    %v1569 = vrot.slane %v1296, %v1568
    %v1570 = vsel %vm1416, %v1569, %v1565
    %v1577 = vlaneseq
    %v1578 = vshrl.u32 %v1577, 7
    %v1579 = vsub.s32 %v1406, %v1578
    %v1580 = vrot.slane %v1391, %v1579
    %v1581 = vlaneseq
    %v1582 = vshrl.u32 %v1581, 7
    %v1583 = vsub.s32 %v1411, %v1582
    %v1584 = vrot.slane %v1394, %v1583
    %v1585 = vsel %vm1416, %v1584, %v1580
    %v1586 = vlaneseq
    %v1587 = vshrl.u32 %v1586, 7
    %v1588 = vsub.s32 %v1406, %v1587
    %v1589 = vrot.slane %v1397, %v1588
    %v1590 = vlaneseq
    %v1591 = vshrl.u32 %v1590, 7
    %v1592 = vsub.s32 %v1411, %v1591
    %v1593 = vrot.slane %v1400, %v1592
    %v1594 = vsel %vm1416, %v1593, %v1589
    %vm1597 = vcmask 1040384
    %v1598 = vsel %vm1597, %v1417, %v1441
    %v1599 = vsel %vm1597, %v1426, %v1450
    %vm1600 = vcmask 1041408
    %v1601 = vsel %vm1600, %v1598, %v1465
    %v1602 = vsel %vm1600, %v1599, %v1474
    %v1603 = vsel %vm261, %v1601, %v1489
    %v1604 = vsel %vm261, %v1602, %v1498
    %vm1605 = vcmask 1043456
    %v1606 = vsel %vm1605, %v1603, %v1513
    %v1607 = vsel %vm1605, %v1604, %v1522
    %v1608 = vsel %vm338, %v1606, %v1537
    %v1609 = vsel %vm338, %v1607, %v1546
    %v1610 = vsel %vm315, %v1608, %v1561
    %v1611 = vsel %vm315, %v1609, %v1570
    %v1612 = vsel %vm292, %v1610, %v1585
    %v1613 = vsel %vm292, %v1611, %v1594
    %v1614 = vld [vmem:[%s21] sm:$0x1]
    %v1616 = vlaneseq
    %v1617 = vshrl.u32 %v1616, 7
    %v1618 = vsub.s32 0, %v1617
    %v1619 = vrot.slane %v1614, %v1618
    %v1621 = vmul.f32 %v361, %v1619
    %v1622 = vmul.f32 %v362, %v1619
    %v1623 = vadd.f32 %v1612, %v1621
    %v1624 = vadd.f32 %v1613, %v1622
    %v1625 = vxor.u32 %v247, 2147483648
    %v1626 = vxor.u32 %v252, 2147483648
    %v1627 = vmul.f32 %v1625, 1.442695
    %v1628 = vpow.pop %v1627
    %v1629 = vmul.f32 %v1626, 1.442695
    %v1630 = vpow.pop %v1629
    %v1631 = vadd.f32 %v1628, 1.0
    %v1632 = vadd.f32 %v1630, 1.0
    %v1633 = vrcp.pop %v1631
    %v1634 = vmul.f32 1.0, %v1633
    %v1635 = vrcp.pop %v1632
    %v1636 = vmul.f32 1.0, %v1635
    %v1637 = vmul.f32 %v247, %v1634
    %v1638 = vmul.f32 %v252, %v1636
    %1641 = vrot.lane.b32.xlu0 %v1637, 112
    %v1642 = vpop.permute.xlu0 %1641
    %1643 = vrot.lane.b32.xlu0 %v1638, 112
    %v1644 = vpop.permute.xlu0 %1643
    %v1647 = vmul.f32 %v1623, %v1642
    %v1648 = vmul.f32 %v1624, %v1644
    %v1649 = vld [vmem:[%s23] sm:$0xff]
    %v1650 = vld [vmem:[%s23 + $0x8] sm:$0xff]
    %s1651 = sld [smem:[#allocation2]]
    %v1652 = vstv %s1651
    %v1653 = vmul.f32 %v1652, %v125
    %v1654 = vmul.f32 %v1652, %v126
    %v1656 = vsel %vm365, %v1647, 0
    %v1659 = vsel %vm365, %v1648, 0
    %1661 = vmatprep.subr.mxu0 0.0
    %1662 = vmatpush1.msra.mxu0 %v1649
    %1663 = vmatprep.subr.mxu0 0.0
    %1664 = vmatpush1.msra.mxu0 %v1650
    %1665 = vmatprep.subr.mxu0 0.0
    %1666 = vmatpush1.msra.mxu0 0.0
    %1667 = vmatprep.subr.mxu0 0.0
    %1668 = vmatpush1.msra.mxu0 0.0
    %1669 = vmatprep.subr.mxu0 0.0
    %1670 = vmatpush1.msra.mxu0 0.0
    %1671 = vmatprep.subr.mxu0 0.0
    %1672 = vmatpush1.msra.mxu0 0.0
    %1673 = vmatprep.subr.mxu0 0.0
    %1674 = vmatpush1.msra.mxu0 0.0
    %1675 = vmatprep.subr.mxu0 0.0
    %1676 = vmatpush1.msra.mxu0 0.0
    %1677 = vmatprep.subr.mxu0 0.0
    %1678 = vmatpush1.msra.mxu0 0.0
    %1679 = vmatprep.subr.mxu0 0.0
    %1680 = vmatpush1.msra.mxu0 0.0
    %1681 = vmatprep.subr.mxu0 0.0
    %1682 = vmatpush1.msra.mxu0 0.0
    %1683 = vmatprep.subr.mxu0 0.0
    %1684 = vmatpush1.msra.mxu0 0.0
    %1685 = vmatprep.subr.mxu0 0.0
    %1686 = vmatpush1.msra.mxu0 0.0
    %1687 = vmatprep.subr.mxu0 0.0
    %1688 = vmatpush1.msra.mxu0 0.0
    %1689 = vmatprep.subr.mxu0 0.0
    %1690 = vmatpush1.msra.mxu0 0.0
    %1691 = vmatprep.subr.mxu0 0.0
    %1692 = vmatpush1.msra.mxu0 0.0
    %1693 = vmatprep.subr.mxu0 0.0
    %1694 = vmatpush1.msra.mxu0 0.0
    %1695 = vmatprep.subr.mxu0 0.0
    %1696 = vmatpush1.msra.mxu0 0.0
    %1697 = vmatprep.subr.mxu0 0.0
    %1698 = vmatpush1.msra.mxu0 0.0
    %1699 = vmatprep.subr.mxu0 0.0
    %1700 = vmatpush1.msra.mxu0 0.0
    %1701 = vmatprep.subr.mxu0 0.0
    %1702 = vmatpush1.msra.mxu0 0.0
    %1703 = vmatprep.subr.mxu0 0.0
    %1704 = vmatpush1.msra.mxu0 0.0
    %1705 = vmatprep.subr.mxu0 0.0
    %1706 = vmatpush1.msra.mxu0 0.0
    %1707 = vmatprep.subr.mxu0 0.0
    %1708 = vmatpush1.msra.mxu0 0.0
    %1709 = vmatprep.subr.mxu0 0.0
    %1710 = vmatpush1.msra.mxu0 0.0
    %1711 = vmatprep.subr.mxu0 0.0
    %1712 = vmatpush1.msra.mxu0 0.0
    %1713 = vmatprep.subr.mxu0 0.0
    %1714 = vmatpush1.msra.mxu0 0.0
    %1715 = vmatprep.subr.mxu0 0.0
    %1716 = vmatpush1.msra.mxu0 0.0
    %1717 = vmatprep.subr.mxu0 0.0
    %1718 = vmatpush1.msra.mxu0 0.0
    %1719 = vmatprep.subr.mxu0 0.0
    %1720 = vmatpush1.msra.mxu0 0.0
    %1721 = vmatprep.subr.mxu0 0.0
    %1722 = vmatpush1.msra.mxu0 0.0
    %1723 = vmatprep.subr.mxu0 0.0
    %1724 = vmatpush1.msra.mxu0 0.0
    %1725 = vmatprep.mubr.f32.mxu0 0.0
    %1726 = vmatmul.mubr.f32.gmra.mrb[0].mxu0 %v1656
    %v1727 = vpop.f32.mrb[0].mxu0
    %v1728 = vadd.f32 %v1653, %v1727
    %v1729 = vpop.f32.mrb[0].mxu0
    %1730 = vmatprep.mubr.f32.mxu0 0.0
    %1731 = vmatmul.mubr.f32.gmra.mrb[0].mxu0 %v1659
    %v1732 = vpop.f32.mrb[0].mxu0
    %v1733 = vadd.f32 %v1654, %v1732
    %v1734 = vpop.f32.mrb[0].mxu0
    %1735 = vdwg.mxu0
    %v1736 = vsel %vm129, %v1728, 0.0
    %1737 = vadd.xlane.f32.xlu0 %v1736
    %v1738 = vpop.xlane.xlu0 %1737
    %v1739 = vsel %vm129, %v1733, 0.0
    %1740 = vadd.xlane.f32.xlu0 %v1739
    %v1741 = vpop.xlane.xlu0 %1740
    %v1742 = vmul.f32 %v1738, %v136
    %v1743 = vmul.f32 %v1741, %v136
    %v1744 = vsub.f32 %v1728, %v1742
    %v1745 = vsub.f32 %v1733, %v1743
    %v1746 = vmul.f32 %v1744, %v1744
    %v1747 = vmul.f32 %v1745, %v1745
    %v1748 = vsel %vm129, %v1746, 0.0
    %1749 = vadd.xlane.f32.xlu0 %v1748
    %v1750 = vpop.xlane.xlu0 %1749
    %v1751 = vsel %vm129, %v1747, 0.0
    %1752 = vadd.xlane.f32.xlu0 %v1751
    %v1753 = vpop.xlane.xlu0 %1752
    %v1754 = vmul.f32 %v1750, %v136
    %v1755 = vmul.f32 %v1753, %v136
    %v1756 = vadd.f32 %v1754, 1e-05
    %v1757 = vadd.f32 %v1755, 1e-05
    %v1758 = vrsqrt.pop %v1756
    %v1759 = vrsqrt.pop %v1757
    %v1760 = vmul.f32 %v1744, %v1758
    %v1761 = vmul.f32 %v1745, %v1759
    %v1762 = vmul.f32 %v1760, %v161
    %v1763 = vmul.f32 %v1761, %v161
    %v1764 = vadd.f32 %v1762, %v169
    %v1765 = vadd.f32 %v1763, %v169
    %v1766 = vld [vmem:[%s25] sm:$0xff]
    %v1767 = vld [vmem:[%s27] sm:$0x1]
    %v1769 = vlaneseq
    %v1770 = vshrl.u32 %v1769, 7
    %v1771 = vsub.s32 0, %v1770
    %v1772 = vrot.slane %v1767, %v1771
    %v1775 = vsel %vm129, %v1764, 0
    %v1778 = vsel %vm129, %v1765, 0
    %1780 = vmatprep.subr.mxu0 0.0
    %1781 = vmatpush1.msra.mxu0 %v1766
    %1782 = vmatprep.subr.mxu0 0.0
    %1783 = vmatpush1.msra.mxu0 0.0
    %1784 = vmatprep.subr.mxu0 0.0
    %1785 = vmatpush1.msra.mxu0 0.0
    %1786 = vmatprep.subr.mxu0 0.0
    %1787 = vmatpush1.msra.mxu0 0.0
    %1788 = vmatprep.subr.mxu0 0.0
    %1789 = vmatpush1.msra.mxu0 0.0
    %1790 = vmatprep.subr.mxu0 0.0
    %1791 = vmatpush1.msra.mxu0 0.0
    %1792 = vmatprep.subr.mxu0 0.0
    %1793 = vmatpush1.msra.mxu0 0.0
    %1794 = vmatprep.subr.mxu0 0.0
    %1795 = vmatpush1.msra.mxu0 0.0
    %1796 = vmatprep.subr.mxu0 0.0
    %1797 = vmatpush1.msra.mxu0 0.0
    %1798 = vmatprep.subr.mxu0 0.0
    %1799 = vmatpush1.msra.mxu0 0.0
    %1800 = vmatprep.subr.mxu0 0.0
    %1801 = vmatpush1.msra.mxu0 0.0
    %1802 = vmatprep.subr.mxu0 0.0
    %1803 = vmatpush1.msra.mxu0 0.0
    %1804 = vmatprep.subr.mxu0 0.0
    %1805 = vmatpush1.msra.mxu0 0.0
    %1806 = vmatprep.subr.mxu0 0.0
    %1807 = vmatpush1.msra.mxu0 0.0
    %1808 = vmatprep.subr.mxu0 0.0
    %1809 = vmatpush1.msra.mxu0 0.0
    %1810 = vmatprep.subr.mxu0 0.0
    %1811 = vmatpush1.msra.mxu0 0.0
    %1812 = vmatprep.subr.mxu0 0.0
    %1813 = vmatpush1.msra.mxu0 0.0
    %1814 = vmatprep.subr.mxu0 0.0
    %1815 = vmatpush1.msra.mxu0 0.0
    %1816 = vmatprep.subr.mxu0 0.0
    %1817 = vmatpush1.msra.mxu0 0.0
    %1818 = vmatprep.subr.mxu0 0.0
    %1819 = vmatpush1.msra.mxu0 0.0
    %1820 = vmatprep.subr.mxu0 0.0
    %1821 = vmatpush1.msra.mxu0 0.0
    %1822 = vmatprep.subr.mxu0 0.0
    %1823 = vmatpush1.msra.mxu0 0.0
    %1824 = vmatprep.subr.mxu0 0.0
    %1825 = vmatpush1.msra.mxu0 0.0
    %1826 = vmatprep.subr.mxu0 0.0
    %1827 = vmatpush1.msra.mxu0 0.0
    %1828 = vmatprep.subr.mxu0 0.0
    %1829 = vmatpush1.msra.mxu0 0.0
    %1830 = vmatprep.subr.mxu0 0.0
    %1831 = vmatpush1.msra.mxu0 0.0
    %1832 = vmatprep.subr.mxu0 0.0
    %1833 = vmatpush1.msra.mxu0 0.0
    %1834 = vmatprep.subr.mxu0 0.0
    %1835 = vmatpush1.msra.mxu0 0.0
    %1836 = vmatprep.subr.mxu0 0.0
    %1837 = vmatpush1.msra.mxu0 0.0
    %1838 = vmatprep.subr.mxu0 0.0
    %1839 = vmatpush1.msra.mxu0 0.0
    %1840 = vmatprep.subr.mxu0 0.0
    %1841 = vmatpush1.msra.mxu0 0.0
    %1842 = vmatprep.subr.mxu0 0.0
    %1843 = vmatpush1.msra.mxu0 0.0
    %1844 = vmatprep.mubr.f32.mxu0 0.0
    %1845 = vmatmul.mubr.f32.gmra.mrb[0].mxu0 %v1775
    %v1846 = vpop.f32.mrb[0].mxu0
    %v1847 = vadd.f32 %v1772, %v1846
    %v1848 = vpop.f32.mrb[0].mxu0
    %1849 = vmatprep.mubr.f32.mxu0 0.0
    %1850 = vmatmul.mubr.f32.gmra.mrb[0].mxu0 %v1778
    %v1851 = vpop.f32.mrb[0].mxu0
    %v1852 = vadd.f32 %v1772, %v1851
    %v1853 = vpop.f32.mrb[0].mxu0
    %1854 = vdwg.mxu0
    %v1855 = vld [vmem:[%s31] sm:$0x1]
    %v1856 = vld [vmem:[%s33] sm:$0x1]
    %v1857 = vsel %vm129, %v1847, 0.0
    %1858 = vadd.xlane.f32.xlu0 %v1857
    %v1859 = vpop.xlane.xlu0 %1858
    %v1860 = vsel %vm129, %v1852, 0.0
    %1861 = vadd.xlane.f32.xlu0 %v1860
    %v1862 = vpop.xlane.xlu0 %1861
    %v1863 = vmul.f32 %v1859, %v136
    %v1864 = vmul.f32 %v1862, %v136
    %v1865 = vsub.f32 %v1847, %v1863
    %v1866 = vsub.f32 %v1852, %v1864
    %v1867 = vmul.f32 %v1865, %v1865
    %v1868 = vmul.f32 %v1866, %v1866
    %v1869 = vsel %vm129, %v1867, 0.0
    %1870 = vadd.xlane.f32.xlu0 %v1869
    %v1871 = vpop.xlane.xlu0 %1870
    %v1872 = vsel %vm129, %v1868, 0.0
    %1873 = vadd.xlane.f32.xlu0 %v1872
    %v1874 = vpop.xlane.xlu0 %1873
    %v1875 = vmul.f32 %v1871, %v136
    %v1876 = vmul.f32 %v1874, %v136
    %v1877 = vadd.f32 %v1875, 1e-05
    %v1878 = vadd.f32 %v1876, 1e-05
    %v1879 = vrsqrt.pop %v1877
    %v1880 = vrsqrt.pop %v1878
    %v1881 = vmul.f32 %v1865, %v1879
    %v1882 = vmul.f32 %v1866, %v1880
    %v1884 = vlaneseq
    %v1885 = vshrl.u32 %v1884, 7
    %v1886 = vsub.s32 0, %v1885
    %v1887 = vrot.slane %v1855, %v1886
    %v1889 = vmul.f32 %v1881, %v1887
    %v1890 = vmul.f32 %v1882, %v1887
    %v1892 = vlaneseq
    %v1893 = vshrl.u32 %v1892, 7
    %v1894 = vsub.s32 0, %v1893
    %v1895 = vrot.slane %v1856, %v1894
    %v1897 = vadd.f32 %v1889, %v1895
    %v1898 = vadd.f32 %v1890, %v1895
    %v1899 = vld [vmem:[%s35] sm:$0xff]
    %v1901 = vsel %vm129, %v1897, 0
    %v1904 = vsel %vm129, %v1898, 0
    %1906 = vmatprep.subr.mxu0 0.0
    %1907 = vmatpush1.msra.mxu0 %v1899
    %1908 = vmatprep.subr.mxu0 0.0
    %1909 = vmatpush1.msra.mxu0 0.0
    %1910 = vmatprep.subr.mxu0 0.0
    %1911 = vmatpush1.msra.mxu0 0.0
    %1912 = vmatprep.subr.mxu0 0.0
    %1913 = vmatpush1.msra.mxu0 0.0
    %1914 = vmatprep.subr.mxu0 0.0
    %1915 = vmatpush1.msra.mxu0 0.0
    %1916 = vmatprep.subr.mxu0 0.0
    %1917 = vmatpush1.msra.mxu0 0.0
    %1918 = vmatprep.subr.mxu0 0.0
    %1919 = vmatpush1.msra.mxu0 0.0
    %1920 = vmatprep.subr.mxu0 0.0
    %1921 = vmatpush1.msra.mxu0 0.0
    %1922 = vmatprep.subr.mxu0 0.0
    %1923 = vmatpush1.msra.mxu0 0.0
    %1924 = vmatprep.subr.mxu0 0.0
    %1925 = vmatpush1.msra.mxu0 0.0
    %1926 = vmatprep.subr.mxu0 0.0
    %1927 = vmatpush1.msra.mxu0 0.0
    %1928 = vmatprep.subr.mxu0 0.0
    %1929 = vmatpush1.msra.mxu0 0.0
    %1930 = vmatprep.subr.mxu0 0.0
    %1931 = vmatpush1.msra.mxu0 0.0
    %1932 = vmatprep.subr.mxu0 0.0
    %1933 = vmatpush1.msra.mxu0 0.0
    %1934 = vmatprep.subr.mxu0 0.0
    %1935 = vmatpush1.msra.mxu0 0.0
    %1936 = vmatprep.subr.mxu0 0.0
    %1937 = vmatpush1.msra.mxu0 0.0
    %1938 = vmatprep.subr.mxu0 0.0
    %1939 = vmatpush1.msra.mxu0 0.0
    %1940 = vmatprep.subr.mxu0 0.0
    %1941 = vmatpush1.msra.mxu0 0.0
    %1942 = vmatprep.subr.mxu0 0.0
    %1943 = vmatpush1.msra.mxu0 0.0
    %1944 = vmatprep.subr.mxu0 0.0
    %1945 = vmatpush1.msra.mxu0 0.0
    %1946 = vmatprep.subr.mxu0 0.0
    %1947 = vmatpush1.msra.mxu0 0.0
    %1948 = vmatprep.subr.mxu0 0.0
    %1949 = vmatpush1.msra.mxu0 0.0
    %1950 = vmatprep.subr.mxu0 0.0
    %1951 = vmatpush1.msra.mxu0 0.0
    %1952 = vmatprep.subr.mxu0 0.0
    %1953 = vmatpush1.msra.mxu0 0.0
    %1954 = vmatprep.subr.mxu0 0.0
    %1955 = vmatpush1.msra.mxu0 0.0
    %1956 = vmatprep.subr.mxu0 0.0
    %1957 = vmatpush1.msra.mxu0 0.0
    %1958 = vmatprep.subr.mxu0 0.0
    %1959 = vmatpush1.msra.mxu0 0.0
    %1960 = vmatprep.subr.mxu0 0.0
    %1961 = vmatpush1.msra.mxu0 0.0
    %1962 = vmatprep.subr.mxu0 0.0
    %1963 = vmatpush1.msra.mxu0 0.0
    %1964 = vmatprep.subr.mxu0 0.0
    %1965 = vmatpush1.msra.mxu0 0.0
    %1966 = vmatprep.subr.mxu0 0.0
    %1967 = vmatpush1.msra.mxu0 0.0
    %1968 = vmatprep.subr.mxu0 0.0
    %1969 = vmatpush1.msra.mxu0 0.0
    %1970 = vmatprep.mubr.f32.mxu0 0.0
    %1971 = vmatmul.mubr.f32.gmra.mrb[0].mxu0 %v1901
    %v1972 = vpop.f32.mrb[0].mxu0
    %v1973 = vadd.f32 0.0, %v1972
    %v1974 = vpop.f32.mrb[0].mxu0
    %1975 = vmatprep.mubr.f32.mxu0 0.0
    %1976 = vmatmul.mubr.f32.gmra.mrb[0].mxu0 %v1904
    %v1977 = vpop.f32.mrb[0].mxu0
    %v1978 = vadd.f32 0.0, %v1977
    %v1979 = vpop.f32.mrb[0].mxu0
    %1980 = vdwg.mxu0
    %v1983 = vrot.slane %v1973, 5
    %v1984 = vrot.slane %v1978, 5
    %v1987 = vsel %vm261, 0.0, %v1983
    %v1988 = vsel %vm261, 0.0, %v1984
    %v1989 = vld [vmem:[%s37] sm:$0xf]
    %v1990 = vld [vmem:[%s39] sm:$0x1]
    %v1992 = vlaneseq
    %v1993 = vshrl.u32 %v1992, 7
    %v1994 = vsub.s32 0, %v1993
    %v1995 = vrot.slane %v1990, %v1994
    %v1997 = vlaneseq
    %v1998 = vshrl.u32 %v1997, 7
    %v1999 = vsub.s32 0, %v1998
    %v2000 = vrot.slane %v1989, %v1999
    %v2001 = vmul.f32 %v1987, %v2000
    %v2002 = vmul.f32 %v1988, %v2000
    %v2003 = vadd.f32 %v1995, %v2001
    %v2004 = vadd.f32 %v1995, %v2002
    %v2005 = vlaneseq
    %v2006 = vshrl.u32 %v2005, 7
    %v2007 = vsub.s32 1, %v2006
    %v2008 = vrot.slane %v1989, %v2007
    %v2009 = vmul.f32 %v1987, %v2008
    %v2010 = vmul.f32 %v1983, %v2008
    %v2011 = vmul.f32 %v1988, %v2008
    %v2012 = vmul.f32 %v1984, %v2008
    %v2017 = vrot.slane %v2009, 1
    %v2018 = vrot.slane %v2010, 1
    %v2019 = vsel %vm292, %v2017, %v2018
    %v2020 = vrot.slane %v2011, 1
    %v2021 = vrot.slane %v2012, 1
    %v2022 = vsel %vm292, %v2020, %v2021
    %v2025 = vadd.f32 %v2003, %v2019
    %v2026 = vadd.f32 %v2004, %v2022
    %v2027 = vlaneseq
    %v2028 = vshrl.u32 %v2027, 7
    %v2029 = vsub.s32 2, %v2028
    %v2030 = vrot.slane %v1989, %v2029
    %v2031 = vmul.f32 %v1987, %v2030
    %v2032 = vmul.f32 %v1983, %v2030
    %v2033 = vmul.f32 %v1988, %v2030
    %v2034 = vmul.f32 %v1984, %v2030
    %v2039 = vrot.slane %v2031, 2
    %v2040 = vrot.slane %v2032, 2
    %v2041 = vsel %vm315, %v2039, %v2040
    %v2042 = vrot.slane %v2033, 2
    %v2043 = vrot.slane %v2034, 2
    %v2044 = vsel %vm315, %v2042, %v2043
    %v2047 = vadd.f32 %v2025, %v2041
    %v2048 = vadd.f32 %v2026, %v2044
    %v2049 = vlaneseq
    %v2050 = vshrl.u32 %v2049, 7
    %v2051 = vsub.s32 3, %v2050
    %v2052 = vrot.slane %v1989, %v2051
    %v2053 = vmul.f32 %v1987, %v2052
    %v2054 = vmul.f32 %v1983, %v2052
    %v2055 = vmul.f32 %v1988, %v2052
    %v2056 = vmul.f32 %v1984, %v2052
    %v2061 = vrot.slane %v2053, 3
    %v2062 = vrot.slane %v2054, 3
    %v2063 = vsel %vm338, %v2061, %v2062
    %v2064 = vrot.slane %v2055, 3
    %v2065 = vrot.slane %v2056, 3
    %v2066 = vsel %vm338, %v2064, %v2065
    %v2069 = vadd.f32 %v2047, %v2063
    %v2070 = vadd.f32 %v2048, %v2066
    %v2071 = vxor.u32 %v2069, 2147483648
    %v2072 = vxor.u32 %v2070, 2147483648
    %v2073 = vmul.f32 %v2071, 1.442695
    %v2074 = vpow.pop %v2073
    %v2075 = vmul.f32 %v2072, 1.442695
    %v2076 = vpow.pop %v2075
    %v2077 = vadd.f32 %v2074, 1.0
    %v2078 = vadd.f32 %v2076, 1.0
    %v2079 = vrcp.pop %v2077
    %v2080 = vmul.f32 1.0, %v2079
    %v2081 = vrcp.pop %v2078
    %v2082 = vmul.f32 1.0, %v2081
    %v2083 = vmul.f32 %v2069, %v2080
    %v2084 = vmul.f32 %v2070, %v2082
    %v2085 = vld [vmem:[%s41] sm:$0xff]
    %v2086 = vld [vmem:[%s41 + $0x8] sm:$0xff]
    %v2088 = vsel %vm365, %v2083, 0
    %v2091 = vsel %vm365, %v2084, 0
    %2093 = vmatprep.subr.mxu0 0.0
    %2094 = vmatpush1.msra.mxu0 %v2085
    %2095 = vmatprep.subr.mxu0 0.0
    %2096 = vmatpush1.msra.mxu0 %v2086
    %2097 = vmatprep.subr.mxu0 0.0
    %2098 = vmatpush1.msra.mxu0 0.0
    %2099 = vmatprep.subr.mxu0 0.0
    %2100 = vmatpush1.msra.mxu0 0.0
    %2101 = vmatprep.subr.mxu0 0.0
    %2102 = vmatpush1.msra.mxu0 0.0
    %2103 = vmatprep.subr.mxu0 0.0
    %2104 = vmatpush1.msra.mxu0 0.0
    %2105 = vmatprep.subr.mxu0 0.0
    %2106 = vmatpush1.msra.mxu0 0.0
    %2107 = vmatprep.subr.mxu0 0.0
    %2108 = vmatpush1.msra.mxu0 0.0
    %2109 = vmatprep.subr.mxu0 0.0
    %2110 = vmatpush1.msra.mxu0 0.0
    %2111 = vmatprep.subr.mxu0 0.0
    %2112 = vmatpush1.msra.mxu0 0.0
    %2113 = vmatprep.subr.mxu0 0.0
    %2114 = vmatpush1.msra.mxu0 0.0
    %2115 = vmatprep.subr.mxu0 0.0
    %2116 = vmatpush1.msra.mxu0 0.0
    %2117 = vmatprep.subr.mxu0 0.0
    %2118 = vmatpush1.msra.mxu0 0.0
    %2119 = vmatprep.subr.mxu0 0.0
    %2120 = vmatpush1.msra.mxu0 0.0
    %2121 = vmatprep.subr.mxu0 0.0
    %2122 = vmatpush1.msra.mxu0 0.0
    %2123 = vmatprep.subr.mxu0 0.0
    %2124 = vmatpush1.msra.mxu0 0.0
    %2125 = vmatprep.subr.mxu0 0.0
    %2126 = vmatpush1.msra.mxu0 0.0
    %2127 = vmatprep.subr.mxu0 0.0
    %2128 = vmatpush1.msra.mxu0 0.0
    %2129 = vmatprep.subr.mxu0 0.0
    %2130 = vmatpush1.msra.mxu0 0.0
    %2131 = vmatprep.subr.mxu0 0.0
    %2132 = vmatpush1.msra.mxu0 0.0
    %2133 = vmatprep.subr.mxu0 0.0
    %2134 = vmatpush1.msra.mxu0 0.0
    %2135 = vmatprep.subr.mxu0 0.0
    %2136 = vmatpush1.msra.mxu0 0.0
    %2137 = vmatprep.subr.mxu0 0.0
    %2138 = vmatpush1.msra.mxu0 0.0
    %2139 = vmatprep.subr.mxu0 0.0
    %2140 = vmatpush1.msra.mxu0 0.0
    %2141 = vmatprep.subr.mxu0 0.0
    %2142 = vmatpush1.msra.mxu0 0.0
    %2143 = vmatprep.subr.mxu0 0.0
    %2144 = vmatpush1.msra.mxu0 0.0
    %2145 = vmatprep.subr.mxu0 0.0
    %2146 = vmatpush1.msra.mxu0 0.0
    %2147 = vmatprep.subr.mxu0 0.0
    %2148 = vmatpush1.msra.mxu0 0.0
    %2149 = vmatprep.subr.mxu0 0.0
    %2150 = vmatpush1.msra.mxu0 0.0
    %2151 = vmatprep.subr.mxu0 0.0
    %2152 = vmatpush1.msra.mxu0 0.0
    %2153 = vmatprep.subr.mxu0 0.0
    %2154 = vmatpush1.msra.mxu0 0.0
    %2155 = vmatprep.subr.mxu0 0.0
    %2156 = vmatpush1.msra.mxu0 0.0
    %2157 = vmatprep.mubr.f32.mxu0 0.0
    %2158 = vmatmul.mubr.f32.gmra.mrb[0].mxu0 %v2088
    %v2159 = vpop.f32.mrb[0].mxu0
    %v2160 = vadd.f32 0.0, %v2159
    %v2161 = vpop.f32.mrb[0].mxu0
    %2162 = vmatprep.mubr.f32.mxu0 0.0
    %2163 = vmatmul.mubr.f32.gmra.mrb[0].mxu0 %v2091
    %v2164 = vpop.f32.mrb[0].mxu0
    %v2165 = vadd.f32 0.0, %v2164
    %v2166 = vpop.f32.mrb[0].mxu0
    %2167 = vdwg.mxu0
    %v2168 = vld [vmem:[%s43] sm:$0xff]
    %v2169 = vld [vmem:[%s43 + $0x8] sm:$0xff]
    %v2170 = vld [vmem:[%s45] sm:$0x1]
    %v2172 = vlaneseq
    %v2173 = vshrl.u32 %v2172, 7
    %v2174 = vsub.s32 0, %v2173
    %v2175 = vrot.slane %v2170, %v2174
    %2177 = vmatprep.subr.mxu0 0.0
    %2178 = vmatpush1.msra.mxu0 %v2168
    %2179 = vmatprep.subr.mxu0 0.0
    %2180 = vmatpush1.msra.mxu0 %v2169
    %2181 = vmatprep.subr.mxu0 0.0
    %2182 = vmatpush1.msra.mxu0 0.0
    %2183 = vmatprep.subr.mxu0 0.0
    %2184 = vmatpush1.msra.mxu0 0.0
    %2185 = vmatprep.subr.mxu0 0.0
    %2186 = vmatpush1.msra.mxu0 0.0
    %2187 = vmatprep.subr.mxu0 0.0
    %2188 = vmatpush1.msra.mxu0 0.0
    %2189 = vmatprep.subr.mxu0 0.0
    %2190 = vmatpush1.msra.mxu0 0.0
    %2191 = vmatprep.subr.mxu0 0.0
    %2192 = vmatpush1.msra.mxu0 0.0
    %2193 = vmatprep.subr.mxu0 0.0
    %2194 = vmatpush1.msra.mxu0 0.0
    %2195 = vmatprep.subr.mxu0 0.0
    %2196 = vmatpush1.msra.mxu0 0.0
    %2197 = vmatprep.subr.mxu0 0.0
    %2198 = vmatpush1.msra.mxu0 0.0
    %2199 = vmatprep.subr.mxu0 0.0
    %2200 = vmatpush1.msra.mxu0 0.0
    %2201 = vmatprep.subr.mxu0 0.0
    %2202 = vmatpush1.msra.mxu0 0.0
    %2203 = vmatprep.subr.mxu0 0.0
    %2204 = vmatpush1.msra.mxu0 0.0
    %2205 = vmatprep.subr.mxu0 0.0
    %2206 = vmatpush1.msra.mxu0 0.0
    %2207 = vmatprep.subr.mxu0 0.0
    %2208 = vmatpush1.msra.mxu0 0.0
    %2209 = vmatprep.subr.mxu0 0.0
    %2210 = vmatpush1.msra.mxu0 0.0
    %2211 = vmatprep.subr.mxu0 0.0
    %2212 = vmatpush1.msra.mxu0 0.0
    %2213 = vmatprep.subr.mxu0 0.0
    %2214 = vmatpush1.msra.mxu0 0.0
    %2215 = vmatprep.subr.mxu0 0.0
    %2216 = vmatpush1.msra.mxu0 0.0
    %2217 = vmatprep.subr.mxu0 0.0
    %2218 = vmatpush1.msra.mxu0 0.0
    %2219 = vmatprep.subr.mxu0 0.0
    %2220 = vmatpush1.msra.mxu0 0.0
    %2221 = vmatprep.subr.mxu0 0.0
    %2222 = vmatpush1.msra.mxu0 0.0
    %2223 = vmatprep.subr.mxu0 0.0
    %2224 = vmatpush1.msra.mxu0 0.0
    %2225 = vmatprep.subr.mxu0 0.0
    %2226 = vmatpush1.msra.mxu0 0.0
    %2227 = vmatprep.subr.mxu0 0.0
    %2228 = vmatpush1.msra.mxu0 0.0
    %2229 = vmatprep.subr.mxu0 0.0
    %2230 = vmatpush1.msra.mxu0 0.0
    %2231 = vmatprep.subr.mxu0 0.0
    %2232 = vmatpush1.msra.mxu0 0.0
    %2233 = vmatprep.subr.mxu0 0.0
    %2234 = vmatpush1.msra.mxu0 0.0
    %2235 = vmatprep.subr.mxu0 0.0
    %2236 = vmatpush1.msra.mxu0 0.0
    %2237 = vmatprep.subr.mxu0 0.0
    %2238 = vmatpush1.msra.mxu0 0.0
    %2239 = vmatprep.subr.mxu0 0.0
    %2240 = vmatpush1.msra.mxu0 0.0
    %2241 = vmatprep.mubr.f32.mxu0 0.0
    %2242 = vmatmul.mubr.f32.gmra.mrb[0].mxu0 %v2088
    %v2243 = vpop.f32.mrb[0].mxu0
    %v2244 = vadd.f32 %v2175, %v2243
    %v2245 = vpop.f32.mrb[0].mxu0
    %2246 = vmatprep.mubr.f32.mxu0 0.0
    %2247 = vmatmul.mubr.f32.gmra.mrb[0].mxu0 %v2091
    %v2248 = vpop.f32.mrb[0].mxu0
    %v2249 = vadd.f32 %v2175, %v2248
    %v2250 = vpop.f32.mrb[0].mxu0
    %2251 = vdwg.mxu0
    %v2252 = vmax.f32 %v2244, 0.0
    %v2253 = vmax.f32 %v2249, 0.0
    %vm2254 = vcmp.ne.f32.partialorder %v2244, %v2244
    %vm2255 = vcmp.ne.f32.partialorder %v2249, %v2249
    %v2256 = vadd.f32 %v2244, 0.0
    %v2257 = vadd.f32 %v2249, 0.0
    %v2258 = vand.u32 2147483647, %v2244
    %v2259 = vand.u32 2147483647, %v2249
    %v2260 = vsub.f32 0.0, %v2258
    %v2261 = vsub.f32 0.0, %v2259
    %v2262 = vmul.f32 %v2260, 1.442695
    %v2263 = vpow.pop %v2262
    %v2264 = vmul.f32 %v2261, 1.442695
    %v2265 = vpow.pop %v2264
    %v2266 = vadd.f32 %v2263, 1.0
    %v2267 = vlog2.pop %v2266
    %v2268 = vmul.f32 %v2267, 0.6931472
    %v2269 = vmul.f32 -0.5, %v2263
    %v2270 = vadd.f32 %v2269, 1.0
    %v2271 = vmul.f32 %v2270, %v2263
    %v2272 = vand.u32 2147483647, %v2263
    %vm2273 = vcmp.lt.f32.partialorder %v2272, 0.0004427343
    %v2274 = vsel %vm2273, %v2271, %v2268
    %v2275 = vadd.f32 %v2265, 1.0
    %v2276 = vlog2.pop %v2275
    %v2277 = vmul.f32 %v2276, 0.6931472
    %v2278 = vmul.f32 -0.5, %v2265
    %v2279 = vadd.f32 %v2278, 1.0
    %v2280 = vmul.f32 %v2279, %v2265
    %v2281 = vand.u32 2147483647, %v2265
    %vm2282 = vcmp.lt.f32.partialorder %v2281, 0.0004427343
    %v2283 = vsel %vm2282, %v2280, %v2277
    %v2284 = vadd.f32 %v2252, %v2274
    %v2285 = vadd.f32 %v2253, %v2283
    %v2286 = vsel %vm2254, %v2256, %v2284
    %v2287 = vsel %vm2255, %v2257, %v2285
    %v2288 = vld [vmem:[%s47] sm:$0xff]
    %v2289 = vld [vmem:[%s47 + $0x8] sm:$0xff]
    %v2290 = vlaneseq
    %v2291 = vshrl.u32 %v2290, 7
    %v2292 = vsub.s32 0, %v2291
    %v2293 = vrot.slane %v2286, %v2292
    %2295 = vbcast.lane.b32.xlu0 %v2293, 256
    %v2296 = vpop.permute.xlu0 %2295
    %s2298 = sor.u32 256, 8
    %2299 = vbcast.lane.b32.xlu0 %v2293, %s2298
    %v2300 = vpop.permute.xlu0 %2299
    %v2301 = vlaneseq
    %v2302 = vshrl.u32 %v2301, 7
    %v2303 = vsub.s32 0, %v2302
    %v2304 = vrot.slane %v2287, %v2303
    %2306 = vbcast.lane.b32.xlu0 %v2304, 256
    %v2307 = vpop.permute.xlu0 %2306
    %s2309 = sor.u32 256, 8
    %2310 = vbcast.lane.b32.xlu0 %v2304, %s2309
    %v2311 = vpop.permute.xlu0 %2310
    %v2312 = vmul.f32 %v2296, %v2288
    %v2313 = vmul.f32 %v2300, %v2289
    %v2314 = vmul.f32 %v2307, %v2288
    %v2315 = vmul.f32 %v2311, %v2289
    %v2316 = vmul.f32 %v2312, 1.442695
    %v2317 = vpow.pop %v2316
    %v2318 = vmul.f32 %v2313, 1.442695
    %v2319 = vpow.pop %v2318
    %v2320 = vmul.f32 %v2314, 1.442695
    %v2321 = vpow.pop %v2320
    %v2322 = vmul.f32 %v2315, 1.442695
    %v2323 = vpow.pop %v2322
    %v2324 = vlaneseq
    %v2325 = vshrl.u32 %v2324, 7
    %v2326 = vsub.s32 0, %v2325
    %v2327 = vrot.slane %v2160, %v2326
    %v2328 = vlaneseq
    %v2329 = vshrl.u32 %v2328, 7
    %v2330 = vsub.s32 0, %v2329
    %v2331 = vrot.slane %v2165, %v2330
    %v2332 = vmul.f32 %v2296, %v2327
    %v2333 = vmul.f32 %v2300, %v2327
    %v2334 = vmul.f32 %v2307, %v2331
    %v2335 = vmul.f32 %v2311, %v2331
    %v2336 = vlaneseq
    %v2337 = vshrl.u32 %v2336, 7
    %v2338 = vsub.s32 0, %v2337
    %v2339 = vrot.slane %v2083, %v2338
    %2341 = vbcast.lane.b32.xlu0 %v2339, 256
    %v2342 = vpop.permute.xlu0 %2341
    %s2344 = sor.u32 256, 8
    %2345 = vbcast.lane.b32.xlu0 %v2339, %s2344
    %v2346 = vpop.permute.xlu0 %2345
    %v2347 = vlaneseq
    %v2348 = vshrl.u32 %v2347, 7
    %v2349 = vsub.s32 0, %v2348
    %v2350 = vrot.slane %v2084, %v2349
    %2352 = vbcast.lane.b32.xlu0 %v2350, 256
    %v2353 = vpop.permute.xlu0 %2352
    %s2355 = sor.u32 256, 8
    %2356 = vbcast.lane.b32.xlu0 %v2350, %s2355
    %v2357 = vpop.permute.xlu0 %2356
    %v2358 = vmul.f32 %v2332, %v2342
    %v2359 = vmul.f32 %v2333, %v2346
    %v2360 = vmul.f32 %v2334, %v2353
    %v2361 = vmul.f32 %v2335, %v2357
    %v2362 = vmul.f32 %v2317, 0.0
    %v2363 = vmul.f32 %v2319, 0.0
    %v2364 = vmul.f32 %v2321, 0.0
    %v2365 = vmul.f32 %v2323, 0.0
    %v2366 = vadd.f32 %v2362, %v2358
    %v2367 = vadd.f32 %v2363, %v2359
    %v2368 = vadd.f32 %v2364, %v2360
    %v2369 = vadd.f32 %v2365, %v2361
    %2372 = vrot.lane.b32.xlu0 %v2327, 112
    %v2373 = vpop.permute.xlu0 %2372
    %2374 = vrot.lane.b32.xlu0 %v2331, 112
    %v2375 = vpop.permute.xlu0 %2374
    %v2378 = vmul.f32 %v2366, %v2373
    %v2379 = vmul.f32 %v2367, %v2373
    %v2380 = vmul.f32 %v2368, %v2375
    %v2381 = vmul.f32 %v2369, %v2375
    %v2382 = vsel %vm365, %v2378, 0.0
    %2383 = vadd.xlane.f32.xlu0 %v2382
    %v2384 = vpop.xlane.xlu0 %2383
    %v2385 = vsel %vm365, %v2379, 0.0
    %2386 = vadd.xlane.f32.xlu0 %v2385
    %v2387 = vpop.xlane.xlu0 %2386
    %v2388 = vsel %vm365, %v2380, 0.0
    %2389 = vadd.xlane.f32.xlu0 %v2388
    %v2390 = vpop.xlane.xlu0 %2389
    %v2391 = vsel %vm365, %v2381, 0.0
    %2392 = vadd.xlane.f32.xlu0 %v2391
    %v2393 = vpop.xlane.xlu0 %2392
    %v2394 = vlaneseq
    %v2395 = vshrl.u32 %v2394, 7
    %v2396 = vsub.s32 1, %v2395
    %v2397 = vrot.slane %v2286, %v2396
    %2399 = vbcast.lane.b32.xlu0 %v2397, 256
    %v2400 = vpop.permute.xlu0 %2399
    %s2402 = sor.u32 256, 8
    %2403 = vbcast.lane.b32.xlu0 %v2397, %s2402
    %v2404 = vpop.permute.xlu0 %2403
    %v2405 = vlaneseq
    %v2406 = vshrl.u32 %v2405, 7
    %v2407 = vsub.s32 1, %v2406
    %v2408 = vrot.slane %v2287, %v2407
    %2410 = vbcast.lane.b32.xlu0 %v2408, 256
    %v2411 = vpop.permute.xlu0 %2410
    %s2413 = sor.u32 256, 8
    %2414 = vbcast.lane.b32.xlu0 %v2408, %s2413
    %v2415 = vpop.permute.xlu0 %2414
    %v2416 = vmul.f32 %v2400, %v2288
    %v2417 = vmul.f32 %v2404, %v2289
    %v2418 = vmul.f32 %v2411, %v2288
    %v2419 = vmul.f32 %v2415, %v2289
    %v2420 = vmul.f32 %v2416, 1.442695
    %v2421 = vpow.pop %v2420
    %v2422 = vmul.f32 %v2417, 1.442695
    %v2423 = vpow.pop %v2422
    %v2424 = vmul.f32 %v2418, 1.442695
    %v2425 = vpow.pop %v2424
    %v2426 = vmul.f32 %v2419, 1.442695
    %v2427 = vpow.pop %v2426
    %v2428 = vlaneseq
    %v2429 = vshrl.u32 %v2428, 7
    %v2430 = vsub.s32 1, %v2429
    %v2431 = vrot.slane %v2160, %v2430
    %v2432 = vlaneseq
    %v2433 = vshrl.u32 %v2432, 7
    %v2434 = vsub.s32 1, %v2433
    %v2435 = vrot.slane %v2165, %v2434
    %v2436 = vmul.f32 %v2400, %v2431
    %v2437 = vmul.f32 %v2404, %v2431
    %v2438 = vmul.f32 %v2411, %v2435
    %v2439 = vmul.f32 %v2415, %v2435
    %v2440 = vlaneseq
    %v2441 = vshrl.u32 %v2440, 7
    %v2442 = vsub.s32 1, %v2441
    %v2443 = vrot.slane %v2083, %v2442
    %2445 = vbcast.lane.b32.xlu0 %v2443, 256
    %v2446 = vpop.permute.xlu0 %2445
    %s2448 = sor.u32 256, 8
    %2449 = vbcast.lane.b32.xlu0 %v2443, %s2448
    %v2450 = vpop.permute.xlu0 %2449
    %v2451 = vlaneseq
    %v2452 = vshrl.u32 %v2451, 7
    %v2453 = vsub.s32 1, %v2452
    %v2454 = vrot.slane %v2084, %v2453
    %2456 = vbcast.lane.b32.xlu0 %v2454, 256
    %v2457 = vpop.permute.xlu0 %2456
    %s2459 = sor.u32 256, 8
    %2460 = vbcast.lane.b32.xlu0 %v2454, %s2459
    %v2461 = vpop.permute.xlu0 %2460
    %v2462 = vmul.f32 %v2436, %v2446
    %v2463 = vmul.f32 %v2437, %v2450
    %v2464 = vmul.f32 %v2438, %v2457
    %v2465 = vmul.f32 %v2439, %v2461
    %v2466 = vmul.f32 %v2421, %v2366
    %v2467 = vmul.f32 %v2423, %v2367
    %v2468 = vmul.f32 %v2425, %v2368
    %v2469 = vmul.f32 %v2427, %v2369
    %v2470 = vadd.f32 %v2466, %v2462
    %v2471 = vadd.f32 %v2467, %v2463
    %v2472 = vadd.f32 %v2468, %v2464
    %v2473 = vadd.f32 %v2469, %v2465
    %2476 = vrot.lane.b32.xlu0 %v2431, 112
    %v2477 = vpop.permute.xlu0 %2476
    %2478 = vrot.lane.b32.xlu0 %v2435, 112
    %v2479 = vpop.permute.xlu0 %2478
    %v2482 = vmul.f32 %v2470, %v2477
    %v2483 = vmul.f32 %v2471, %v2477
    %v2484 = vmul.f32 %v2472, %v2479
    %v2485 = vmul.f32 %v2473, %v2479
    %v2486 = vsel %vm365, %v2482, 0.0
    %2487 = vadd.xlane.f32.xlu0 %v2486
    %v2488 = vpop.xlane.xlu0 %2487
    %v2489 = vsel %vm365, %v2483, 0.0
    %2490 = vadd.xlane.f32.xlu0 %v2489
    %v2491 = vpop.xlane.xlu0 %2490
    %v2492 = vsel %vm365, %v2484, 0.0
    %2493 = vadd.xlane.f32.xlu0 %v2492
    %v2494 = vpop.xlane.xlu0 %2493
    %v2495 = vsel %vm365, %v2485, 0.0
    %2496 = vadd.xlane.f32.xlu0 %v2495
    %v2497 = vpop.xlane.xlu0 %2496
    %v2498 = vlaneseq
    %v2499 = vshrl.u32 %v2498, 7
    %v2500 = vsub.s32 2, %v2499
    %v2501 = vrot.slane %v2286, %v2500
    %2503 = vbcast.lane.b32.xlu0 %v2501, 256
    %v2504 = vpop.permute.xlu0 %2503
    %s2506 = sor.u32 256, 8
    %2507 = vbcast.lane.b32.xlu0 %v2501, %s2506
    %v2508 = vpop.permute.xlu0 %2507
    %v2509 = vlaneseq
    %v2510 = vshrl.u32 %v2509, 7
    %v2511 = vsub.s32 2, %v2510
    %v2512 = vrot.slane %v2287, %v2511
    %2514 = vbcast.lane.b32.xlu0 %v2512, 256
    %v2515 = vpop.permute.xlu0 %2514
    %s2517 = sor.u32 256, 8
    %2518 = vbcast.lane.b32.xlu0 %v2512, %s2517
    %v2519 = vpop.permute.xlu0 %2518
    %v2520 = vmul.f32 %v2504, %v2288
    %v2521 = vmul.f32 %v2508, %v2289
    %v2522 = vmul.f32 %v2515, %v2288
    %v2523 = vmul.f32 %v2519, %v2289
    %v2524 = vmul.f32 %v2520, 1.442695
    %v2525 = vpow.pop %v2524
    %v2526 = vmul.f32 %v2521, 1.442695
    %v2527 = vpow.pop %v2526
    %v2528 = vmul.f32 %v2522, 1.442695
    %v2529 = vpow.pop %v2528
    %v2530 = vmul.f32 %v2523, 1.442695
    %v2531 = vpow.pop %v2530
    %v2532 = vlaneseq
    %v2533 = vshrl.u32 %v2532, 7
    %v2534 = vsub.s32 2, %v2533
    %v2535 = vrot.slane %v2160, %v2534
    %v2536 = vlaneseq
    %v2537 = vshrl.u32 %v2536, 7
    %v2538 = vsub.s32 2, %v2537
    %v2539 = vrot.slane %v2165, %v2538
    %v2540 = vmul.f32 %v2504, %v2535
    %v2541 = vmul.f32 %v2508, %v2535
    %v2542 = vmul.f32 %v2515, %v2539
    %v2543 = vmul.f32 %v2519, %v2539
    %v2544 = vlaneseq
    %v2545 = vshrl.u32 %v2544, 7
    %v2546 = vsub.s32 2, %v2545
    %v2547 = vrot.slane %v2083, %v2546
    %2549 = vbcast.lane.b32.xlu0 %v2547, 256
    %v2550 = vpop.permute.xlu0 %2549
    %s2552 = sor.u32 256, 8
    %2553 = vbcast.lane.b32.xlu0 %v2547, %s2552
    %v2554 = vpop.permute.xlu0 %2553
    %v2555 = vlaneseq
    %v2556 = vshrl.u32 %v2555, 7
    %v2557 = vsub.s32 2, %v2556
    %v2558 = vrot.slane %v2084, %v2557
    %2560 = vbcast.lane.b32.xlu0 %v2558, 256
    %v2561 = vpop.permute.xlu0 %2560
    %s2563 = sor.u32 256, 8
    %2564 = vbcast.lane.b32.xlu0 %v2558, %s2563
    %v2565 = vpop.permute.xlu0 %2564
    %v2566 = vmul.f32 %v2540, %v2550
    %v2567 = vmul.f32 %v2541, %v2554
    %v2568 = vmul.f32 %v2542, %v2561
    %v2569 = vmul.f32 %v2543, %v2565
    %v2570 = vmul.f32 %v2525, %v2470
    %v2571 = vmul.f32 %v2527, %v2471
    %v2572 = vmul.f32 %v2529, %v2472
    %v2573 = vmul.f32 %v2531, %v2473
    %v2574 = vadd.f32 %v2570, %v2566
    %v2575 = vadd.f32 %v2571, %v2567
    %v2576 = vadd.f32 %v2572, %v2568
    %v2577 = vadd.f32 %v2573, %v2569
    %2580 = vrot.lane.b32.xlu0 %v2535, 112
    %v2581 = vpop.permute.xlu0 %2580
    %2582 = vrot.lane.b32.xlu0 %v2539, 112
    %v2583 = vpop.permute.xlu0 %2582
    %v2586 = vmul.f32 %v2574, %v2581
    %v2587 = vmul.f32 %v2575, %v2581
    %v2588 = vmul.f32 %v2576, %v2583
    %v2589 = vmul.f32 %v2577, %v2583
    %v2590 = vsel %vm365, %v2586, 0.0
    %2591 = vadd.xlane.f32.xlu0 %v2590
    %v2592 = vpop.xlane.xlu0 %2591
    %v2593 = vsel %vm365, %v2587, 0.0
    %2594 = vadd.xlane.f32.xlu0 %v2593
    %v2595 = vpop.xlane.xlu0 %2594
    %v2596 = vsel %vm365, %v2588, 0.0
    %2597 = vadd.xlane.f32.xlu0 %v2596
    %v2598 = vpop.xlane.xlu0 %2597
    %v2599 = vsel %vm365, %v2589, 0.0
    %2600 = vadd.xlane.f32.xlu0 %v2599
    %v2601 = vpop.xlane.xlu0 %2600
    %v2602 = vlaneseq
    %v2603 = vshrl.u32 %v2602, 7
    %v2604 = vsub.s32 3, %v2603
    %v2605 = vrot.slane %v2286, %v2604
    %2607 = vbcast.lane.b32.xlu0 %v2605, 256
    %v2608 = vpop.permute.xlu0 %2607
    %s2610 = sor.u32 256, 8
    %2611 = vbcast.lane.b32.xlu0 %v2605, %s2610
    %v2612 = vpop.permute.xlu0 %2611
    %v2613 = vlaneseq
    %v2614 = vshrl.u32 %v2613, 7
    %v2615 = vsub.s32 3, %v2614
    %v2616 = vrot.slane %v2287, %v2615
    %2618 = vbcast.lane.b32.xlu0 %v2616, 256
    %v2619 = vpop.permute.xlu0 %2618
    %s2621 = sor.u32 256, 8
    %2622 = vbcast.lane.b32.xlu0 %v2616, %s2621
    %v2623 = vpop.permute.xlu0 %2622
    %v2624 = vmul.f32 %v2608, %v2288
    %v2625 = vmul.f32 %v2612, %v2289
    %v2626 = vmul.f32 %v2619, %v2288
    %v2627 = vmul.f32 %v2623, %v2289
    %v2628 = vmul.f32 %v2624, 1.442695
    %v2629 = vpow.pop %v2628
    %v2630 = vmul.f32 %v2625, 1.442695
    %v2631 = vpow.pop %v2630
    %v2632 = vmul.f32 %v2626, 1.442695
    %v2633 = vpow.pop %v2632
    %v2634 = vmul.f32 %v2627, 1.442695
    %v2635 = vpow.pop %v2634
    %v2636 = vlaneseq
    %v2637 = vshrl.u32 %v2636, 7
    %v2638 = vsub.s32 3, %v2637
    %v2639 = vrot.slane %v2160, %v2638
    %v2640 = vlaneseq
    %v2641 = vshrl.u32 %v2640, 7
    %v2642 = vsub.s32 3, %v2641
    %v2643 = vrot.slane %v2165, %v2642
    %v2644 = vmul.f32 %v2608, %v2639
    %v2645 = vmul.f32 %v2612, %v2639
    %v2646 = vmul.f32 %v2619, %v2643
    %v2647 = vmul.f32 %v2623, %v2643
    %v2648 = vlaneseq
    %v2649 = vshrl.u32 %v2648, 7
    %v2650 = vsub.s32 3, %v2649
    %v2651 = vrot.slane %v2083, %v2650
    %2653 = vbcast.lane.b32.xlu0 %v2651, 256
    %v2654 = vpop.permute.xlu0 %2653
    %s2656 = sor.u32 256, 8
    %2657 = vbcast.lane.b32.xlu0 %v2651, %s2656
    %v2658 = vpop.permute.xlu0 %2657
    %v2659 = vlaneseq
    %v2660 = vshrl.u32 %v2659, 7
    %v2661 = vsub.s32 3, %v2660
    %v2662 = vrot.slane %v2084, %v2661
    %2664 = vbcast.lane.b32.xlu0 %v2662, 256
    %v2665 = vpop.permute.xlu0 %2664
    %s2667 = sor.u32 256, 8
    %2668 = vbcast.lane.b32.xlu0 %v2662, %s2667
    %v2669 = vpop.permute.xlu0 %2668
    %v2670 = vmul.f32 %v2644, %v2654
    %v2671 = vmul.f32 %v2645, %v2658
    %v2672 = vmul.f32 %v2646, %v2665
    %v2673 = vmul.f32 %v2647, %v2669
    %v2674 = vmul.f32 %v2629, %v2574
    %v2675 = vmul.f32 %v2631, %v2575
    %v2676 = vmul.f32 %v2633, %v2576
    %v2677 = vmul.f32 %v2635, %v2577
    %v2678 = vadd.f32 %v2674, %v2670
    %v2679 = vadd.f32 %v2675, %v2671
    %v2680 = vadd.f32 %v2676, %v2672
    %v2681 = vadd.f32 %v2677, %v2673
    %2684 = vrot.lane.b32.xlu0 %v2639, 112
    %v2685 = vpop.permute.xlu0 %2684
    %2686 = vrot.lane.b32.xlu0 %v2643, 112
    %v2687 = vpop.permute.xlu0 %2686
    %v2690 = vmul.f32 %v2678, %v2685
    %v2691 = vmul.f32 %v2679, %v2685
    %v2692 = vmul.f32 %v2680, %v2687
    %v2693 = vmul.f32 %v2681, %v2687
    %v2694 = vsel %vm365, %v2690, 0.0
    %2695 = vadd.xlane.f32.xlu0 %v2694
    %v2696 = vpop.xlane.xlu0 %2695
    %v2697 = vsel %vm365, %v2691, 0.0
    %2698 = vadd.xlane.f32.xlu0 %v2697
    %v2699 = vpop.xlane.xlu0 %2698
    %v2700 = vsel %vm365, %v2692, 0.0
    %2701 = vadd.xlane.f32.xlu0 %v2700
    %v2702 = vpop.xlane.xlu0 %2701
    %v2703 = vsel %vm365, %v2693, 0.0
    %2704 = vadd.xlane.f32.xlu0 %v2703
    %v2705 = vpop.xlane.xlu0 %2704
    %v2706 = vlaneseq
    %v2707 = vshrl.u32 %v2706, 7
    %v2708 = vsub.s32 4, %v2707
    %v2709 = vrot.slane %v2286, %v2708
    %2711 = vbcast.lane.b32.xlu0 %v2709, 256
    %v2712 = vpop.permute.xlu0 %2711
    %s2714 = sor.u32 256, 8
    %2715 = vbcast.lane.b32.xlu0 %v2709, %s2714
    %v2716 = vpop.permute.xlu0 %2715
    %v2717 = vlaneseq
    %v2718 = vshrl.u32 %v2717, 7
    %v2719 = vsub.s32 4, %v2718
    %v2720 = vrot.slane %v2287, %v2719
    %2722 = vbcast.lane.b32.xlu0 %v2720, 256
    %v2723 = vpop.permute.xlu0 %2722
    %s2725 = sor.u32 256, 8
    %2726 = vbcast.lane.b32.xlu0 %v2720, %s2725
    %v2727 = vpop.permute.xlu0 %2726
    %v2728 = vmul.f32 %v2712, %v2288
    %v2729 = vmul.f32 %v2716, %v2289
    %v2730 = vmul.f32 %v2723, %v2288
    %v2731 = vmul.f32 %v2727, %v2289
    %v2732 = vmul.f32 %v2728, 1.442695
    %v2733 = vpow.pop %v2732
    %v2734 = vmul.f32 %v2729, 1.442695
    %v2735 = vpow.pop %v2734
    %v2736 = vmul.f32 %v2730, 1.442695
    %v2737 = vpow.pop %v2736
    %v2738 = vmul.f32 %v2731, 1.442695
    %v2739 = vpow.pop %v2738
    %v2740 = vlaneseq
    %v2741 = vshrl.u32 %v2740, 7
    %v2742 = vsub.s32 4, %v2741
    %v2743 = vrot.slane %v2160, %v2742
    %v2744 = vlaneseq
    %v2745 = vshrl.u32 %v2744, 7
    %v2746 = vsub.s32 4, %v2745
    %v2747 = vrot.slane %v2165, %v2746
    %v2748 = vmul.f32 %v2712, %v2743
    %v2749 = vmul.f32 %v2716, %v2743
    %v2750 = vmul.f32 %v2723, %v2747
    %v2751 = vmul.f32 %v2727, %v2747
    %v2752 = vlaneseq
    %v2753 = vshrl.u32 %v2752, 7
    %v2754 = vsub.s32 4, %v2753
    %v2755 = vrot.slane %v2083, %v2754
    %2757 = vbcast.lane.b32.xlu0 %v2755, 256
    %v2758 = vpop.permute.xlu0 %2757
    %s2760 = sor.u32 256, 8
    %2761 = vbcast.lane.b32.xlu0 %v2755, %s2760
    %v2762 = vpop.permute.xlu0 %2761
    %v2763 = vlaneseq
    %v2764 = vshrl.u32 %v2763, 7
    %v2765 = vsub.s32 4, %v2764
    %v2766 = vrot.slane %v2084, %v2765
    %2768 = vbcast.lane.b32.xlu0 %v2766, 256
    %v2769 = vpop.permute.xlu0 %2768
    %s2771 = sor.u32 256, 8
    %2772 = vbcast.lane.b32.xlu0 %v2766, %s2771
    %v2773 = vpop.permute.xlu0 %2772
    %v2774 = vmul.f32 %v2748, %v2758
    %v2775 = vmul.f32 %v2749, %v2762
    %v2776 = vmul.f32 %v2750, %v2769
    %v2777 = vmul.f32 %v2751, %v2773
    %v2778 = vmul.f32 %v2733, %v2678
    %v2779 = vmul.f32 %v2735, %v2679
    %v2780 = vmul.f32 %v2737, %v2680
    %v2781 = vmul.f32 %v2739, %v2681
    %v2782 = vadd.f32 %v2778, %v2774
    %v2783 = vadd.f32 %v2779, %v2775
    %v2784 = vadd.f32 %v2780, %v2776
    %v2785 = vadd.f32 %v2781, %v2777
    %2788 = vrot.lane.b32.xlu0 %v2743, 112
    %v2789 = vpop.permute.xlu0 %2788
    %2790 = vrot.lane.b32.xlu0 %v2747, 112
    %v2791 = vpop.permute.xlu0 %2790
    %v2794 = vmul.f32 %v2782, %v2789
    %v2795 = vmul.f32 %v2783, %v2789
    %v2796 = vmul.f32 %v2784, %v2791
    %v2797 = vmul.f32 %v2785, %v2791
    %v2798 = vsel %vm365, %v2794, 0.0
    %2799 = vadd.xlane.f32.xlu0 %v2798
    %v2800 = vpop.xlane.xlu0 %2799
    %v2801 = vsel %vm365, %v2795, 0.0
    %2802 = vadd.xlane.f32.xlu0 %v2801
    %v2803 = vpop.xlane.xlu0 %2802
    %v2804 = vsel %vm365, %v2796, 0.0
    %2805 = vadd.xlane.f32.xlu0 %v2804
    %v2806 = vpop.xlane.xlu0 %2805
    %v2807 = vsel %vm365, %v2797, 0.0
    %2808 = vadd.xlane.f32.xlu0 %v2807
    %v2809 = vpop.xlane.xlu0 %2808
    %v2810 = vlaneseq
    %v2811 = vshrl.u32 %v2810, 7
    %v2812 = vsub.s32 5, %v2811
    %v2813 = vrot.slane %v2286, %v2812
    %2815 = vbcast.lane.b32.xlu0 %v2813, 256
    %v2816 = vpop.permute.xlu0 %2815
    %s2818 = sor.u32 256, 8
    %2819 = vbcast.lane.b32.xlu0 %v2813, %s2818
    %v2820 = vpop.permute.xlu0 %2819
    %v2821 = vlaneseq
    %v2822 = vshrl.u32 %v2821, 7
    %v2823 = vsub.s32 5, %v2822
    %v2824 = vrot.slane %v2287, %v2823
    %2826 = vbcast.lane.b32.xlu0 %v2824, 256
    %v2827 = vpop.permute.xlu0 %2826
    %s2829 = sor.u32 256, 8
    %2830 = vbcast.lane.b32.xlu0 %v2824, %s2829
    %v2831 = vpop.permute.xlu0 %2830
    %v2832 = vmul.f32 %v2816, %v2288
    %v2833 = vmul.f32 %v2820, %v2289
    %v2834 = vmul.f32 %v2827, %v2288
    %v2835 = vmul.f32 %v2831, %v2289
    %v2836 = vmul.f32 %v2832, 1.442695
    %v2837 = vpow.pop %v2836
    %v2838 = vmul.f32 %v2833, 1.442695
    %v2839 = vpow.pop %v2838
    %v2840 = vmul.f32 %v2834, 1.442695
    %v2841 = vpow.pop %v2840
    %v2842 = vmul.f32 %v2835, 1.442695
    %v2843 = vpow.pop %v2842
    %v2844 = vlaneseq
    %v2845 = vshrl.u32 %v2844, 7
    %v2846 = vsub.s32 5, %v2845
    %v2847 = vrot.slane %v2160, %v2846
    %v2848 = vlaneseq
    %v2849 = vshrl.u32 %v2848, 7
    %v2850 = vsub.s32 5, %v2849
    %v2851 = vrot.slane %v2165, %v2850
    %v2852 = vmul.f32 %v2816, %v2847
    %v2853 = vmul.f32 %v2820, %v2847
    %v2854 = vmul.f32 %v2827, %v2851
    %v2855 = vmul.f32 %v2831, %v2851
    %v2856 = vlaneseq
    %v2857 = vshrl.u32 %v2856, 7
    %v2858 = vsub.s32 5, %v2857
    %v2859 = vrot.slane %v2083, %v2858
    %2861 = vbcast.lane.b32.xlu0 %v2859, 256
    %v2862 = vpop.permute.xlu0 %2861
    %s2864 = sor.u32 256, 8
    %2865 = vbcast.lane.b32.xlu0 %v2859, %s2864
    %v2866 = vpop.permute.xlu0 %2865
    %v2867 = vlaneseq
    %v2868 = vshrl.u32 %v2867, 7
    %v2869 = vsub.s32 5, %v2868
    %v2870 = vrot.slane %v2084, %v2869
    %2872 = vbcast.lane.b32.xlu0 %v2870, 256
    %v2873 = vpop.permute.xlu0 %2872
    %s2875 = sor.u32 256, 8
    %2876 = vbcast.lane.b32.xlu0 %v2870, %s2875
    %v2877 = vpop.permute.xlu0 %2876
    %v2878 = vmul.f32 %v2852, %v2862
    %v2879 = vmul.f32 %v2853, %v2866
    %v2880 = vmul.f32 %v2854, %v2873
    %v2881 = vmul.f32 %v2855, %v2877
    %v2882 = vmul.f32 %v2837, %v2782
    %v2883 = vmul.f32 %v2839, %v2783
    %v2884 = vmul.f32 %v2841, %v2784
    %v2885 = vmul.f32 %v2843, %v2785
    %v2886 = vadd.f32 %v2882, %v2878
    %v2887 = vadd.f32 %v2883, %v2879
    %v2888 = vadd.f32 %v2884, %v2880
    %v2889 = vadd.f32 %v2885, %v2881
    %2892 = vrot.lane.b32.xlu0 %v2847, 112
    %v2893 = vpop.permute.xlu0 %2892
    %2894 = vrot.lane.b32.xlu0 %v2851, 112
    %v2895 = vpop.permute.xlu0 %2894
    %v2898 = vmul.f32 %v2886, %v2893
    %v2899 = vmul.f32 %v2887, %v2893
    %v2900 = vmul.f32 %v2888, %v2895
    %v2901 = vmul.f32 %v2889, %v2895
    %v2902 = vsel %vm365, %v2898, 0.0
    %2903 = vadd.xlane.f32.xlu0 %v2902
    %v2904 = vpop.xlane.xlu0 %2903
    %v2905 = vsel %vm365, %v2899, 0.0
    %2906 = vadd.xlane.f32.xlu0 %v2905
    %v2907 = vpop.xlane.xlu0 %2906
    %v2908 = vsel %vm365, %v2900, 0.0
    %2909 = vadd.xlane.f32.xlu0 %v2908
    %v2910 = vpop.xlane.xlu0 %2909
    %v2911 = vsel %vm365, %v2901, 0.0
    %2912 = vadd.xlane.f32.xlu0 %v2911
    %v2913 = vpop.xlane.xlu0 %2912
    %v2914 = vlaneseq
    %v2915 = vshrl.u32 %v2914, 7
    %v2916 = vsub.s32 6, %v2915
    %v2917 = vrot.slane %v2286, %v2916
    %2919 = vbcast.lane.b32.xlu0 %v2917, 256
    %v2920 = vpop.permute.xlu0 %2919
    %s2922 = sor.u32 256, 8
    %2923 = vbcast.lane.b32.xlu0 %v2917, %s2922
    %v2924 = vpop.permute.xlu0 %2923
    %v2925 = vlaneseq
    %v2926 = vshrl.u32 %v2925, 7
    %v2927 = vsub.s32 6, %v2926
    %v2928 = vrot.slane %v2287, %v2927
    %2930 = vbcast.lane.b32.xlu0 %v2928, 256
    %v2931 = vpop.permute.xlu0 %2930
    %s2933 = sor.u32 256, 8
    %2934 = vbcast.lane.b32.xlu0 %v2928, %s2933
    %v2935 = vpop.permute.xlu0 %2934
    %v2936 = vmul.f32 %v2920, %v2288
    %v2937 = vmul.f32 %v2924, %v2289
    %v2938 = vmul.f32 %v2931, %v2288
    %v2939 = vmul.f32 %v2935, %v2289
    %v2940 = vmul.f32 %v2936, 1.442695
    %v2941 = vpow.pop %v2940
    %v2942 = vmul.f32 %v2937, 1.442695
    %v2943 = vpow.pop %v2942
    %v2944 = vmul.f32 %v2938, 1.442695
    %v2945 = vpow.pop %v2944
    %v2946 = vmul.f32 %v2939, 1.442695
    %v2947 = vpow.pop %v2946
    %v2948 = vlaneseq
    %v2949 = vshrl.u32 %v2948, 7
    %v2950 = vsub.s32 6, %v2949
    %v2951 = vrot.slane %v2160, %v2950
    %v2952 = vlaneseq
    %v2953 = vshrl.u32 %v2952, 7
    %v2954 = vsub.s32 6, %v2953
    %v2955 = vrot.slane %v2165, %v2954
    %v2956 = vmul.f32 %v2920, %v2951
    %v2957 = vmul.f32 %v2924, %v2951
    %v2958 = vmul.f32 %v2931, %v2955
    %v2959 = vmul.f32 %v2935, %v2955
    %v2960 = vlaneseq
    %v2961 = vshrl.u32 %v2960, 7
    %v2962 = vsub.s32 6, %v2961
    %v2963 = vrot.slane %v2083, %v2962
    %2965 = vbcast.lane.b32.xlu0 %v2963, 256
    %v2966 = vpop.permute.xlu0 %2965
    %s2968 = sor.u32 256, 8
    %2969 = vbcast.lane.b32.xlu0 %v2963, %s2968
    %v2970 = vpop.permute.xlu0 %2969
    %v2971 = vlaneseq
    %v2972 = vshrl.u32 %v2971, 7
    %v2973 = vsub.s32 6, %v2972
    %v2974 = vrot.slane %v2084, %v2973
    %2976 = vbcast.lane.b32.xlu0 %v2974, 256
    %v2977 = vpop.permute.xlu0 %2976
    %s2979 = sor.u32 256, 8
    %2980 = vbcast.lane.b32.xlu0 %v2974, %s2979
    %v2981 = vpop.permute.xlu0 %2980
    %v2982 = vmul.f32 %v2956, %v2966
    %v2983 = vmul.f32 %v2957, %v2970
    %v2984 = vmul.f32 %v2958, %v2977
    %v2985 = vmul.f32 %v2959, %v2981
    %v2986 = vmul.f32 %v2941, %v2886
    %v2987 = vmul.f32 %v2943, %v2887
    %v2988 = vmul.f32 %v2945, %v2888
    %v2989 = vmul.f32 %v2947, %v2889
    %v2990 = vadd.f32 %v2986, %v2982
    %v2991 = vadd.f32 %v2987, %v2983
    %v2992 = vadd.f32 %v2988, %v2984
    %v2993 = vadd.f32 %v2989, %v2985
    %2996 = vrot.lane.b32.xlu0 %v2951, 112
    %v2997 = vpop.permute.xlu0 %2996
    %2998 = vrot.lane.b32.xlu0 %v2955, 112
    %v2999 = vpop.permute.xlu0 %2998
    %v3002 = vmul.f32 %v2990, %v2997
    %v3003 = vmul.f32 %v2991, %v2997
    %v3004 = vmul.f32 %v2992, %v2999
    %v3005 = vmul.f32 %v2993, %v2999
    %v3006 = vsel %vm365, %v3002, 0.0
    %3007 = vadd.xlane.f32.xlu0 %v3006
    %v3008 = vpop.xlane.xlu0 %3007
    %v3009 = vsel %vm365, %v3003, 0.0
    %3010 = vadd.xlane.f32.xlu0 %v3009
    %v3011 = vpop.xlane.xlu0 %3010
    %v3012 = vsel %vm365, %v3004, 0.0
    %3013 = vadd.xlane.f32.xlu0 %v3012
    %v3014 = vpop.xlane.xlu0 %3013
    %v3015 = vsel %vm365, %v3005, 0.0
    %3016 = vadd.xlane.f32.xlu0 %v3015
    %v3017 = vpop.xlane.xlu0 %3016
    %v3018 = vlaneseq
    %v3019 = vshrl.u32 %v3018, 7
    %v3020 = vsub.s32 7, %v3019
    %v3021 = vrot.slane %v2286, %v3020
    %3023 = vbcast.lane.b32.xlu0 %v3021, 256
    %v3024 = vpop.permute.xlu0 %3023
    %s3026 = sor.u32 256, 8
    %3027 = vbcast.lane.b32.xlu0 %v3021, %s3026
    %v3028 = vpop.permute.xlu0 %3027
    %v3029 = vlaneseq
    %v3030 = vshrl.u32 %v3029, 7
    %v3031 = vsub.s32 7, %v3030
    %v3032 = vrot.slane %v2287, %v3031
    %3034 = vbcast.lane.b32.xlu0 %v3032, 256
    %v3035 = vpop.permute.xlu0 %3034
    %s3037 = sor.u32 256, 8
    %3038 = vbcast.lane.b32.xlu0 %v3032, %s3037
    %v3039 = vpop.permute.xlu0 %3038
    %v3040 = vmul.f32 %v3024, %v2288
    %v3041 = vmul.f32 %v3028, %v2289
    %v3042 = vmul.f32 %v3035, %v2288
    %v3043 = vmul.f32 %v3039, %v2289
    %v3044 = vmul.f32 %v3040, 1.442695
    %v3045 = vpow.pop %v3044
    %v3046 = vmul.f32 %v3041, 1.442695
    %v3047 = vpow.pop %v3046
    %v3048 = vmul.f32 %v3042, 1.442695
    %v3049 = vpow.pop %v3048
    %v3050 = vmul.f32 %v3043, 1.442695
    %v3051 = vpow.pop %v3050
    %v3052 = vlaneseq
    %v3053 = vshrl.u32 %v3052, 7
    %v3054 = vsub.s32 7, %v3053
    %v3055 = vrot.slane %v2160, %v3054
    %v3056 = vlaneseq
    %v3057 = vshrl.u32 %v3056, 7
    %v3058 = vsub.s32 7, %v3057
    %v3059 = vrot.slane %v2165, %v3058
    %v3060 = vmul.f32 %v3024, %v3055
    %v3061 = vmul.f32 %v3028, %v3055
    %v3062 = vmul.f32 %v3035, %v3059
    %v3063 = vmul.f32 %v3039, %v3059
    %v3064 = vlaneseq
    %v3065 = vshrl.u32 %v3064, 7
    %v3066 = vsub.s32 7, %v3065
    %v3067 = vrot.slane %v2083, %v3066
    %3069 = vbcast.lane.b32.xlu0 %v3067, 256
    %v3070 = vpop.permute.xlu0 %3069
    %s3072 = sor.u32 256, 8
    %3073 = vbcast.lane.b32.xlu0 %v3067, %s3072
    %v3074 = vpop.permute.xlu0 %3073
    %v3075 = vlaneseq
    %v3076 = vshrl.u32 %v3075, 7
    %v3077 = vsub.s32 7, %v3076
    %v3078 = vrot.slane %v2084, %v3077
    %3080 = vbcast.lane.b32.xlu0 %v3078, 256
    %v3081 = vpop.permute.xlu0 %3080
    %s3083 = sor.u32 256, 8
    %3084 = vbcast.lane.b32.xlu0 %v3078, %s3083
    %v3085 = vpop.permute.xlu0 %3084
    %v3086 = vmul.f32 %v3060, %v3070
    %v3087 = vmul.f32 %v3061, %v3074
    %v3088 = vmul.f32 %v3062, %v3081
    %v3089 = vmul.f32 %v3063, %v3085
    %v3090 = vmul.f32 %v3045, %v2990
    %v3091 = vmul.f32 %v3047, %v2991
    %v3092 = vmul.f32 %v3049, %v2992
    %v3093 = vmul.f32 %v3051, %v2993
    %v3094 = vadd.f32 %v3090, %v3086
    %v3095 = vadd.f32 %v3091, %v3087
    %v3096 = vadd.f32 %v3092, %v3088
    %v3097 = vadd.f32 %v3093, %v3089
    %3100 = vrot.lane.b32.xlu0 %v3055, 112
    %v3101 = vpop.permute.xlu0 %3100
    %3102 = vrot.lane.b32.xlu0 %v3059, 112
    %v3103 = vpop.permute.xlu0 %3102
    %v3106 = vmul.f32 %v3094, %v3101
    %v3107 = vmul.f32 %v3095, %v3101
    %v3108 = vmul.f32 %v3096, %v3103
    %v3109 = vmul.f32 %v3097, %v3103
    %v3110 = vsel %vm365, %v3106, 0.0
    %3111 = vadd.xlane.f32.xlu0 %v3110
    %v3112 = vpop.xlane.xlu0 %3111
    %v3113 = vsel %vm365, %v3107, 0.0
    %3114 = vadd.xlane.f32.xlu0 %v3113
    %v3115 = vpop.xlane.xlu0 %3114
    %v3116 = vsel %vm365, %v3108, 0.0
    %3117 = vadd.xlane.f32.xlu0 %v3116
    %v3118 = vpop.xlane.xlu0 %3117
    %v3119 = vsel %vm365, %v3109, 0.0
    %3120 = vadd.xlane.f32.xlu0 %v3119
    %v3121 = vpop.xlane.xlu0 %3120
    %v3126 = vlaneseq
    %v3127 = vshrl.u32 %v3126, 7
    %v3128 = vsub.s32 %v1406, %v3127
    %v3129 = vrot.slane %v2384, %v3128
    %v3130 = vlaneseq
    %v3131 = vshrl.u32 %v3130, 7
    %v3132 = vsub.s32 %v1411, %v3131
    %v3133 = vrot.slane %v2387, %v3132
    %v3134 = vsel %vm1416, %v3133, %v3129
    %v3135 = vlaneseq
    %v3136 = vshrl.u32 %v3135, 7
    %v3137 = vsub.s32 %v1406, %v3136
    %v3138 = vrot.slane %v2390, %v3137
    %v3139 = vlaneseq
    %v3140 = vshrl.u32 %v3139, 7
    %v3141 = vsub.s32 %v1411, %v3140
    %v3142 = vrot.slane %v2393, %v3141
    %v3143 = vsel %vm1416, %v3142, %v3138
    %v3150 = vlaneseq
    %v3151 = vshrl.u32 %v3150, 7
    %v3152 = vsub.s32 %v1406, %v3151
    %v3153 = vrot.slane %v2488, %v3152
    %v3154 = vlaneseq
    %v3155 = vshrl.u32 %v3154, 7
    %v3156 = vsub.s32 %v1411, %v3155
    %v3157 = vrot.slane %v2491, %v3156
    %v3158 = vsel %vm1416, %v3157, %v3153
    %v3159 = vlaneseq
    %v3160 = vshrl.u32 %v3159, 7
    %v3161 = vsub.s32 %v1406, %v3160
    %v3162 = vrot.slane %v2494, %v3161
    %v3163 = vlaneseq
    %v3164 = vshrl.u32 %v3163, 7
    %v3165 = vsub.s32 %v1411, %v3164
    %v3166 = vrot.slane %v2497, %v3165
    %v3167 = vsel %vm1416, %v3166, %v3162
    %v3174 = vlaneseq
    %v3175 = vshrl.u32 %v3174, 7
    %v3176 = vsub.s32 %v1406, %v3175
    %v3177 = vrot.slane %v2592, %v3176
    %v3178 = vlaneseq
    %v3179 = vshrl.u32 %v3178, 7
    %v3180 = vsub.s32 %v1411, %v3179
    %v3181 = vrot.slane %v2595, %v3180
    %v3182 = vsel %vm1416, %v3181, %v3177
    %v3183 = vlaneseq
    %v3184 = vshrl.u32 %v3183, 7
    %v3185 = vsub.s32 %v1406, %v3184
    %v3186 = vrot.slane %v2598, %v3185
    %v3187 = vlaneseq
    %v3188 = vshrl.u32 %v3187, 7
    %v3189 = vsub.s32 %v1411, %v3188
    %v3190 = vrot.slane %v2601, %v3189
    %v3191 = vsel %vm1416, %v3190, %v3186
    %v3198 = vlaneseq
    %v3199 = vshrl.u32 %v3198, 7
    %v3200 = vsub.s32 %v1406, %v3199
    %v3201 = vrot.slane %v2696, %v3200
    %v3202 = vlaneseq
    %v3203 = vshrl.u32 %v3202, 7
    %v3204 = vsub.s32 %v1411, %v3203
    %v3205 = vrot.slane %v2699, %v3204
    %v3206 = vsel %vm1416, %v3205, %v3201
    %v3207 = vlaneseq
    %v3208 = vshrl.u32 %v3207, 7
    %v3209 = vsub.s32 %v1406, %v3208
    %v3210 = vrot.slane %v2702, %v3209
    %v3211 = vlaneseq
    %v3212 = vshrl.u32 %v3211, 7
    %v3213 = vsub.s32 %v1411, %v3212
    %v3214 = vrot.slane %v2705, %v3213
    %v3215 = vsel %vm1416, %v3214, %v3210
    %v3222 = vlaneseq
    %v3223 = vshrl.u32 %v3222, 7
    %v3224 = vsub.s32 %v1406, %v3223
    %v3225 = vrot.slane %v2800, %v3224
    %v3226 = vlaneseq
    %v3227 = vshrl.u32 %v3226, 7
    %v3228 = vsub.s32 %v1411, %v3227
    %v3229 = vrot.slane %v2803, %v3228
    %v3230 = vsel %vm1416, %v3229, %v3225
    %v3231 = vlaneseq
    %v3232 = vshrl.u32 %v3231, 7
    %v3233 = vsub.s32 %v1406, %v3232
    %v3234 = vrot.slane %v2806, %v3233
    %v3235 = vlaneseq
    %v3236 = vshrl.u32 %v3235, 7
    %v3237 = vsub.s32 %v1411, %v3236
    %v3238 = vrot.slane %v2809, %v3237
    %v3239 = vsel %vm1416, %v3238, %v3234
    %v3246 = vlaneseq
    %v3247 = vshrl.u32 %v3246, 7
    %v3248 = vsub.s32 %v1406, %v3247
    %v3249 = vrot.slane %v2904, %v3248
    %v3250 = vlaneseq
    %v3251 = vshrl.u32 %v3250, 7
    %v3252 = vsub.s32 %v1411, %v3251
    %v3253 = vrot.slane %v2907, %v3252
    %v3254 = vsel %vm1416, %v3253, %v3249
    %v3255 = vlaneseq
    %v3256 = vshrl.u32 %v3255, 7
    %v3257 = vsub.s32 %v1406, %v3256
    %v3258 = vrot.slane %v2910, %v3257
    %v3259 = vlaneseq
    %v3260 = vshrl.u32 %v3259, 7
    %v3261 = vsub.s32 %v1411, %v3260
    %v3262 = vrot.slane %v2913, %v3261
    %v3263 = vsel %vm1416, %v3262, %v3258
    %v3270 = vlaneseq
    %v3271 = vshrl.u32 %v3270, 7
    %v3272 = vsub.s32 %v1406, %v3271
    %v3273 = vrot.slane %v3008, %v3272
    %v3274 = vlaneseq
    %v3275 = vshrl.u32 %v3274, 7
    %v3276 = vsub.s32 %v1411, %v3275
    %v3277 = vrot.slane %v3011, %v3276
    %v3278 = vsel %vm1416, %v3277, %v3273
    %v3279 = vlaneseq
    %v3280 = vshrl.u32 %v3279, 7
    %v3281 = vsub.s32 %v1406, %v3280
    %v3282 = vrot.slane %v3014, %v3281
    %v3283 = vlaneseq
    %v3284 = vshrl.u32 %v3283, 7
    %v3285 = vsub.s32 %v1411, %v3284
    %v3286 = vrot.slane %v3017, %v3285
    %v3287 = vsel %vm1416, %v3286, %v3282
    %v3294 = vlaneseq
    %v3295 = vshrl.u32 %v3294, 7
    %v3296 = vsub.s32 %v1406, %v3295
    %v3297 = vrot.slane %v3112, %v3296
    %v3298 = vlaneseq
    %v3299 = vshrl.u32 %v3298, 7
    %v3300 = vsub.s32 %v1411, %v3299
    %v3301 = vrot.slane %v3115, %v3300
    %v3302 = vsel %vm1416, %v3301, %v3297
    %v3303 = vlaneseq
    %v3304 = vshrl.u32 %v3303, 7
    %v3305 = vsub.s32 %v1406, %v3304
    %v3306 = vrot.slane %v3118, %v3305
    %v3307 = vlaneseq
    %v3308 = vshrl.u32 %v3307, 7
    %v3309 = vsub.s32 %v1411, %v3308
    %v3310 = vrot.slane %v3121, %v3309
    %v3311 = vsel %vm1416, %v3310, %v3306
    %v3314 = vsel %vm1597, %v3134, %v3158
    %v3315 = vsel %vm1597, %v3143, %v3167
    %v3316 = vsel %vm1600, %v3314, %v3182
    %v3317 = vsel %vm1600, %v3315, %v3191
    %v3318 = vsel %vm261, %v3316, %v3206
    %v3319 = vsel %vm261, %v3317, %v3215
    %v3320 = vsel %vm1605, %v3318, %v3230
    %v3321 = vsel %vm1605, %v3319, %v3239
    %v3322 = vsel %vm338, %v3320, %v3254
    %v3323 = vsel %vm338, %v3321, %v3263
    %v3324 = vsel %vm315, %v3322, %v3278
    %v3325 = vsel %vm315, %v3323, %v3287
    %v3326 = vsel %vm292, %v3324, %v3302
    %v3327 = vsel %vm292, %v3325, %v3311
    %v3328 = vld [vmem:[%s49] sm:$0x1]
    %v3330 = vlaneseq
    %v3331 = vshrl.u32 %v3330, 7
    %v3332 = vsub.s32 0, %v3331
    %v3333 = vrot.slane %v3328, %v3332
    %v3335 = vmul.f32 %v2083, %v3333
    %v3336 = vmul.f32 %v2084, %v3333
    %v3337 = vadd.f32 %v3326, %v3335
    %v3338 = vadd.f32 %v3327, %v3336
    %v3339 = vxor.u32 %v1973, 2147483648
    %v3340 = vxor.u32 %v1978, 2147483648
    %v3341 = vmul.f32 %v3339, 1.442695
    %v3342 = vpow.pop %v3341
    %v3343 = vmul.f32 %v3340, 1.442695
    %v3344 = vpow.pop %v3343
    %v3345 = vadd.f32 %v3342, 1.0
    %v3346 = vadd.f32 %v3344, 1.0
    %v3347 = vrcp.pop %v3345
    %v3348 = vmul.f32 1.0, %v3347
    %v3349 = vrcp.pop %v3346
    %v3350 = vmul.f32 1.0, %v3349
    %v3351 = vmul.f32 %v1973, %v3348
    %v3352 = vmul.f32 %v1978, %v3350
    %3355 = vrot.lane.b32.xlu0 %v3351, 112
    %v3356 = vpop.permute.xlu0 %3355
    %3357 = vrot.lane.b32.xlu0 %v3352, 112
    %v3358 = vpop.permute.xlu0 %3357
    %v3361 = vmul.f32 %v3337, %v3356
    %v3362 = vmul.f32 %v3338, %v3358
    %v3363 = vld [vmem:[%s51] sm:$0xff]
    %v3364 = vld [vmem:[%s51 + $0x8] sm:$0xff]
    %s3365 = sld [smem:[#allocation3]]
    %v3366 = vstv %s3365
    %v3367 = vmul.f32 %v3366, %v1847
    %v3368 = vmul.f32 %v3366, %v1852
    %v3370 = vsel %vm365, %v3361, 0
    %v3373 = vsel %vm365, %v3362, 0
    %3375 = vmatprep.subr.mxu0 0.0
    %3376 = vmatpush1.msra.mxu0 %v3363
    %3377 = vmatprep.subr.mxu0 0.0
    %3378 = vmatpush1.msra.mxu0 %v3364
    %3379 = vmatprep.subr.mxu0 0.0
    %3380 = vmatpush1.msra.mxu0 0.0
    %3381 = vmatprep.subr.mxu0 0.0
    %3382 = vmatpush1.msra.mxu0 0.0
    %3383 = vmatprep.subr.mxu0 0.0
    %3384 = vmatpush1.msra.mxu0 0.0
    %3385 = vmatprep.subr.mxu0 0.0
    %3386 = vmatpush1.msra.mxu0 0.0
    %3387 = vmatprep.subr.mxu0 0.0
    %3388 = vmatpush1.msra.mxu0 0.0
    %3389 = vmatprep.subr.mxu0 0.0
    %3390 = vmatpush1.msra.mxu0 0.0
    %3391 = vmatprep.subr.mxu0 0.0
    %3392 = vmatpush1.msra.mxu0 0.0
    %3393 = vmatprep.subr.mxu0 0.0
    %3394 = vmatpush1.msra.mxu0 0.0
    %3395 = vmatprep.subr.mxu0 0.0
    %3396 = vmatpush1.msra.mxu0 0.0
    %3397 = vmatprep.subr.mxu0 0.0
    %3398 = vmatpush1.msra.mxu0 0.0
    %3399 = vmatprep.subr.mxu0 0.0
    %3400 = vmatpush1.msra.mxu0 0.0
    %3401 = vmatprep.subr.mxu0 0.0
    %3402 = vmatpush1.msra.mxu0 0.0
    %3403 = vmatprep.subr.mxu0 0.0
    %3404 = vmatpush1.msra.mxu0 0.0
    %3405 = vmatprep.subr.mxu0 0.0
    %3406 = vmatpush1.msra.mxu0 0.0
    %3407 = vmatprep.subr.mxu0 0.0
    %3408 = vmatpush1.msra.mxu0 0.0
    %3409 = vmatprep.subr.mxu0 0.0
    %3410 = vmatpush1.msra.mxu0 0.0
    %3411 = vmatprep.subr.mxu0 0.0
    %3412 = vmatpush1.msra.mxu0 0.0
    %3413 = vmatprep.subr.mxu0 0.0
    %3414 = vmatpush1.msra.mxu0 0.0
    %3415 = vmatprep.subr.mxu0 0.0
    %3416 = vmatpush1.msra.mxu0 0.0
    %3417 = vmatprep.subr.mxu0 0.0
    %3418 = vmatpush1.msra.mxu0 0.0
    %3419 = vmatprep.subr.mxu0 0.0
    %3420 = vmatpush1.msra.mxu0 0.0
    %3421 = vmatprep.subr.mxu0 0.0
    %3422 = vmatpush1.msra.mxu0 0.0
    %3423 = vmatprep.subr.mxu0 0.0
    %3424 = vmatpush1.msra.mxu0 0.0
    %3425 = vmatprep.subr.mxu0 0.0
    %3426 = vmatpush1.msra.mxu0 0.0
    %3427 = vmatprep.subr.mxu0 0.0
    %3428 = vmatpush1.msra.mxu0 0.0
    %3429 = vmatprep.subr.mxu0 0.0
    %3430 = vmatpush1.msra.mxu0 0.0
    %3431 = vmatprep.subr.mxu0 0.0
    %3432 = vmatpush1.msra.mxu0 0.0
    %3433 = vmatprep.subr.mxu0 0.0
    %3434 = vmatpush1.msra.mxu0 0.0
    %3435 = vmatprep.subr.mxu0 0.0
    %3436 = vmatpush1.msra.mxu0 0.0
    %3437 = vmatprep.subr.mxu0 0.0
    %3438 = vmatpush1.msra.mxu0 0.0
    %3439 = vmatprep.mubr.f32.mxu0 0.0
    %3440 = vmatmul.mubr.f32.gmra.mrb[0].mxu0 %v3370
    %v3441 = vpop.f32.mrb[0].mxu0
    %v3442 = vadd.f32 %v3367, %v3441
    %v3443 = vpop.f32.mrb[0].mxu0
    %3444 = vmatprep.mubr.f32.mxu0 0.0
    %3445 = vmatmul.mubr.f32.gmra.mrb[0].mxu0 %v3373
    %v3446 = vpop.f32.mrb[0].mxu0
    %v3447 = vadd.f32 %v3368, %v3446
    %v3448 = vpop.f32.mrb[0].mxu0
    %3449 = vdwg.mxu0
    %v3450 = vsel %vm129, %v3442, 0.0
    %3451 = vadd.xlane.f32.xlu0 %v3450
    %v3452 = vpop.xlane.xlu0 %3451
    %v3453 = vsel %vm129, %v3447, 0.0
    %3454 = vadd.xlane.f32.xlu0 %v3453
    %v3455 = vpop.xlane.xlu0 %3454
    %v3456 = vmul.f32 %v3452, %v136
    %v3457 = vmul.f32 %v3455, %v136
    %v3458 = vsub.f32 %v3442, %v3456
    %v3459 = vsub.f32 %v3447, %v3457
    %v3460 = vmul.f32 %v3458, %v3458
    %v3461 = vmul.f32 %v3459, %v3459
    %v3462 = vsel %vm129, %v3460, 0.0
    %3463 = vadd.xlane.f32.xlu0 %v3462
    %v3464 = vpop.xlane.xlu0 %3463
    %v3465 = vsel %vm129, %v3461, 0.0
    %3466 = vadd.xlane.f32.xlu0 %v3465
    %v3467 = vpop.xlane.xlu0 %3466
    %v3468 = vmul.f32 %v3464, %v136
    %v3469 = vmul.f32 %v3467, %v136
    %v3470 = vadd.f32 %v3468, 1e-05
    %v3471 = vadd.f32 %v3469, 1e-05
    %v3472 = vrsqrt.pop %v3470
    %v3473 = vrsqrt.pop %v3471
    %v3474 = vmul.f32 %v3458, %v3472
    %v3475 = vmul.f32 %v3459, %v3473
    %v3476 = vmul.f32 %v3474, %v1887
    %v3477 = vmul.f32 %v3475, %v1887
    %v3478 = vadd.f32 %v3476, %v1895
    %v3479 = vadd.f32 %v3477, %v1895
    %v3480 = vld [vmem:[%s53] sm:$0xff]
    %v3481 = vld [vmem:[%s55] sm:$0x1]
    %v3483 = vlaneseq
    %v3484 = vshrl.u32 %v3483, 7
    %v3485 = vsub.s32 0, %v3484
    %v3486 = vrot.slane %v3481, %v3485
    %v3489 = vsel %vm129, %v3478, 0
    %v3492 = vsel %vm129, %v3479, 0
    %3494 = vmatprep.subr.mxu0 0.0
    %3495 = vmatpush1.msra.mxu0 %v3480
    %3496 = vmatprep.subr.mxu0 0.0
    %3497 = vmatpush1.msra.mxu0 0.0
    %3498 = vmatprep.subr.mxu0 0.0
    %3499 = vmatpush1.msra.mxu0 0.0
    %3500 = vmatprep.subr.mxu0 0.0
    %3501 = vmatpush1.msra.mxu0 0.0
    %3502 = vmatprep.subr.mxu0 0.0
    %3503 = vmatpush1.msra.mxu0 0.0
    %3504 = vmatprep.subr.mxu0 0.0
    %3505 = vmatpush1.msra.mxu0 0.0
    %3506 = vmatprep.subr.mxu0 0.0
    %3507 = vmatpush1.msra.mxu0 0.0
    %3508 = vmatprep.subr.mxu0 0.0
    %3509 = vmatpush1.msra.mxu0 0.0
    %3510 = vmatprep.subr.mxu0 0.0
    %3511 = vmatpush1.msra.mxu0 0.0
    %3512 = vmatprep.subr.mxu0 0.0
    %3513 = vmatpush1.msra.mxu0 0.0
    %3514 = vmatprep.subr.mxu0 0.0
    %3515 = vmatpush1.msra.mxu0 0.0
    %3516 = vmatprep.subr.mxu0 0.0
    %3517 = vmatpush1.msra.mxu0 0.0
    %3518 = vmatprep.subr.mxu0 0.0
    %3519 = vmatpush1.msra.mxu0 0.0
    %3520 = vmatprep.subr.mxu0 0.0
    %3521 = vmatpush1.msra.mxu0 0.0
    %3522 = vmatprep.subr.mxu0 0.0
    %3523 = vmatpush1.msra.mxu0 0.0
    %3524 = vmatprep.subr.mxu0 0.0
    %3525 = vmatpush1.msra.mxu0 0.0
    %3526 = vmatprep.subr.mxu0 0.0
    %3527 = vmatpush1.msra.mxu0 0.0
    %3528 = vmatprep.subr.mxu0 0.0
    %3529 = vmatpush1.msra.mxu0 0.0
    %3530 = vmatprep.subr.mxu0 0.0
    %3531 = vmatpush1.msra.mxu0 0.0
    %3532 = vmatprep.subr.mxu0 0.0
    %3533 = vmatpush1.msra.mxu0 0.0
    %3534 = vmatprep.subr.mxu0 0.0
    %3535 = vmatpush1.msra.mxu0 0.0
    %3536 = vmatprep.subr.mxu0 0.0
    %3537 = vmatpush1.msra.mxu0 0.0
    %3538 = vmatprep.subr.mxu0 0.0
    %3539 = vmatpush1.msra.mxu0 0.0
    %3540 = vmatprep.subr.mxu0 0.0
    %3541 = vmatpush1.msra.mxu0 0.0
    %3542 = vmatprep.subr.mxu0 0.0
    %3543 = vmatpush1.msra.mxu0 0.0
    %3544 = vmatprep.subr.mxu0 0.0
    %3545 = vmatpush1.msra.mxu0 0.0
    %3546 = vmatprep.subr.mxu0 0.0
    %3547 = vmatpush1.msra.mxu0 0.0
    %3548 = vmatprep.subr.mxu0 0.0
    %3549 = vmatpush1.msra.mxu0 0.0
    %3550 = vmatprep.subr.mxu0 0.0
    %3551 = vmatpush1.msra.mxu0 0.0
    %3552 = vmatprep.subr.mxu0 0.0
    %3553 = vmatpush1.msra.mxu0 0.0
    %3554 = vmatprep.subr.mxu0 0.0
    %3555 = vmatpush1.msra.mxu0 0.0
    %3556 = vmatprep.subr.mxu0 0.0
    %3557 = vmatpush1.msra.mxu0 0.0
    %3558 = vmatprep.mubr.f32.mxu0 0.0
    %3559 = vmatmul.mubr.f32.gmra.mrb[0].mxu0 %v3489
    %v3560 = vpop.f32.mrb[0].mxu0
    %v3561 = vadd.f32 %v3486, %v3560
    %v3562 = vpop.f32.mrb[0].mxu0
    %3563 = vmatprep.mubr.f32.mxu0 0.0
    %3564 = vmatmul.mubr.f32.gmra.mrb[0].mxu0 %v3492
    %v3565 = vpop.f32.mrb[0].mxu0
    %v3566 = vadd.f32 %v3486, %v3565
    %v3567 = vpop.f32.mrb[0].mxu0
    %3568 = vdwg.mxu0
    %v3569 = vadd.f32 %v3561, %v125
    %v3570 = vadd.f32 %v3566, %v126
    %3571 = vst.msk [vmem:[#allocation4] sm:$0xff] %vm129, %v3569
    %3572 = vst.msk [vmem:[#allocation4 + $0x8] sm:$0xff] %vm129, %v3570
    // Predicated region
    $region118: #{res_mamba_block.1} parent=1 // pred_check
      _
    $region119: #{res_mamba_block.1} parent=1 // pred_check_branch
      %3574 = sbr.rel (0) target = $region121
    $region120: #{res_mamba_block.1} parent=1 // pred_region
      %s3576 = ssub.s32 256, 256
      %3577 = vsyncadd [#allocation5], %s3576
      %s3578 = sshll.u32 [#allocation4], 4
      %s3579 = int_to_ptr.vmem [resolvable:$true] %s3578
      %3584 = dma.vmem_to_hbm [thread:$0]  %s3579, 256, %s59, [#allocation5], 128, 128, 8
    $region121: #{res_mamba_block.1} parent=1 // pred_fallthru
      _
    // Predicated region
    $region122: #{res_mamba_block.1} parent=1 // pred_check
      _
    $region123: #{res_mamba_block.1} parent=1 // pred_check_branch
      %3586 = sbr.rel (0) target = $region125
    $region124: #{res_mamba_block.1} parent=1 // pred_region
      %3587 = dma.done [#allocation5], 256
    $region125: #{res_mamba_block.1} parent=1 // pred_fallthru
      _
    %3588 = vsyncpa [#allocation5], 1

</llo_original>
